<compile_context>
chip_gen: v6e
topology: v6e:2x2x1
jax: 0.10.0
libtpu: 0.0.40
codegen_flags: <defaults>
</compile_context>

<pallas_src>
import functools

import jax
import jax.numpy as jnp
import numpy as np
from jax.experimental import pallas as pl
from jax.experimental.pallas import tpu as pltpu


# ----------------------------------------------------------------------------
# Complex matmul helpers (MXU, f32 accumulation).
#   f_ref holds 4 stacked planes: [F_re, F_im, F_re+F_im, F_re-F_im]
#   Gauss (3-multiply) form for large tiles; stacked (2 wide pushes) form for
#   small tiles.
# ----------------------------------------------------------------------------
def _cmul_left(f_ref, xr, xi, *, conj, stacked):
    """(F or conj(F)) @ (xr + i*xi) -> (re, im) in f32."""
    fr = f_ref[0]
    fi = f_ref[1]
    if stacked:
        rhs = jnp.concatenate([xr, xi], axis=-1)                  # [M, 2N]
        a = jnp.dot(fr, rhs, preferred_element_type=jnp.float32)
        b = jnp.dot(fi, rhs, preferred_element_type=jnp.float32)
        n = xr.shape[-1]
        if conj:
            return a[:, :n] + b[:, n:], a[:, n:] - b[:, :n]
        return a[:, :n] - b[:, n:], a[:, n:] + b[:, :n]
    t1 = jnp.dot(fr, xr, preferred_element_type=jnp.float32)
    t2 = jnp.dot(fi, xi, preferred_element_type=jnp.float32)
    if conj:
        t3 = jnp.dot(f_ref[3], xr + xi, preferred_element_type=jnp.float32)
        return t1 + t2, t3 - t1 + t2
    t3 = jnp.dot(f_ref[2], xr + xi, preferred_element_type=jnp.float32)
    return t1 - t2, t3 - t1 - t2


def _cmul_right(xr, xi, f_ref, *, conj, stacked):
    """(xr + i*xi) @ (F or conj(F)) -> (re, im) in f32."""
    fr = f_ref[0]
    fi = f_ref[1]
    if stacked:
        lhs = jnp.concatenate([xr, xi], axis=0)                   # [2M, N]
        a = jnp.dot(lhs, fr, preferred_element_type=jnp.float32)
        b = jnp.dot(lhs, fi, preferred_element_type=jnp.float32)
        m = xr.shape[0]
        if conj:
            return a[:m] + b[m:], a[m:] - b[:m]
        return a[:m] - b[m:], a[m:] + b[:m]
    t1 = jnp.dot(xr, fr, preferred_element_type=jnp.float32)
    t2 = jnp.dot(xi, fi, preferred_element_type=jnp.float32)
    if conj:
        t3 = jnp.dot(xr + xi, f_ref[3], preferred_element_type=jnp.float32)
        return t1 + t2, t3 - t1 + t2
    t3 = jnp.dot(xr + xi, f_ref[2], preferred_element_type=jnp.float32)
    return t1 - t2, t3 - t1 - t2


# ----------------------------------------------------------------------------
# Kernel: one (batch, coil-split, coil) grid step.
#   x_ref  : [1, 2, nMaps, M, N]      (compute dtype, resident per batch)
#   s_ref  : [1, 1, 2, nMaps, M, N]   (compute dtype, streamed per coil)
#   ym_ref : [1, 1, 2, M, N]          (f32, premasked y, streamed per coil)
#   msq_ref: [1, M, N]                (f32, mask**2, resident per batch)
#   fm_ref : [4, M, M], fn_ref : [4, N, N]  (compute dtype, resident)
#   o_ref  : [1, 1, 2, nMaps, M, N]   (f32, accumulator across the coil axis)
# ----------------------------------------------------------------------------
def _data_cell_kernel(x_ref, s_ref, ym_ref, msq_ref, fm_ref, fn_ref, o_ref,
                      *, n_maps, use_stacked):
    f32 = jnp.float32
    cdt = fm_ref.dtype
    c = pl.program_id(2)                         # coil axis (reduction)

    @pl.when(c == 0)
    def _init():                                 # output block is the accumulator
        o_ref[...] = jnp.zeros_like(o_ref)

    msq = msq_ref[0]                             # [M, N]  mask**2
    ymr = ym_ref[0, 0, 0]                        # [M, N]  mask * y
    ymi = ym_ref[0, 0, 1]

    # ---- forward soft-SENSE map combine:  C = sum_m x_m * s_{c,m}
    #      (per-map slices; no full-plane [nMaps,M,N] f32 temporaries)
    cr = ci = None
    for m in range(n_maps):
        xr = x_ref[0, 0, m].astype(f32)
        xi = x_ref[0, 1, m].astype(f32)
        sr = s_ref[0, 0, 0, m].astype(f32)
        si = s_ref[0, 0, 1, m].astype(f32)
        pr = xr * sr - xi * si
        pi = xr * si + xi * sr
        cr = pr if cr is None else cr + pr
        ci = pi if ci is None else ci + pi

    # ---- K = F_M @ C @ F_N   (ortho 2-D DFT, no shift) on the MXU
    tr, ti = _cmul_left(fm_ref, cr.astype(cdt), ci.astype(cdt),
                        conj=False, stacked=use_stacked)
    kr, ki = _cmul_right(tr.astype(cdt), ti.astype(cdt), fn_ref,
                         conj=False, stacked=use_stacked)

    # ---- masked residual fed to the adjoint:
    #      mask * (mask*K - y) == mask^2 * K - mask*y   (exact for any mask)
    mdr = msq * kr - ymr
    mdi = msq * ki - ymi

    # ---- I = conj(F_M) @ D @ conj(F_N)   (ortho 2-D iDFT)
    tr, ti = _cmul_left(fm_ref, mdr.astype(cdt), mdi.astype(cdt),
                        conj=True, stacked=use_stacked)
    ir, ii = _cmul_right(tr.astype(cdt), ti.astype(cdt), fn_ref,
                         conj=True, stacked=use_stacked)

    # ---- adjoint coil combine: accumulate I * conj(s_{c,m}) into the output
    for m in range(n_maps):
        sr = s_ref[0, 0, 0, m].astype(f32)
        si = s_ref[0, 0, 1, m].astype(f32)
        o_ref[0, 0, 0, m] += ir * sr + ii * si
        o_ref[0, 0, 1, m] += ii * sr - ir * si


# ----------------------------------------------------------------------------
# Static-input preparation (reusable across CG / prox iterations).
# ----------------------------------------------------------------------------
def _ortho_dft_pack(n, dtype):
    k = np.arange(n)
    w = np.exp(-2j * np.pi * np.outer(k, k) / n) / np.sqrt(n)
    fr = w.real.astype(np.float32)
    fi = w.imag.astype(np.float32)
    return jnp.asarray(np.stack([fr, fi, fr + fi, fr - fi]), dtype)   # [4, n, n]


def prepare_static_inputs(y, smaps, mask, compute_dtype=jnp.bfloat16,
                          use_stacked=None):
    """Pack re/im, premask y, build DFT matrices once (per acquisition)."""
    B, n_coils, n_maps, M, N, _ = smaps.shape
    mk = mask[:, 0, :, :, 0].astype(jnp.float32)                      # [B, M, N]
    if use_stacked is None:
        # Below the native MXU tile, two wide pushes beat the 3-mult Gauss form.
        use_stacked = min(M, N) < 256
    return dict(
        compute_dtype=compute_dtype, use_stacked=bool(use_stacked),
        n_coils=n_coils, n_maps=n_maps, M=M, N=N,
        s_pk=jnp.moveaxis(smaps, -1, 2).astype(compute_dtype),        # [B,C,2,maps,M,N]
        ym_pk=(mk[:, None, None] * jnp.moveaxis(y, -1, 2)
               ).astype(jnp.float32),                                 # [B,C,2,M,N]
        msq=(mk * mk),                                                # [B,M,N]
        fm_pk=_ortho_dft_pack(M, compute_dtype),
        fn_pk=_ortho_dft_pack(N, compute_dtype),
    )


def _vmem_limit_bytes(n_maps, M, N, compute_dtype):
    cb = jnp.dtype(compute_dtype).itemsize
    est = (2 * 2 * n_maps * M * N * cb         # x planes (<= 2 buffers)
           + 2 * 2 * n_maps * M * N * cb       # per-coil smaps, double-buffered
           + 2 * 2 * M * N * 4                 # premasked y, double-buffered
           + 2 * M * N * 4                     # mask^2
           + 2 * 4 * (M * M + N * N) * cb      # DFT packs
           + 2 * 2 * n_maps * M * N * 4        # resident output accumulator blocks
           + 16 * M * N * 4)                   # in-kernel f32 temporaries
    try:
        cap = pltpu.get_tpu_info().vmem_capacity_bytes
    except Exception:
        cap = 64 << 20                         # conservative (v7x) fallback
    cap_limit = min(cap - (8 << 20), 100 << 20)
    return int(max(32 << 20, min(int(1.15 * est) + (4 << 20), cap_limit)))


# ----------------------------------------------------------------------------
# pallas_call wrapper.
# ----------------------------------------------------------------------------
def data_cell_mri_grad(x, prep):
    cdt = prep["compute_dtype"]
    n_coils, n_maps = prep["n_coils"], prep["n_maps"]
    M, N = prep["M"], prep["N"]
    B = x.shape[0]

    x_pk = jnp.moveaxis(x, -1, 1).astype(cdt)                         # [B,2,maps,M,N]

    # v7x 2-TC fallback: when B == 1 split the coil reduction into 2 parallel
    # slabs so both cores work; partial slabs are summed in the wrapper.
    n_splits = 2 if (B == 1 and n_coils % 2 == 0) else 1
    cps = n_coils // n_splits

    kernel = functools.partial(_data_cell_kernel, n_maps=n_maps,
                               use_stacked=prep["use_stacked"])
    vmem_limit = _vmem_limit_bytes(n_maps, M, N, cdt)

    def build_and_run(single_buffer):
        def inv_spec(shape, imap):
            # Grid-invariant blocks: single-buffer to save VMEM.
            if single_buffer:
                return pl.BlockSpec(shape, imap, pipeline_mode=pl.Buffered(1))
            return pl.BlockSpec(shape, imap)

        spec_x = inv_spec((1, 2, n_maps, M, N), lambda b, g, c: (b, 0, 0, 0, 0))
        spec_s = pl.BlockSpec((1, 1, 2, n_maps, M, N),
                              lambda b, g, c: (b, g * cps + c, 0, 0, 0, 0))
        spec_y = pl.BlockSpec((1, 1, 2, M, N),
                              lambda b, g, c: (b, g * cps + c, 0, 0, 0))
        spec_m = inv_spec((1, M, N), lambda b, g, c: (b, 0, 0))
        spec_fm = inv_spec((4, M, M), lambda b, g, c: (0, 0, 0))
        spec_fn = inv_spec((4, N, N), lambda b, g, c: (0, 0, 0))
        spec_o = pl.BlockSpec((1, 1, 2, n_maps, M, N),
                              lambda b, g, c: (g, b, 0, 0, 0, 0))

        return pl.pallas_call(
            kernel,
            out_shape=jax.ShapeDtypeStruct((n_splits, B, 2, n_maps, M, N),
                                           jnp.float32),
            grid_spec=pltpu.PrefetchScalarGridSpec(
                num_scalar_prefetch=0,
                grid=(B, n_splits, cps),        # coil = trailing reduction axis
                in_specs=[spec_x, spec_s, spec_y, spec_m, spec_fm, spec_fn],
                out_specs=spec_o),
            compiler_params=pltpu.CompilerParams(
                dimension_semantics=("parallel", "parallel", "arbitrary"),
                vmem_limit_bytes=vmem_limit),
        )(x_pk, prep["s_pk"], prep["ym_pk"], prep["msq"],
          prep["fm_pk"], prep["fn_pk"])

    try:
        out = build_and_run(True)
    except Exception:
        # pipeline_mode=pl.Buffered(1) unsupported on this JAX -> default buffering.
        out = build_and_run(False)

    out = out.sum(axis=0) if n_splits > 1 else out[0]                 # [B,2,maps,M,N]
    return jnp.moveaxis(out, 1, -1)                                   # [B,maps,M,N,2]


def data_cell_mri_forward(x, y, smaps, mask, compute_dtype=jnp.bfloat16):
    """One-shot wrapper; iterative use (CG/prox) should reuse the prep dict."""
    return data_cell_mri_grad(
        x, prepare_static_inputs(y, smaps, mask, compute_dtype))


# ----------------------------------------------------------------------------
# Pure-JAX reference (complex dtype + jnp.fft).
# ----------------------------------------------------------------------------
def reference_forward(x, y, smaps, mask):
    xc = x[..., 0] + 1j * x[..., 1]                      # [B, maps, M, N]
    sc = smaps[..., 0] + 1j * smaps[..., 1]              # [B, C, maps, M, N]
    yc = y[..., 0] + 1j * y[..., 1]                      # [B, C, M, N]
    mk = mask[..., 0]                                    # [B, 1, M, N]
    k = jnp.fft.fft2(xc[:, None] * sc, norm="ortho").sum(axis=2)
    diff = k * mk - yc
    im = jnp.fft.ifft2(diff * mk, norm="ortho")
    nabla = (im[:, :, None] * jnp.conj(sc)).sum(axis=1)  # [B, maps, M, N]
    return jnp.stack([jnp.real(nabla), jnp.imag(nabla)], axis=-1)


if __name__ == "__main__":
    B, n_coils, n_maps, M, N = 2, 4, 2, 16, 16

    key = jax.random.PRNGKey(0)
    kx, ky, ks, km = jax.random.split(key, 4)

    x = jax.random.normal(kx, (B, n_maps, M, N, 2), dtype=jnp.float32)
    y = jax.random.normal(ky, (B, n_coils, M, N, 2), dtype=jnp.float32)
    smaps = jax.random.normal(ks, (B, n_coils, n_maps, M, N, 2),
                              dtype=jnp.float32) * 0.5
    # Cartesian undersampling: random phase-encode lines, broadcast over M.
    lines = (jax.random.uniform(km, (B, 1, 1, N, 1)) < 0.5).astype(jnp.float32)
    mask = jnp.broadcast_to(lines, (B, 1, M, N, 1))

    ref = jax.block_until_ready(reference_forward(x, y, smaps, mask))

    # float32 compute path (strict check).
    out = jax.block_until_ready(
        data_cell_mri_forward(x, y, smaps, mask, compute_dtype=jnp.float32))
    np.testing.assert_allclose(np.asarray(out), np.asarray(ref),
                               rtol=1e-3, atol=1e-3)

    # default bfloat16 streamed-operand path (f32 MXU accumulation).
    out_bf = jax.block_until_ready(data_cell_mri_forward(x, y, smaps, mask))
    rel_err = (np.linalg.norm(np.asarray(out_bf) - np.asarray(ref))
               / np.linalg.norm(np.asarray(ref)))
    assert rel_err < 2e-2, f"bf16 path relative L2 error too large: {rel_err}"

    # B == 1 path: coil reduction split into 2 parallel slabs (v7x fallback).
    ref1 = jax.block_until_ready(
        reference_forward(x[:1], y[:1], smaps[:1], mask[:1]))
    out1 = jax.block_until_ready(
        data_cell_mri_forward(x[:1], y[:1], smaps[:1], mask[:1],
                              compute_dtype=jnp.float32))
    np.testing.assert_allclose(np.asarray(out1), np.asarray(ref1),
                               rtol=1e-3, atol=1e-3)

    print("KERNEL_OK")
</pallas_src>

<mosaic_0001>
module attributes {stable_mosaic.version = 11 : i64} {
  func.func @_data_cell_kernel(%arg0: i32, %arg1: i32, %arg2: i32, %arg3: memref<1x2x2x16x16xf32, #tpu.memory_space<vmem>>, %arg4: memref<1x1x2x2x16x16xf32, #tpu.memory_space<vmem>>, %arg5: memref<1x1x2x16x16xf32, #tpu.memory_space<vmem>>, %arg6: memref<1x16x16xf32, #tpu.memory_space<vmem>>, %arg7: memref<4x16x16xf32, #tpu.memory_space<vmem>>, %arg8: memref<4x16x16xf32, #tpu.memory_space<vmem>>, %arg9: memref<1x1x2x2x16x16xf32, #tpu.memory_space<vmem>>) attributes {dimension_semantics = [#tpu.dimension_semantics<parallel>, #tpu.dimension_semantics<parallel>, #tpu.dimension_semantics<arbitrary>], iteration_bounds = array<i64: 2, 1, 4>, scalar_prefetch = 0 : i64, scratch_operands = 0 : i64, tpu.core_type = #tpu.core_type<tc>, window_params = [{pipeline_mode = #tpu.pipeline_mode<synchronous>, transform_indices = @transform_0, window_bounds = array<i64: 1, 2, 2, 16, 16>}, {transform_indices = @transform_1, window_bounds = array<i64: 1, 1, 2, 2, 16, 16>}, {transform_indices = @transform_2, window_bounds = array<i64: 1, 1, 2, 16, 16>}, {pipeline_mode = #tpu.pipeline_mode<synchronous>, transform_indices = @transform_3, window_bounds = array<i64: 1, 16, 16>}, {pipeline_mode = #tpu.pipeline_mode<synchronous>, transform_indices = @transform_4, window_bounds = array<i64: 4, 16, 16>}, {pipeline_mode = #tpu.pipeline_mode<synchronous>, transform_indices = @transform_5, window_bounds = array<i64: 4, 16, 16>}, {transform_indices = @transform_6, window_bounds = array<i64: 1, 1, 2, 2, 16, 16>}]} {
    %c0_i32 = arith.constant 0 : i32
    %0 = arith.cmpi eq, %arg2, %c0_i32 : i32
    %1 = arith.extui %0 : i1 to i32
    %c0_i32_0 = arith.constant 0 : i32
    %2 = arith.cmpi ne, %1, %c0_i32_0 : i32
    scf.if %2 {
      %cst_159 = arith.constant 0.000000e+00 : f32
      %139 = vector.broadcast %cst_159 : f32 to vector<1x1x2x2x16x16xf32>
      %c0_160 = arith.constant 0 : index
      %c0_161 = arith.constant 0 : index
      %c0_162 = arith.constant 0 : index
      %c0_163 = arith.constant 0 : index
      %c0_164 = arith.constant 0 : index
      %c0_165 = arith.constant 0 : index
      %140 = vector.load %arg9[%c0_160, %c0_161, %c0_162, %c0_163, %c0_164, %c0_165] : memref<1x1x2x2x16x16xf32, #tpu.memory_space<vmem>>, vector<1x1x2x2x16x16xf32>
      tpu.vector_store %arg9[%c0_160, %c0_161, %c0_162, %c0_163, %c0_164, %c0_165], %139 {strides = array<i32>} : memref<1x1x2x2x16x16xf32, #tpu.memory_space<vmem>>, vector<1x1x2x2x16x16xf32>,
    } else {
    }
    %c0 = arith.constant 0 : index
    %c0_1 = arith.constant 0 : index
    %c0_2 = arith.constant 0 : index
    %3 = vector.load %arg6[%c0, %c0_1, %c0_2] : memref<1x16x16xf32, #tpu.memory_space<vmem>>, vector<1x16x16xf32>
    %4 = vector.shape_cast %3 : vector<1x16x16xf32> to vector<16x16xf32>
    %c0_3 = arith.constant 0 : index
    %c0_4 = arith.constant 0 : index
    %c0_5 = arith.constant 0 : index
    %c0_6 = arith.constant 0 : index
    %c0_7 = arith.constant 0 : index
    %5 = vector.load %arg5[%c0_3, %c0_4, %c0_5, %c0_6, %c0_7] : memref<1x1x2x16x16xf32, #tpu.memory_space<vmem>>, vector<1x1x1x16x16xf32>
    %6 = vector.shape_cast %5 : vector<1x1x1x16x16xf32> to vector<16x16xf32>
    %c0_8 = arith.constant 0 : index
    %c0_9 = arith.constant 0 : index
    %c1 = arith.constant 1 : index
    %c0_10 = arith.constant 0 : index
    %c0_11 = arith.constant 0 : index
    %7 = vector.load %arg5[%c0_8, %c0_9, %c1, %c0_10, %c0_11] : memref<1x1x2x16x16xf32, #tpu.memory_space<vmem>>, vector<1x1x1x16x16xf32>
    %8 = vector.shape_cast %7 : vector<1x1x1x16x16xf32> to vector<16x16xf32>
    %c0_12 = arith.constant 0 : index
    %c0_13 = arith.constant 0 : index
    %c0_14 = arith.constant 0 : index
    %c0_15 = arith.constant 0 : index
    %c0_16 = arith.constant 0 : index
    %9 = vector.load %arg3[%c0_12, %c0_13, %c0_14, %c0_15, %c0_16] : memref<1x2x2x16x16xf32, #tpu.memory_space<vmem>>, vector<1x1x1x16x16xf32>
    %10 = vector.shape_cast %9 : vector<1x1x1x16x16xf32> to vector<16x16xf32>
    %c0_17 = arith.constant 0 : index
    %c1_18 = arith.constant 1 : index
    %c0_19 = arith.constant 0 : index
    %c0_20 = arith.constant 0 : index
    %c0_21 = arith.constant 0 : index
    %11 = vector.load %arg3[%c0_17, %c1_18, %c0_19, %c0_20, %c0_21] : memref<1x2x2x16x16xf32, #tpu.memory_space<vmem>>, vector<1x1x1x16x16xf32>
    %12 = vector.shape_cast %11 : vector<1x1x1x16x16xf32> to vector<16x16xf32>
    %c0_22 = arith.constant 0 : index
    %c0_23 = arith.constant 0 : index
    %c0_24 = arith.constant 0 : index
    %c0_25 = arith.constant 0 : index
    %c0_26 = arith.constant 0 : index
    %c0_27 = arith.constant 0 : index
    %13 = vector.load %arg4[%c0_22, %c0_23, %c0_24, %c0_25, %c0_26, %c0_27] : memref<1x1x2x2x16x16xf32, #tpu.memory_space<vmem>>, vector<1x1x1x1x16x16xf32>
    %14 = vector.shape_cast %13 : vector<1x1x1x1x16x16xf32> to vector<16x16xf32>
    %c0_28 = arith.constant 0 : index
    %c0_29 = arith.constant 0 : index
    %c1_30 = arith.constant 1 : index
    %c0_31 = arith.constant 0 : index
    %c0_32 = arith.constant 0 : index
    %c0_33 = arith.constant 0 : index
    %15 = vector.load %arg4[%c0_28, %c0_29, %c1_30, %c0_31, %c0_32, %c0_33] : memref<1x1x2x2x16x16xf32, #tpu.memory_space<vmem>>, vector<1x1x1x1x16x16xf32>
    %16 = vector.shape_cast %15 : vector<1x1x1x1x16x16xf32> to vector<16x16xf32>
    %17 = arith.mulf %10, %14 : vector<16x16xf32>
    %18 = arith.mulf %12, %16 : vector<16x16xf32>
    %19 = arith.subf %17, %18 : vector<16x16xf32>
    %20 = arith.mulf %10, %16 : vector<16x16xf32>
    %21 = arith.mulf %12, %14 : vector<16x16xf32>
    %22 = arith.addf %20, %21 : vector<16x16xf32>
    %c0_34 = arith.constant 0 : index
    %c0_35 = arith.constant 0 : index
    %c1_36 = arith.constant 1 : index
    %c0_37 = arith.constant 0 : index
    %c0_38 = arith.constant 0 : index
    %23 = vector.load %arg3[%c0_34, %c0_35, %c1_36, %c0_37, %c0_38] : memref<1x2x2x16x16xf32, #tpu.memory_space<vmem>>, vector<1x1x1x16x16xf32>
    %24 = vector.shape_cast %23 : vector<1x1x1x16x16xf32> to vector<16x16xf32>
    %c0_39 = arith.constant 0 : index
    %c1_40 = arith.constant 1 : index
    %c1_41 = arith.constant 1 : index
    %c0_42 = arith.constant 0 : index
    %c0_43 = arith.constant 0 : index
    %25 = vector.load %arg3[%c0_39, %c1_40, %c1_41, %c0_42, %c0_43] : memref<1x2x2x16x16xf32, #tpu.memory_space<vmem>>, vector<1x1x1x16x16xf32>
    %26 = vector.shape_cast %25 : vector<1x1x1x16x16xf32> to vector<16x16xf32>
    %c0_44 = arith.constant 0 : index
    %c0_45 = arith.constant 0 : index
    %c0_46 = arith.constant 0 : index
    %c1_47 = arith.constant 1 : index
    %c0_48 = arith.constant 0 : index
    %c0_49 = arith.constant 0 : index
    %27 = vector.load %arg4[%c0_44, %c0_45, %c0_46, %c1_47, %c0_48, %c0_49] : memref<1x1x2x2x16x16xf32, #tpu.memory_space<vmem>>, vector<1x1x1x1x16x16xf32>
    %28 = vector.shape_cast %27 : vector<1x1x1x1x16x16xf32> to vector<16x16xf32>
    %c0_50 = arith.constant 0 : index
    %c0_51 = arith.constant 0 : index
    %c1_52 = arith.constant 1 : index
    %c1_53 = arith.constant 1 : index
    %c0_54 = arith.constant 0 : index
    %c0_55 = arith.constant 0 : index
    %29 = vector.load %arg4[%c0_50, %c0_51, %c1_52, %c1_53, %c0_54, %c0_55] : memref<1x1x2x2x16x16xf32, #tpu.memory_space<vmem>>, vector<1x1x1x1x16x16xf32>
    %30 = vector.shape_cast %29 : vector<1x1x1x1x16x16xf32> to vector<16x16xf32>
    %31 = arith.mulf %24, %28 : vector<16x16xf32>
    %32 = arith.mulf %26, %30 : vector<16x16xf32>
    %33 = arith.subf %31, %32 : vector<16x16xf32>
    %34 = arith.mulf %24, %30 : vector<16x16xf32>
    %35 = arith.mulf %26, %28 : vector<16x16xf32>
    %36 = arith.addf %34, %35 : vector<16x16xf32>
    %37 = arith.addf %19, %33 : vector<16x16xf32>
    %38 = arith.addf %22, %36 : vector<16x16xf32>
    %c0_56 = arith.constant 0 : index
    %c0_57 = arith.constant 0 : index
    %c0_58 = arith.constant 0 : index
    %39 = vector.load %arg7[%c0_56, %c0_57, %c0_58] : memref<4x16x16xf32, #tpu.memory_space<vmem>>, vector<1x16x16xf32>
    %40 = vector.shape_cast %39 : vector<1x16x16xf32> to vector<16x16xf32>
    %c1_59 = arith.constant 1 : index
    %c0_60 = arith.constant 0 : index
    %c0_61 = arith.constant 0 : index
    %41 = vector.load %arg7[%c1_59, %c0_60, %c0_61] : memref<4x16x16xf32, #tpu.memory_space<vmem>>, vector<1x16x16xf32>
    %42 = vector.shape_cast %41 : vector<1x16x16xf32> to vector<16x16xf32>
    %43 = tpu.concatenate %37, %38 in 1 : vector<16x16xf32>, vector<16x16xf32> -> vector<16x32xf32>
    %cst = arith.constant dense<0.000000e+00> : vector<16x32xf32>
    %44 = tpu.matmul %40, %43, %cst {dimension_numbers = #tpu.dot_dimension_numbers<[1], [0], [0], [1], [0, 0, 1, 1], [], []>} : vector<16x16xf32>, vector<16x32xf32>, vector<16x32xf32> -> vector<16x32xf32>
    %cst_62 = arith.constant dense<0.000000e+00> : vector<16x32xf32>
    %45 = tpu.matmul %42, %43, %cst_62 {dimension_numbers = #tpu.dot_dimension_numbers<[1], [0], [0], [1], [0, 0, 1, 1], [], []>} : vector<16x16xf32>, vector<16x32xf32>, vector<16x32xf32> -> vector<16x32xf32>
    %46 = vector.extract_strided_slice %44 {offsets = [0, 0], sizes = [16, 16], strides = [1, 1]} : vector<16x32xf32> to vector<16x16xf32>
    %47 = vector.extract_strided_slice %45 {offsets = [0, 16], sizes = [16, 16], strides = [1, 1]} : vector<16x32xf32> to vector<16x16xf32>
    %48 = arith.subf %46, %47 : vector<16x16xf32>
    %49 = vector.extract_strided_slice %44 {offsets = [0, 16], sizes = [16, 16], strides = [1, 1]} : vector<16x32xf32> to vector<16x16xf32>
    %50 = vector.extract_strided_slice %45 {offsets = [0, 0], sizes = [16, 16], strides = [1, 1]} : vector<16x32xf32> to vector<16x16xf32>
    %51 = arith.addf %49, %50 : vector<16x16xf32>
    %c0_63 = arith.constant 0 : index
    %c0_64 = arith.constant 0 : index
    %c0_65 = arith.constant 0 : index
    %52 = vector.load %arg8[%c0_63, %c0_64, %c0_65] : memref<4x16x16xf32, #tpu.memory_space<vmem>>, vector<1x16x16xf32>
    %53 = vector.shape_cast %52 : vector<1x16x16xf32> to vector<16x16xf32>
    %c1_66 = arith.constant 1 : index
    %c0_67 = arith.constant 0 : index
    %c0_68 = arith.constant 0 : index
    %54 = vector.load %arg8[%c1_66, %c0_67, %c0_68] : memref<4x16x16xf32, #tpu.memory_space<vmem>>, vector<1x16x16xf32>
    %55 = vector.shape_cast %54 : vector<1x16x16xf32> to vector<16x16xf32>
    %56 = tpu.concatenate %48, %51 in 0 : vector<16x16xf32>, vector<16x16xf32> -> vector<32x16xf32>
    %cst_69 = arith.constant dense<0.000000e+00> : vector<32x16xf32>
    %57 = tpu.matmul %56, %53, %cst_69 {dimension_numbers = #tpu.dot_dimension_numbers<[1], [0], [0], [1], [0, 0, 1, 1], [], []>} : vector<32x16xf32>, vector<16x16xf32>, vector<32x16xf32> -> vector<32x16xf32>
    %cst_70 = arith.constant dense<0.000000e+00> : vector<32x16xf32>
    %58 = tpu.matmul %56, %55, %cst_70 {dimension_numbers = #tpu.dot_dimension_numbers<[1], [0], [0], [1], [0, 0, 1, 1], [], []>} : vector<32x16xf32>, vector<16x16xf32>, vector<32x16xf32> -> vector<32x16xf32>
    %59 = vector.extract_strided_slice %57 {offsets = [0, 0], sizes = [16, 16], strides = [1, 1]} : vector<32x16xf32> to vector<16x16xf32>
    %60 = vector.extract_strided_slice %58 {offsets = [16, 0], sizes = [16, 16], strides = [1, 1]} : vector<32x16xf32> to vector<16x16xf32>
    %61 = arith.subf %59, %60 : vector<16x16xf32>
    %62 = vector.extract_strided_slice %57 {offsets = [16, 0], sizes = [16, 16], strides = [1, 1]} : vector<32x16xf32> to vector<16x16xf32>
    %63 = vector.extract_strided_slice %58 {offsets = [0, 0], sizes = [16, 16], strides = [1, 1]} : vector<32x16xf32> to vector<16x16xf32>
    %64 = arith.addf %62, %63 : vector<16x16xf32>
    %65 = arith.mulf %4, %61 : vector<16x16xf32>
    %66 = arith.subf %65, %6 : vector<16x16xf32>
    %67 = arith.mulf %4, %64 : vector<16x16xf32>
    %68 = arith.subf %67, %8 : vector<16x16xf32>
    %c0_71 = arith.constant 0 : index
    %c0_72 = arith.constant 0 : index
    %c0_73 = arith.constant 0 : index
    %69 = vector.load %arg7[%c0_71, %c0_72, %c0_73] : memref<4x16x16xf32, #tpu.memory_space<vmem>>, vector<1x16x16xf32>
    %70 = vector.shape_cast %69 : vector<1x16x16xf32> to vector<16x16xf32>
    %c1_74 = arith.constant 1 : index
    %c0_75 = arith.constant 0 : index
    %c0_76 = arith.constant 0 : index
    %71 = vector.load %arg7[%c1_74, %c0_75, %c0_76] : memref<4x16x16xf32, #tpu.memory_space<vmem>>, vector<1x16x16xf32>
    %72 = vector.shape_cast %71 : vector<1x16x16xf32> to vector<16x16xf32>
    %73 = tpu.concatenate %66, %68 in 1 : vector<16x16xf32>, vector<16x16xf32> -> vector<16x32xf32>
    %cst_77 = arith.constant dense<0.000000e+00> : vector<16x32xf32>
    %74 = tpu.matmul %70, %73, %cst_77 {dimension_numbers = #tpu.dot_dimension_numbers<[1], [0], [0], [1], [0, 0, 1, 1], [], []>} : vector<16x16xf32>, vector<16x32xf32>, vector<16x32xf32> -> vector<16x32xf32>
    %cst_78 = arith.constant dense<0.000000e+00> : vector<16x32xf32>
    %75 = tpu.matmul %72, %73, %cst_78 {dimension_numbers = #tpu.dot_dimension_numbers<[1], [0], [0], [1], [0, 0, 1, 1], [], []>} : vector<16x16xf32>, vector<16x32xf32>, vector<16x32xf32> -> vector<16x32xf32>
    %76 = vector.extract_strided_slice %74 {offsets = [0, 0], sizes = [16, 16], strides = [1, 1]} : vector<16x32xf32> to vector<16x16xf32>
    %77 = vector.extract_strided_slice %75 {offsets = [0, 16], sizes = [16, 16], strides = [1, 1]} : vector<16x32xf32> to vector<16x16xf32>
    %78 = arith.addf %76, %77 : vector<16x16xf32>
    %79 = vector.extract_strided_slice %74 {offsets = [0, 16], sizes = [16, 16], strides = [1, 1]} : vector<16x32xf32> to vector<16x16xf32>
    %80 = vector.extract_strided_slice %75 {offsets = [0, 0], sizes = [16, 16], strides = [1, 1]} : vector<16x32xf32> to vector<16x16xf32>
    %81 = arith.subf %79, %80 : vector<16x16xf32>
    %c0_79 = arith.constant 0 : index
    %c0_80 = arith.constant 0 : index
    %c0_81 = arith.constant 0 : index
    %82 = vector.load %arg8[%c0_79, %c0_80, %c0_81] : memref<4x16x16xf32, #tpu.memory_space<vmem>>, vector<1x16x16xf32>
    %83 = vector.shape_cast %82 : vector<1x16x16xf32> to vector<16x16xf32>
    %c1_82 = arith.constant 1 : index
    %c0_83 = arith.constant 0 : index
    %c0_84 = arith.constant 0 : index
    %84 = vector.load %arg8[%c1_82, %c0_83, %c0_84] : memref<4x16x16xf32, #tpu.memory_space<vmem>>, vector<1x16x16xf32>
    %85 = vector.shape_cast %84 : vector<1x16x16xf32> to vector<16x16xf32>
    %86 = tpu.concatenate %78, %81 in 0 : vector<16x16xf32>, vector<16x16xf32> -> vector<32x16xf32>
    %cst_85 = arith.constant dense<0.000000e+00> : vector<32x16xf32>
    %87 = tpu.matmul %86, %83, %cst_85 {dimension_numbers = #tpu.dot_dimension_numbers<[1], [0], [0], [1], [0, 0, 1, 1], [], []>} : vector<32x16xf32>, vector<16x16xf32>, vector<32x16xf32> -> vector<32x16xf32>
    %cst_86 = arith.constant dense<0.000000e+00> : vector<32x16xf32>
    %88 = tpu.matmul %86, %85, %cst_86 {dimension_numbers = #tpu.dot_dimension_numbers<[1], [0], [0], [1], [0, 0, 1, 1], [], []>} : vector<32x16xf32>, vector<16x16xf32>, vector<32x16xf32> -> vector<32x16xf32>
    %89 = vector.extract_strided_slice %87 {offsets = [0, 0], sizes = [16, 16], strides = [1, 1]} : vector<32x16xf32> to vector<16x16xf32>
    %90 = vector.extract_strided_slice %88 {offsets = [16, 0], sizes = [16, 16], strides = [1, 1]} : vector<32x16xf32> to vector<16x16xf32>
    %91 = arith.addf %89, %90 : vector<16x16xf32>
    %92 = vector.extract_strided_slice %87 {offsets = [16, 0], sizes = [16, 16], strides = [1, 1]} : vector<32x16xf32> to vector<16x16xf32>
    %93 = vector.extract_strided_slice %88 {offsets = [0, 0], sizes = [16, 16], strides = [1, 1]} : vector<32x16xf32> to vector<16x16xf32>
    %94 = arith.subf %92, %93 : vector<16x16xf32>
    %c0_87 = arith.constant 0 : index
    %c0_88 = arith.constant 0 : index
    %c0_89 = arith.constant 0 : index
    %c0_90 = arith.constant 0 : index
    %c0_91 = arith.constant 0 : index
    %c0_92 = arith.constant 0 : index
    %95 = vector.load %arg4[%c0_87, %c0_88, %c0_89, %c0_90, %c0_91, %c0_92] : memref<1x1x2x2x16x16xf32, #tpu.memory_space<vmem>>, vector<1x1x1x1x16x16xf32>
    %96 = vector.shape_cast %95 : vector<1x1x1x1x16x16xf32> to vector<16x16xf32>
    %c0_93 = arith.constant 0 : index
    %c0_94 = arith.constant 0 : index
    %c1_95 = arith.constant 1 : index
    %c0_96 = arith.constant 0 : index
    %c0_97 = arith.constant 0 : index
    %c0_98 = arith.constant 0 : index
    %97 = vector.load %arg4[%c0_93, %c0_94, %c1_95, %c0_96, %c0_97, %c0_98] : memref<1x1x2x2x16x16xf32, #tpu.memory_space<vmem>>, vector<1x1x1x1x16x16xf32>
    %98 = vector.shape_cast %97 : vector<1x1x1x1x16x16xf32> to vector<16x16xf32>
    %c0_99 = arith.constant 0 : index
    %c0_100 = arith.constant 0 : index
    %c0_101 = arith.constant 0 : index
    %c0_102 = arith.constant 0 : index
    %c0_103 = arith.constant 0 : index
    %c0_104 = arith.constant 0 : index
    %99 = vector.load %arg9[%c0_99, %c0_100, %c0_101, %c0_102, %c0_103, %c0_104] : memref<1x1x2x2x16x16xf32, #tpu.memory_space<vmem>>, vector<1x1x1x1x16x16xf32>
    %100 = vector.shape_cast %99 : vector<1x1x1x1x16x16xf32> to vector<16x16xf32>
    %101 = arith.mulf %91, %96 : vector<16x16xf32>
    %102 = arith.mulf %94, %98 : vector<16x16xf32>
    %103 = arith.addf %101, %102 : vector<16x16xf32>
    %104 = arith.addf %100, %103 : vector<16x16xf32>
    %c0_105 = arith.constant 0 : index
    %c0_106 = arith.constant 0 : index
    %c0_107 = arith.constant 0 : index
    %c0_108 = arith.constant 0 : index
    %c0_109 = arith.constant 0 : index
    %c0_110 = arith.constant 0 : index
    %105 = vector.load %arg9[%c0_105, %c0_106, %c0_107, %c0_108, %c0_109, %c0_110] : memref<1x1x2x2x16x16xf32, #tpu.memory_space<vmem>>, vector<1x1x1x1x16x16xf32>
    %106 = vector.shape_cast %105 : vector<1x1x1x1x16x16xf32> to vector<16x16xf32>
    %107 = vector.shape_cast %104 : vector<16x16xf32> to vector<1x1x1x1x16x16xf32>
    tpu.vector_store %arg9[%c0_105, %c0_106, %c0_107, %c0_108, %c0_109, %c0_110], %107 {strides = array<i32>} : memref<1x1x2x2x16x16xf32, #tpu.memory_space<vmem>>, vector<1x1x1x1x16x16xf32>,
    %c0_111 = arith.constant 0 : index
    %c0_112 = arith.constant 0 : index
    %c1_113 = arith.constant 1 : index
    %c0_114 = arith.constant 0 : index
    %c0_115 = arith.constant 0 : index
    %c0_116 = arith.constant 0 : index
    %108 = vector.load %arg9[%c0_111, %c0_112, %c1_113, %c0_114, %c0_115, %c0_116] : memref<1x1x2x2x16x16xf32, #tpu.memory_space<vmem>>, vector<1x1x1x1x16x16xf32>
    %109 = vector.shape_cast %108 : vector<1x1x1x1x16x16xf32> to vector<16x16xf32>
    %110 = arith.mulf %94, %96 : vector<16x16xf32>
    %111 = arith.mulf %91, %98 : vector<16x16xf32>
    %112 = arith.subf %110, %111 : vector<16x16xf32>
    %113 = arith.addf %109, %112 : vector<16x16xf32>
    %c0_117 = arith.constant 0 : index
    %c0_118 = arith.constant 0 : index
    %c1_119 = arith.constant 1 : index
    %c0_120 = arith.constant 0 : index
    %c0_121 = arith.constant 0 : index
    %c0_122 = arith.constant 0 : index
    %114 = vector.load %arg9[%c0_117, %c0_118, %c1_119, %c0_120, %c0_121, %c0_122] : memref<1x1x2x2x16x16xf32, #tpu.memory_space<vmem>>, vector<1x1x1x1x16x16xf32>
    %115 = vector.shape_cast %114 : vector<1x1x1x1x16x16xf32> to vector<16x16xf32>
    %116 = vector.shape_cast %113 : vector<16x16xf32> to vector<1x1x1x1x16x16xf32>
    tpu.vector_store %arg9[%c0_117, %c0_118, %c1_119, %c0_120, %c0_121, %c0_122], %116 {strides = array<i32>} : memref<1x1x2x2x16x16xf32, #tpu.memory_space<vmem>>, vector<1x1x1x1x16x16xf32>,
    %c0_123 = arith.constant 0 : index
    %c0_124 = arith.constant 0 : index
    %c0_125 = arith.constant 0 : index
    %c1_126 = arith.constant 1 : index
    %c0_127 = arith.constant 0 : index
    %c0_128 = arith.constant 0 : index
    %117 = vector.load %arg4[%c0_123, %c0_124, %c0_125, %c1_126, %c0_127, %c0_128] : memref<1x1x2x2x16x16xf32, #tpu.memory_space<vmem>>, vector<1x1x1x1x16x16xf32>
    %118 = vector.shape_cast %117 : vector<1x1x1x1x16x16xf32> to vector<16x16xf32>
    %c0_129 = arith.constant 0 : index
    %c0_130 = arith.constant 0 : index
    %c1_131 = arith.constant 1 : index
    %c1_132 = arith.constant 1 : index
    %c0_133 = arith.constant 0 : index
    %c0_134 = arith.constant 0 : index
    %119 = vector.load %arg4[%c0_129, %c0_130, %c1_131, %c1_132, %c0_133, %c0_134] : memref<1x1x2x2x16x16xf32, #tpu.memory_space<vmem>>, vector<1x1x1x1x16x16xf32>
    %120 = vector.shape_cast %119 : vector<1x1x1x1x16x16xf32> to vector<16x16xf32>
    %c0_135 = arith.constant 0 : index
    %c0_136 = arith.constant 0 : index
    %c0_137 = arith.constant 0 : index
    %c1_138 = arith.constant 1 : index
    %c0_139 = arith.constant 0 : index
    %c0_140 = arith.constant 0 : index
    %121 = vector.load %arg9[%c0_135, %c0_136, %c0_137, %c1_138, %c0_139, %c0_140] : memref<1x1x2x2x16x16xf32, #tpu.memory_space<vmem>>, vector<1x1x1x1x16x16xf32>
    %122 = vector.shape_cast %121 : vector<1x1x1x1x16x16xf32> to vector<16x16xf32>
    %123 = arith.mulf %91, %118 : vector<16x16xf32>
    %124 = arith.mulf %94, %120 : vector<16x16xf32>
    %125 = arith.addf %123, %124 : vector<16x16xf32>
    %126 = arith.addf %122, %125 : vector<16x16xf32>
    %c0_141 = arith.constant 0 : index
    %c0_142 = arith.constant 0 : index
    %c0_143 = arith.constant 0 : index
    %c1_144 = arith.constant 1 : index
    %c0_145 = arith.constant 0 : index
    %c0_146 = arith.constant 0 : index
    %127 = vector.load %arg9[%c0_141, %c0_142, %c0_143, %c1_144, %c0_145, %c0_146] : memref<1x1x2x2x16x16xf32, #tpu.memory_space<vmem>>, vector<1x1x1x1x16x16xf32>
    %128 = vector.shape_cast %127 : vector<1x1x1x1x16x16xf32> to vector<16x16xf32>
    %129 = vector.shape_cast %126 : vector<16x16xf32> to vector<1x1x1x1x16x16xf32>
    tpu.vector_store %arg9[%c0_141, %c0_142, %c0_143, %c1_144, %c0_145, %c0_146], %129 {strides = array<i32>} : memref<1x1x2x2x16x16xf32, #tpu.memory_space<vmem>>, vector<1x1x1x1x16x16xf32>,
    %c0_147 = arith.constant 0 : index
    %c0_148 = arith.constant 0 : index
    %c1_149 = arith.constant 1 : index
    %c1_150 = arith.constant 1 : index
    %c0_151 = arith.constant 0 : index
    %c0_152 = arith.constant 0 : index
    %130 = vector.load %arg9[%c0_147, %c0_148, %c1_149, %c1_150, %c0_151, %c0_152] : memref<1x1x2x2x16x16xf32, #tpu.memory_space<vmem>>, vector<1x1x1x1x16x16xf32>
    %131 = vector.shape_cast %130 : vector<1x1x1x1x16x16xf32> to vector<16x16xf32>
    %132 = arith.mulf %94, %118 : vector<16x16xf32>
    %133 = arith.mulf %91, %120 : vector<16x16xf32>
    %134 = arith.subf %132, %133 : vector<16x16xf32>
    %135 = arith.addf %131, %134 : vector<16x16xf32>
    %c0_153 = arith.constant 0 : index
    %c0_154 = arith.constant 0 : index
    %c1_155 = arith.constant 1 : index
    %c1_156 = arith.constant 1 : index
    %c0_157 = arith.constant 0 : index
    %c0_158 = arith.constant 0 : index
    %136 = vector.load %arg9[%c0_153, %c0_154, %c1_155, %c1_156, %c0_157, %c0_158] : memref<1x1x2x2x16x16xf32, #tpu.memory_space<vmem>>, vector<1x1x1x1x16x16xf32>
    %137 = vector.shape_cast %136 : vector<1x1x1x1x16x16xf32> to vector<16x16xf32>
    %138 = vector.shape_cast %135 : vector<16x16xf32> to vector<1x1x1x1x16x16xf32>
    tpu.vector_store %arg9[%c0_153, %c0_154, %c1_155, %c1_156, %c0_157, %c0_158], %138 {strides = array<i32>} : memref<1x1x2x2x16x16xf32, #tpu.memory_space<vmem>>, vector<1x1x1x1x16x16xf32>,
    return
  }
  func.func @transform_0(%arg0: i32, %arg1: i32, %arg2: i32) -> (i32, i32, i32, i32, i32) {
    %c0_i32 = arith.constant 0 : i32
    %c0_i32_0 = arith.constant 0 : i32
    %c0_i32_1 = arith.constant 0 : i32
    %c0_i32_2 = arith.constant 0 : i32
    %c0_i32_3 = arith.constant 0 : i32
    return %arg0, %c0_i32, %c0_i32_0, %c0_i32_1, %c0_i32_2 : i32, i32, i32, i32, i32
  }
  func.func @transform_1(%arg0: i32, %arg1: i32, %arg2: i32) -> (i32, i32, i32, i32, i32, i32) {
    %c4_i32 = arith.constant 4 : i32
    %0 = arith.muli %arg1, %c4_i32 : i32
    %1 = arith.addi %0, %arg2 : i32
    %c0_i32 = arith.constant 0 : i32
    %c0_i32_0 = arith.constant 0 : i32
    %c0_i32_1 = arith.constant 0 : i32
    %c0_i32_2 = arith.constant 0 : i32
    %c0_i32_3 = arith.constant 0 : i32
    return %arg0, %1, %c0_i32, %c0_i32_0, %c0_i32_1, %c0_i32_2 : i32, i32, i32, i32, i32, i32
  }
  func.func @transform_2(%arg0: i32, %arg1: i32, %arg2: i32) -> (i32, i32, i32, i32, i32) {
    %c4_i32 = arith.constant 4 : i32
    %0 = arith.muli %arg1, %c4_i32 : i32
    %1 = arith.addi %0, %arg2 : i32
    %c0_i32 = arith.constant 0 : i32
    %c0_i32_0 = arith.constant 0 : i32
    %c0_i32_1 = arith.constant 0 : i32
    %c0_i32_2 = arith.constant 0 : i32
    return %arg0, %1, %c0_i32, %c0_i32_0, %c0_i32_1 : i32, i32, i32, i32, i32
  }
  func.func @transform_3(%arg0: i32, %arg1: i32, %arg2: i32) -> (i32, i32, i32) {
    %c0_i32 = arith.constant 0 : i32
    %c0_i32_0 = arith.constant 0 : i32
    %c0_i32_1 = arith.constant 0 : i32
    return %arg0, %c0_i32, %c0_i32_0 : i32, i32, i32
  }
  func.func @transform_4(%arg0: i32, %arg1: i32, %arg2: i32) -> (i32, i32, i32) {
    %c0_i32 = arith.constant 0 : i32
    %c0_i32_0 = arith.constant 0 : i32
    %c0_i32_1 = arith.constant 0 : i32
    %c0_i32_2 = arith.constant 0 : i32
    return %c0_i32, %c0_i32_0, %c0_i32_1 : i32, i32, i32
  }
  func.func @transform_5(%arg0: i32, %arg1: i32, %arg2: i32) -> (i32, i32, i32) {
    %c0_i32 = arith.constant 0 : i32
    %c0_i32_0 = arith.constant 0 : i32
    %c0_i32_1 = arith.constant 0 : i32
    %c0_i32_2 = arith.constant 0 : i32
    return %c0_i32, %c0_i32_0, %c0_i32_1 : i32, i32, i32
  }
  func.func @transform_6(%arg0: i32, %arg1: i32, %arg2: i32) -> (i32, i32, i32, i32, i32, i32) {
    %c0_i32 = arith.constant 0 : i32
    %c0_i32_0 = arith.constant 0 : i32
    %c0_i32_1 = arith.constant 0 : i32
    %c0_i32_2 = arith.constant 0 : i32
    %c0_i32_3 = arith.constant 0 : i32
    return %arg1, %arg0, %c0_i32, %c0_i32_0, %c0_i32_1, %c0_i32_2 : i32, i32, i32, i32, i32, i32
  }
}

module attributes {stable_mosaic.version = 11 : i64} {
  func.func @_data_cell_kernel(%arg0: i32, %arg1: i32, %arg2: i32, %arg3: memref<1x2x2x16x16xf32, #tpu.memory_space<vmem>>, %arg4: memref<1x1x2x2x16x16xf32, #tpu.memory_space<vmem>>, %arg5: memref<1x1x2x16x16xf32, #tpu.memory_space<vmem>>, %arg6: memref<1x16x16xf32, #tpu.memory_space<vmem>>, %arg7: memref<4x16x16xf32, #tpu.memory_space<vmem>>, %arg8: memref<4x16x16xf32, #tpu.memory_space<vmem>>, %arg9: memref<1x1x2x2x16x16xf32, #tpu.memory_space<vmem>>) attributes {dimension_semantics = [#tpu.dimension_semantics<parallel>, #tpu.dimension_semantics<parallel>, #tpu.dimension_semantics<arbitrary>], iteration_bounds = array<i64: 2, 1, 4>, scalar_prefetch = 0 : i64, scratch_operands = 0 : i64, tpu.core_type = #tpu.core_type<tc>, window_params = [{transform_indices = @transform_0, window_bounds = array<i64: 1, 2, 2, 16, 16>}, {transform_indices = @transform_1, window_bounds = array<i64: 1, 1, 2, 2, 16, 16>}, {transform_indices = @transform_2, window_bounds = array<i64: 1, 1, 2, 16, 16>}, {transform_indices = @transform_3, window_bounds = array<i64: 1, 16, 16>}, {pipeline_mode = #tpu.pipeline_mode<synchronous>, transform_indices = @transform_4, window_bounds = array<i64: 4, 16, 16>}, {pipeline_mode = #tpu.pipeline_mode<synchronous>, transform_indices = @transform_5, window_bounds = array<i64: 4, 16, 16>}, {transform_indices = @transform_6, window_bounds = array<i64: 1, 1, 2, 2, 16, 16>}]} {
    %c0_i32 = arith.constant 0 : i32
    %0 = arith.cmpi eq, %arg2, %c0_i32 : i32
    %1 = arith.extui %0 : i1 to i32
    %c0_i32_0 = arith.constant 0 : i32
    %2 = arith.cmpi ne, %1, %c0_i32_0 : i32
    scf.if %2 {
      %cst_159 = arith.constant 0.000000e+00 : f32
      %139 = vector.broadcast %cst_159 : f32 to vector<1x1x2x2x16x16xf32>
      %c0_160 = arith.constant 0 : index
      %c0_161 = arith.constant 0 : index
      %c0_162 = arith.constant 0 : index
      %c0_163 = arith.constant 0 : index
      %c0_164 = arith.constant 0 : index
      %c0_165 = arith.constant 0 : index
      %140 = vector.load %arg9[%c0_160, %c0_161, %c0_162, %c0_163, %c0_164, %c0_165] : memref<1x1x2x2x16x16xf32, #tpu.memory_space<vmem>>, vector<1x1x2x2x16x16xf32>
      tpu.vector_store %arg9[%c0_160, %c0_161, %c0_162, %c0_163, %c0_164, %c0_165], %139 {strides = array<i32>} : memref<1x1x2x2x16x16xf32, #tpu.memory_space<vmem>>, vector<1x1x2x2x16x16xf32>,
    } else {
    }
    %c0 = arith.constant 0 : index
    %c0_1 = arith.constant 0 : index
    %c0_2 = arith.constant 0 : index
    %3 = vector.load %arg6[%c0, %c0_1, %c0_2] : memref<1x16x16xf32, #tpu.memory_space<vmem>>, vector<1x16x16xf32>
    %4 = vector.shape_cast %3 : vector<1x16x16xf32> to vector<16x16xf32>
    %c0_3 = arith.constant 0 : index
    %c0_4 = arith.constant 0 : index
    %c0_5 = arith.constant 0 : index
    %c0_6 = arith.constant 0 : index
    %c0_7 = arith.constant 0 : index
    %5 = vector.load %arg5[%c0_3, %c0_4, %c0_5, %c0_6, %c0_7] : memref<1x1x2x16x16xf32, #tpu.memory_space<vmem>>, vector<1x1x1x16x16xf32>
    %6 = vector.shape_cast %5 : vector<1x1x1x16x16xf32> to vector<16x16xf32>
    %c0_8 = arith.constant 0 : index
    %c0_9 = arith.constant 0 : index
    %c1 = arith.constant 1 : index
    %c0_10 = arith.constant 0 : index
    %c0_11 = arith.constant 0 : index
    %7 = vector.load %arg5[%c0_8, %c0_9, %c1, %c0_10, %c0_11] : memref<1x1x2x16x16xf32, #tpu.memory_space<vmem>>, vector<1x1x1x16x16xf32>
    %8 = vector.shape_cast %7 : vector<1x1x1x16x16xf32> to vector<16x16xf32>
    %c0_12 = arith.constant 0 : index
    %c0_13 = arith.constant 0 : index
    %c0_14 = arith.constant 0 : index
    %c0_15 = arith.constant 0 : index
    %c0_16 = arith.constant 0 : index
    %9 = vector.load %arg3[%c0_12, %c0_13, %c0_14, %c0_15, %c0_16] : memref<1x2x2x16x16xf32, #tpu.memory_space<vmem>>, vector<1x1x1x16x16xf32>
    %10 = vector.shape_cast %9 : vector<1x1x1x16x16xf32> to vector<16x16xf32>
    %c0_17 = arith.constant 0 : index
    %c1_18 = arith.constant 1 : index
    %c0_19 = arith.constant 0 : index
    %c0_20 = arith.constant 0 : index
    %c0_21 = arith.constant 0 : index
    %11 = vector.load %arg3[%c0_17, %c1_18, %c0_19, %c0_20, %c0_21] : memref<1x2x2x16x16xf32, #tpu.memory_space<vmem>>, vector<1x1x1x16x16xf32>
    %12 = vector.shape_cast %11 : vector<1x1x1x16x16xf32> to vector<16x16xf32>
    %c0_22 = arith.constant 0 : index
    %c0_23 = arith.constant 0 : index
    %c0_24 = arith.constant 0 : index
    %c0_25 = arith.constant 0 : index
    %c0_26 = arith.constant 0 : index
    %c0_27 = arith.constant 0 : index
    %13 = vector.load %arg4[%c0_22, %c0_23, %c0_24, %c0_25, %c0_26, %c0_27] : memref<1x1x2x2x16x16xf32, #tpu.memory_space<vmem>>, vector<1x1x1x1x16x16xf32>
    %14 = vector.shape_cast %13 : vector<1x1x1x1x16x16xf32> to vector<16x16xf32>
    %c0_28 = arith.constant 0 : index
    %c0_29 = arith.constant 0 : index
    %c1_30 = arith.constant 1 : index
    %c0_31 = arith.constant 0 : index
    %c0_32 = arith.constant 0 : index
    %c0_33 = arith.constant 0 : index
    %15 = vector.load %arg4[%c0_28, %c0_29, %c1_30, %c0_31, %c0_32, %c0_33] : memref<1x1x2x2x16x16xf32, #tpu.memory_space<vmem>>, vector<1x1x1x1x16x16xf32>
    %16 = vector.shape_cast %15 : vector<1x1x1x1x16x16xf32> to vector<16x16xf32>
    %17 = arith.mulf %10, %14 : vector<16x16xf32>
    %18 = arith.mulf %12, %16 : vector<16x16xf32>
    %19 = arith.subf %17, %18 : vector<16x16xf32>
    %20 = arith.mulf %10, %16 : vector<16x16xf32>
    %21 = arith.mulf %12, %14 : vector<16x16xf32>
    %22 = arith.addf %20, %21 : vector<16x16xf32>
    %c0_34 = arith.constant 0 : index
    %c0_35 = arith.constant 0 : index
    %c1_36 = arith.constant 1 : index
    %c0_37 = arith.constant 0 : index
    %c0_38 = arith.constant 0 : index
    %23 = vector.load %arg3[%c0_34, %c0_35, %c1_36, %c0_37, %c0_38] : memref<1x2x2x16x16xf32, #tpu.memory_space<vmem>>, vector<1x1x1x16x16xf32>
    %24 = vector.shape_cast %23 : vector<1x1x1x16x16xf32> to vector<16x16xf32>
    %c0_39 = arith.constant 0 : index
    %c1_40 = arith.constant 1 : index
    %c1_41 = arith.constant 1 : index
    %c0_42 = arith.constant 0 : index
    %c0_43 = arith.constant 0 : index
    %25 = vector.load %arg3[%c0_39, %c1_40, %c1_41, %c0_42, %c0_43] : memref<1x2x2x16x16xf32, #tpu.memory_space<vmem>>, vector<1x1x1x16x16xf32>
    %26 = vector.shape_cast %25 : vector<1x1x1x16x16xf32> to vector<16x16xf32>
    %c0_44 = arith.constant 0 : index
    %c0_45 = arith.constant 0 : index
    %c0_46 = arith.constant 0 : index
    %c1_47 = arith.constant 1 : index
    %c0_48 = arith.constant 0 : index
    %c0_49 = arith.constant 0 : index
    %27 = vector.load %arg4[%c0_44, %c0_45, %c0_46, %c1_47, %c0_48, %c0_49] : memref<1x1x2x2x16x16xf32, #tpu.memory_space<vmem>>, vector<1x1x1x1x16x16xf32>
    %28 = vector.shape_cast %27 : vector<1x1x1x1x16x16xf32> to vector<16x16xf32>
    %c0_50 = arith.constant 0 : index
    %c0_51 = arith.constant 0 : index
    %c1_52 = arith.constant 1 : index
    %c1_53 = arith.constant 1 : index
    %c0_54 = arith.constant 0 : index
    %c0_55 = arith.constant 0 : index
    %29 = vector.load %arg4[%c0_50, %c0_51, %c1_52, %c1_53, %c0_54, %c0_55] : memref<1x1x2x2x16x16xf32, #tpu.memory_space<vmem>>, vector<1x1x1x1x16x16xf32>
    %30 = vector.shape_cast %29 : vector<1x1x1x1x16x16xf32> to vector<16x16xf32>
    %31 = arith.mulf %24, %28 : vector<16x16xf32>
    %32 = arith.mulf %26, %30 : vector<16x16xf32>
    %33 = arith.subf %31, %32 : vector<16x16xf32>
    %34 = arith.mulf %24, %30 : vector<16x16xf32>
    %35 = arith.mulf %26, %28 : vector<16x16xf32>
    %36 = arith.addf %34, %35 : vector<16x16xf32>
    %37 = arith.addf %19, %33 : vector<16x16xf32>
    %38 = arith.addf %22, %36 : vector<16x16xf32>
    %c0_56 = arith.constant 0 : index
    %c0_57 = arith.constant 0 : index
    %c0_58 = arith.constant 0 : index
    %39 = vector.load %arg7[%c0_56, %c0_57, %c0_58] : memref<4x16x16xf32, #tpu.memory_space<vmem>>, vector<1x16x16xf32>
    %40 = vector.shape_cast %39 : vector<1x16x16xf32> to vector<16x16xf32>
    %c1_59 = arith.constant 1 : index
    %c0_60 = arith.constant 0 : index
    %c0_61 = arith.constant 0 : index
    %41 = vector.load %arg7[%c1_59, %c0_60, %c0_61] : memref<4x16x16xf32, #tpu.memory_space<vmem>>, vector<1x16x16xf32>
    %42 = vector.shape_cast %41 : vector<1x16x16xf32> to vector<16x16xf32>
    %43 = tpu.concatenate %37, %38 in 1 : vector<16x16xf32>, vector<16x16xf32> -> vector<16x32xf32>
    %cst = arith.constant dense<0.000000e+00> : vector<16x32xf32>
    %44 = tpu.matmul %40, %43, %cst {dimension_numbers = #tpu.dot_dimension_numbers<[1], [0], [0], [1], [0, 0, 1, 1], [], []>} : vector<16x16xf32>, vector<16x32xf32>, vector<16x32xf32> -> vector<16x32xf32>
    %cst_62 = arith.constant dense<0.000000e+00> : vector<16x32xf32>
    %45 = tpu.matmul %42, %43, %cst_62 {dimension_numbers = #tpu.dot_dimension_numbers<[1], [0], [0], [1], [0, 0, 1, 1], [], []>} : vector<16x16xf32>, vector<16x32xf32>, vector<16x32xf32> -> vector<16x32xf32>
    %46 = vector.extract_strided_slice %44 {offsets = [0, 0], sizes = [16, 16], strides = [1, 1]} : vector<16x32xf32> to vector<16x16xf32>
    %47 = vector.extract_strided_slice %45 {offsets = [0, 16], sizes = [16, 16], strides = [1, 1]} : vector<16x32xf32> to vector<16x16xf32>
    %48 = arith.subf %46, %47 : vector<16x16xf32>
    %49 = vector.extract_strided_slice %44 {offsets = [0, 16], sizes = [16, 16], strides = [1, 1]} : vector<16x32xf32> to vector<16x16xf32>
    %50 = vector.extract_strided_slice %45 {offsets = [0, 0], sizes = [16, 16], strides = [1, 1]} : vector<16x32xf32> to vector<16x16xf32>
    %51 = arith.addf %49, %50 : vector<16x16xf32>
    %c0_63 = arith.constant 0 : index
    %c0_64 = arith.constant 0 : index
    %c0_65 = arith.constant 0 : index
    %52 = vector.load %arg8[%c0_63, %c0_64, %c0_65] : memref<4x16x16xf32, #tpu.memory_space<vmem>>, vector<1x16x16xf32>
    %53 = vector.shape_cast %52 : vector<1x16x16xf32> to vector<16x16xf32>
    %c1_66 = arith.constant 1 : index
    %c0_67 = arith.constant 0 : index
    %c0_68 = arith.constant 0 : index
    %54 = vector.load %arg8[%c1_66, %c0_67, %c0_68] : memref<4x16x16xf32, #tpu.memory_space<vmem>>, vector<1x16x16xf32>
    %55 = vector.shape_cast %54 : vector<1x16x16xf32> to vector<16x16xf32>
    %56 = tpu.concatenate %48, %51 in 0 : vector<16x16xf32>, vector<16x16xf32> -> vector<32x16xf32>
    %cst_69 = arith.constant dense<0.000000e+00> : vector<32x16xf32>
    %57 = tpu.matmul %56, %53, %cst_69 {dimension_numbers = #tpu.dot_dimension_numbers<[1], [0], [0], [1], [0, 0, 1, 1], [], []>} : vector<32x16xf32>, vector<16x16xf32>, vector<32x16xf32> -> vector<32x16xf32>
    %cst_70 = arith.constant dense<0.000000e+00> : vector<32x16xf32>
    %58 = tpu.matmul %56, %55, %cst_70 {dimension_numbers = #tpu.dot_dimension_numbers<[1], [0], [0], [1], [0, 0, 1, 1], [], []>} : vector<32x16xf32>, vector<16x16xf32>, vector<32x16xf32> -> vector<32x16xf32>
    %59 = vector.extract_strided_slice %57 {offsets = [0, 0], sizes = [16, 16], strides = [1, 1]} : vector<32x16xf32> to vector<16x16xf32>
    %60 = vector.extract_strided_slice %58 {offsets = [16, 0], sizes = [16, 16], strides = [1, 1]} : vector<32x16xf32> to vector<16x16xf32>
    %61 = arith.subf %59, %60 : vector<16x16xf32>
    %62 = vector.extract_strided_slice %57 {offsets = [16, 0], sizes = [16, 16], strides = [1, 1]} : vector<32x16xf32> to vector<16x16xf32>
    %63 = vector.extract_strided_slice %58 {offsets = [0, 0], sizes = [16, 16], strides = [1, 1]} : vector<32x16xf32> to vector<16x16xf32>
    %64 = arith.addf %62, %63 : vector<16x16xf32>
    %65 = arith.mulf %4, %61 : vector<16x16xf32>
    %66 = arith.subf %65, %6 : vector<16x16xf32>
    %67 = arith.mulf %4, %64 : vector<16x16xf32>
    %68 = arith.subf %67, %8 : vector<16x16xf32>
    %c0_71 = arith.constant 0 : index
    %c0_72 = arith.constant 0 : index
    %c0_73 = arith.constant 0 : index
    %69 = vector.load %arg7[%c0_71, %c0_72, %c0_73] : memref<4x16x16xf32, #tpu.memory_space<vmem>>, vector<1x16x16xf32>
    %70 = vector.shape_cast %69 : vector<1x16x16xf32> to vector<16x16xf32>
    %c1_74 = arith.constant 1 : index
    %c0_75 = arith.constant 0 : index
    %c0_76 = arith.constant 0 : index
    %71 = vector.load %arg7[%c1_74, %c0_75, %c0_76] : memref<4x16x16xf32, #tpu.memory_space<vmem>>, vector<1x16x16xf32>
    %72 = vector.shape_cast %71 : vector<1x16x16xf32> to vector<16x16xf32>
    %73 = tpu.concatenate %66, %68 in 1 : vector<16x16xf32>, vector<16x16xf32> -> vector<16x32xf32>
    %cst_77 = arith.constant dense<0.000000e+00> : vector<16x32xf32>
    %74 = tpu.matmul %70, %73, %cst_77 {dimension_numbers = #tpu.dot_dimension_numbers<[1], [0], [0], [1], [0, 0, 1, 1], [], []>} : vector<16x16xf32>, vector<16x32xf32>, vector<16x32xf32> -> vector<16x32xf32>
    %cst_78 = arith.constant dense<0.000000e+00> : vector<16x32xf32>
    %75 = tpu.matmul %72, %73, %cst_78 {dimension_numbers = #tpu.dot_dimension_numbers<[1], [0], [0], [1], [0, 0, 1, 1], [], []>} : vector<16x16xf32>, vector<16x32xf32>, vector<16x32xf32> -> vector<16x32xf32>
    %76 = vector.extract_strided_slice %74 {offsets = [0, 0], sizes = [16, 16], strides = [1, 1]} : vector<16x32xf32> to vector<16x16xf32>
    %77 = vector.extract_strided_slice %75 {offsets = [0, 16], sizes = [16, 16], strides = [1, 1]} : vector<16x32xf32> to vector<16x16xf32>
    %78 = arith.addf %76, %77 : vector<16x16xf32>
    %79 = vector.extract_strided_slice %74 {offsets = [0, 16], sizes = [16, 16], strides = [1, 1]} : vector<16x32xf32> to vector<16x16xf32>
    %80 = vector.extract_strided_slice %75 {offsets = [0, 0], sizes = [16, 16], strides = [1, 1]} : vector<16x32xf32> to vector<16x16xf32>
    %81 = arith.subf %79, %80 : vector<16x16xf32>
    %c0_79 = arith.constant 0 : index
    %c0_80 = arith.constant 0 : index
    %c0_81 = arith.constant 0 : index
    %82 = vector.load %arg8[%c0_79, %c0_80, %c0_81] : memref<4x16x16xf32, #tpu.memory_space<vmem>>, vector<1x16x16xf32>
    %83 = vector.shape_cast %82 : vector<1x16x16xf32> to vector<16x16xf32>
    %c1_82 = arith.constant 1 : index
    %c0_83 = arith.constant 0 : index
    %c0_84 = arith.constant 0 : index
    %84 = vector.load %arg8[%c1_82, %c0_83, %c0_84] : memref<4x16x16xf32, #tpu.memory_space<vmem>>, vector<1x16x16xf32>
    %85 = vector.shape_cast %84 : vector<1x16x16xf32> to vector<16x16xf32>
    %86 = tpu.concatenate %78, %81 in 0 : vector<16x16xf32>, vector<16x16xf32> -> vector<32x16xf32>
    %cst_85 = arith.constant dense<0.000000e+00> : vector<32x16xf32>
    %87 = tpu.matmul %86, %83, %cst_85 {dimension_numbers = #tpu.dot_dimension_numbers<[1], [0], [0], [1], [0, 0, 1, 1], [], []>} : vector<32x16xf32>, vector<16x16xf32>, vector<32x16xf32> -> vector<32x16xf32>
    %cst_86 = arith.constant dense<0.000000e+00> : vector<32x16xf32>
    %88 = tpu.matmul %86, %85, %cst_86 {dimension_numbers = #tpu.dot_dimension_numbers<[1], [0], [0], [1], [0, 0, 1, 1], [], []>} : vector<32x16xf32>, vector<16x16xf32>, vector<32x16xf32> -> vector<32x16xf32>
    %89 = vector.extract_strided_slice %87 {offsets = [0, 0], sizes = [16, 16], strides = [1, 1]} : vector<32x16xf32> to vector<16x16xf32>
    %90 = vector.extract_strided_slice %88 {offsets = [16, 0], sizes = [16, 16], strides = [1, 1]} : vector<32x16xf32> to vector<16x16xf32>
    %91 = arith.addf %89, %90 : vector<16x16xf32>
    %92 = vector.extract_strided_slice %87 {offsets = [16, 0], sizes = [16, 16], strides = [1, 1]} : vector<32x16xf32> to vector<16x16xf32>
    %93 = vector.extract_strided_slice %88 {offsets = [0, 0], sizes = [16, 16], strides = [1, 1]} : vector<32x16xf32> to vector<16x16xf32>
    %94 = arith.subf %92, %93 : vector<16x16xf32>
    %c0_87 = arith.constant 0 : index
    %c0_88 = arith.constant 0 : index
    %c0_89 = arith.constant 0 : index
    %c0_90 = arith.constant 0 : index
    %c0_91 = arith.constant 0 : index
    %c0_92 = arith.constant 0 : index
    %95 = vector.load %arg4[%c0_87, %c0_88, %c0_89, %c0_90, %c0_91, %c0_92] : memref<1x1x2x2x16x16xf32, #tpu.memory_space<vmem>>, vector<1x1x1x1x16x16xf32>
    %96 = vector.shape_cast %95 : vector<1x1x1x1x16x16xf32> to vector<16x16xf32>
    %c0_93 = arith.constant 0 : index
    %c0_94 = arith.constant 0 : index
    %c1_95 = arith.constant 1 : index
    %c0_96 = arith.constant 0 : index
    %c0_97 = arith.constant 0 : index
    %c0_98 = arith.constant 0 : index
    %97 = vector.load %arg4[%c0_93, %c0_94, %c1_95, %c0_96, %c0_97, %c0_98] : memref<1x1x2x2x16x16xf32, #tpu.memory_space<vmem>>, vector<1x1x1x1x16x16xf32>
    %98 = vector.shape_cast %97 : vector<1x1x1x1x16x16xf32> to vector<16x16xf32>
    %c0_99 = arith.constant 0 : index
    %c0_100 = arith.constant 0 : index
    %c0_101 = arith.constant 0 : index
    %c0_102 = arith.constant 0 : index
    %c0_103 = arith.constant 0 : index
    %c0_104 = arith.constant 0 : index
    %99 = vector.load %arg9[%c0_99, %c0_100, %c0_101, %c0_102, %c0_103, %c0_104] : memref<1x1x2x2x16x16xf32, #tpu.memory_space<vmem>>, vector<1x1x1x1x16x16xf32>
    %100 = vector.shape_cast %99 : vector<1x1x1x1x16x16xf32> to vector<16x16xf32>
    %101 = arith.mulf %91, %96 : vector<16x16xf32>
    %102 = arith.mulf %94, %98 : vector<16x16xf32>
    %103 = arith.addf %101, %102 : vector<16x16xf32>
    %104 = arith.addf %100, %103 : vector<16x16xf32>
    %c0_105 = arith.constant 0 : index
    %c0_106 = arith.constant 0 : index
    %c0_107 = arith.constant 0 : index
    %c0_108 = arith.constant 0 : index
    %c0_109 = arith.constant 0 : index
    %c0_110 = arith.constant 0 : index
    %105 = vector.load %arg9[%c0_105, %c0_106, %c0_107, %c0_108, %c0_109, %c0_110] : memref<1x1x2x2x16x16xf32, #tpu.memory_space<vmem>>, vector<1x1x1x1x16x16xf32>
    %106 = vector.shape_cast %105 : vector<1x1x1x1x16x16xf32> to vector<16x16xf32>
    %107 = vector.shape_cast %104 : vector<16x16xf32> to vector<1x1x1x1x16x16xf32>
    tpu.vector_store %arg9[%c0_105, %c0_106, %c0_107, %c0_108, %c0_109, %c0_110], %107 {strides = array<i32>} : memref<1x1x2x2x16x16xf32, #tpu.memory_space<vmem>>, vector<1x1x1x1x16x16xf32>,
    %c0_111 = arith.constant 0 : index
    %c0_112 = arith.constant 0 : index
    %c1_113 = arith.constant 1 : index
    %c0_114 = arith.constant 0 : index
    %c0_115 = arith.constant 0 : index
    %c0_116 = arith.constant 0 : index
    %108 = vector.load %arg9[%c0_111, %c0_112, %c1_113, %c0_114, %c0_115, %c0_116] : memref<1x1x2x2x16x16xf32, #tpu.memory_space<vmem>>, vector<1x1x1x1x16x16xf32>
    %109 = vector.shape_cast %108 : vector<1x1x1x1x16x16xf32> to vector<16x16xf32>
    %110 = arith.mulf %94, %96 : vector<16x16xf32>
    %111 = arith.mulf %91, %98 : vector<16x16xf32>
    %112 = arith.subf %110, %111 : vector<16x16xf32>
    %113 = arith.addf %109, %112 : vector<16x16xf32>
    %c0_117 = arith.constant 0 : index
    %c0_118 = arith.constant 0 : index
    %c1_119 = arith.constant 1 : index
    %c0_120 = arith.constant 0 : index
    %c0_121 = arith.constant 0 : index
    %c0_122 = arith.constant 0 : index
    %114 = vector.load %arg9[%c0_117, %c0_118, %c1_119, %c0_120, %c0_121, %c0_122] : memref<1x1x2x2x16x16xf32, #tpu.memory_space<vmem>>, vector<1x1x1x1x16x16xf32>
    %115 = vector.shape_cast %114 : vector<1x1x1x1x16x16xf32> to vector<16x16xf32>
    %116 = vector.shape_cast %113 : vector<16x16xf32> to vector<1x1x1x1x16x16xf32>
    tpu.vector_store %arg9[%c0_117, %c0_118, %c1_119, %c0_120, %c0_121, %c0_122], %116 {strides = array<i32>} : memref<1x1x2x2x16x16xf32, #tpu.memory_space<vmem>>, vector<1x1x1x1x16x16xf32>,
    %c0_123 = arith.constant 0 : index
    %c0_124 = arith.constant 0 : index
    %c0_125 = arith.constant 0 : index
    %c1_126 = arith.constant 1 : index
    %c0_127 = arith.constant 0 : index
    %c0_128 = arith.constant 0 : index
    %117 = vector.load %arg4[%c0_123, %c0_124, %c0_125, %c1_126, %c0_127, %c0_128] : memref<1x1x2x2x16x16xf32, #tpu.memory_space<vmem>>, vector<1x1x1x1x16x16xf32>
    %118 = vector.shape_cast %117 : vector<1x1x1x1x16x16xf32> to vector<16x16xf32>
    %c0_129 = arith.constant 0 : index
    %c0_130 = arith.constant 0 : index
    %c1_131 = arith.constant 1 : index
    %c1_132 = arith.constant 1 : index
    %c0_133 = arith.constant 0 : index
    %c0_134 = arith.constant 0 : index
    %119 = vector.load %arg4[%c0_129, %c0_130, %c1_131, %c1_132, %c0_133, %c0_134] : memref<1x1x2x2x16x16xf32, #tpu.memory_space<vmem>>, vector<1x1x1x1x16x16xf32>
    %120 = vector.shape_cast %119 : vector<1x1x1x1x16x16xf32> to vector<16x16xf32>
    %c0_135 = arith.constant 0 : index
    %c0_136 = arith.constant 0 : index
    %c0_137 = arith.constant 0 : index
    %c1_138 = arith.constant 1 : index
    %c0_139 = arith.constant 0 : index
    %c0_140 = arith.constant 0 : index
    %121 = vector.load %arg9[%c0_135, %c0_136, %c0_137, %c1_138, %c0_139, %c0_140] : memref<1x1x2x2x16x16xf32, #tpu.memory_space<vmem>>, vector<1x1x1x1x16x16xf32>
    %122 = vector.shape_cast %121 : vector<1x1x1x1x16x16xf32> to vector<16x16xf32>
    %123 = arith.mulf %91, %118 : vector<16x16xf32>
    %124 = arith.mulf %94, %120 : vector<16x16xf32>
    %125 = arith.addf %123, %124 : vector<16x16xf32>
    %126 = arith.addf %122, %125 : vector<16x16xf32>
    %c0_141 = arith.constant 0 : index
    %c0_142 = arith.constant 0 : index
    %c0_143 = arith.constant 0 : index
    %c1_144 = arith.constant 1 : index
    %c0_145 = arith.constant 0 : index
    %c0_146 = arith.constant 0 : index
    %127 = vector.load %arg9[%c0_141, %c0_142, %c0_143, %c1_144, %c0_145, %c0_146] : memref<1x1x2x2x16x16xf32, #tpu.memory_space<vmem>>, vector<1x1x1x1x16x16xf32>
    %128 = vector.shape_cast %127 : vector<1x1x1x1x16x16xf32> to vector<16x16xf32>
    %129 = vector.shape_cast %126 : vector<16x16xf32> to vector<1x1x1x1x16x16xf32>
    tpu.vector_store %arg9[%c0_141, %c0_142, %c0_143, %c1_144, %c0_145, %c0_146], %129 {strides = array<i32>} : memref<1x1x2x2x16x16xf32, #tpu.memory_space<vmem>>, vector<1x1x1x1x16x16xf32>,
    %c0_147 = arith.constant 0 : index
    %c0_148 = arith.constant 0 : index
    %c1_149 = arith.constant 1 : index
    %c1_150 = arith.constant 1 : index
    %c0_151 = arith.constant 0 : index
    %c0_152 = arith.constant 0 : index
    %130 = vector.load %arg9[%c0_147, %c0_148, %c1_149, %c1_150, %c0_151, %c0_152] : memref<1x1x2x2x16x16xf32, #tpu.memory_space<vmem>>, vector<1x1x1x1x16x16xf32>
    %131 = vector.shape_cast %130 : vector<1x1x1x1x16x16xf32> to vector<16x16xf32>
    %132 = arith.mulf %94, %118 : vector<16x16xf32>
    %133 = arith.mulf %91, %120 : vector<16x16xf32>
    %134 = arith.subf %132, %133 : vector<16x16xf32>
    %135 = arith.addf %131, %134 : vector<16x16xf32>
    %c0_153 = arith.constant 0 : index
    %c0_154 = arith.constant 0 : index
    %c1_155 = arith.constant 1 : index
    %c1_156 = arith.constant 1 : index
    %c0_157 = arith.constant 0 : index
    %c0_158 = arith.constant 0 : index
    %136 = vector.load %arg9[%c0_153, %c0_154, %c1_155, %c1_156, %c0_157, %c0_158] : memref<1x1x2x2x16x16xf32, #tpu.memory_space<vmem>>, vector<1x1x1x1x16x16xf32>
    %137 = vector.shape_cast %136 : vector<1x1x1x1x16x16xf32> to vector<16x16xf32>
    %138 = vector.shape_cast %135 : vector<16x16xf32> to vector<1x1x1x1x16x16xf32>
    tpu.vector_store %arg9[%c0_153, %c0_154, %c1_155, %c1_156, %c0_157, %c0_158], %138 {strides = array<i32>} : memref<1x1x2x2x16x16xf32, #tpu.memory_space<vmem>>, vector<1x1x1x1x16x16xf32>,
    return
  }
  func.func @transform_0(%arg0: i32, %arg1: i32, %arg2: i32) -> (i32, i32, i32, i32, i32) {
    %c0_i32 = arith.constant 0 : i32
    %c0_i32_0 = arith.constant 0 : i32
    %c0_i32_1 = arith.constant 0 : i32
    %c0_i32_2 = arith.constant 0 : i32
    %c0_i32_3 = arith.constant 0 : i32
    return %arg0, %c0_i32, %c0_i32_0, %c0_i32_1, %c0_i32_2 : i32, i32, i32, i32, i32
  }
  func.func @transform_1(%arg0: i32, %arg1: i32, %arg2: i32) -> (i32, i32, i32, i32, i32, i32) {
    %c4_i32 = arith.constant 4 : i32
    %0 = arith.muli %arg1, %c4_i32 : i32
    %1 = arith.addi %0, %arg2 : i32
    %c0_i32 = arith.constant 0 : i32
    %c0_i32_0 = arith.constant 0 : i32
    %c0_i32_1 = arith.constant 0 : i32
    %c0_i32_2 = arith.constant 0 : i32
    %c0_i32_3 = arith.constant 0 : i32
    return %arg0, %1, %c0_i32, %c0_i32_0, %c0_i32_1, %c0_i32_2 : i32, i32, i32, i32, i32, i32
  }
  func.func @transform_2(%arg0: i32, %arg1: i32, %arg2: i32) -> (i32, i32, i32, i32, i32) {
    %c4_i32 = arith.constant 4 : i32
    %0 = arith.muli %arg1, %c4_i32 : i32
    %1 = arith.addi %0, %arg2 : i32
    %c0_i32 = arith.constant 0 : i32
    %c0_i32_0 = arith.constant 0 : i32
    %c0_i32_1 = arith.constant 0 : i32
    %c0_i32_2 = arith.constant 0 : i32
    return %arg0, %1, %c0_i32, %c0_i32_0, %c0_i32_1 : i32, i32, i32, i32, i32
  }
  func.func @transform_3(%arg0: i32, %arg1: i32, %arg2: i32) -> (i32, i32, i32) {
    %c0_i32 = arith.constant 0 : i32
    %c0_i32_0 = arith.constant 0 : i32
    %c0_i32_1 = arith.constant 0 : i32
    return %arg0, %c0_i32, %c0_i32_0 : i32, i32, i32
  }
  func.func @transform_4(%arg0: i32, %arg1: i32, %arg2: i32) -> (i32, i32, i32) {
    %c0_i32 = arith.constant 0 : i32
    %c0_i32_0 = arith.constant 0 : i32
    %c0_i32_1 = arith.constant 0 : i32
    %c0_i32_2 = arith.constant 0 : i32
    return %c0_i32, %c0_i32_0, %c0_i32_1 : i32, i32, i32
  }
  func.func @transform_5(%arg0: i32, %arg1: i32, %arg2: i32) -> (i32, i32, i32) {
    %c0_i32 = arith.constant 0 : i32
    %c0_i32_0 = arith.constant 0 : i32
    %c0_i32_1 = arith.constant 0 : i32
    %c0_i32_2 = arith.constant 0 : i32
    return %c0_i32, %c0_i32_0, %c0_i32_1 : i32, i32, i32
  }
  func.func @transform_6(%arg0: i32, %arg1: i32, %arg2: i32) -> (i32, i32, i32, i32, i32, i32) {
    %c0_i32 = arith.constant 0 : i32
    %c0_i32_0 = arith.constant 0 : i32
    %c0_i32_1 = arith.constant 0 : i32
    %c0_i32_2 = arith.constant 0 : i32
    %c0_i32_3 = arith.constant 0 : i32
    return %arg1, %arg0, %c0_i32, %c0_i32_0, %c0_i32_1, %c0_i32_2 : i32, i32, i32, i32, i32, i32
  }
}

</mosaic_0001>

<llo_original>
// kernel: tpu_custom_call.1
$region0: #{tpu_custom_call.1}
  #allocation0 [shape = 'u32[]', space=smem, size = 0x4, offset = 0x4, fixed_abs, tag = 'smem constant byte address 0x4 - core index']
  #allocation1 [shape = 'u32[144,128]{1,0:T(1,128)}', space=vmem, size = 0x12000, scoped, tag = 'internal scratch']
  %s0 = inlined_call_operand.hbm [shape: f32[2,2,2,16,16], index: 0, kind: input, shape index: {}]
  %s1 = inlined_call_operand.hbm [shape: f32[2,4,2,2,16,16], index: 1, kind: input, shape index: {}]
  %s2 = inlined_call_operand.hbm [shape: f32[2,4,2,16,16], index: 2, kind: input, shape index: {}]
  %s3 = inlined_call_operand.hbm [shape: f32[2,16,16], index: 3, kind: input, shape index: {}]
  %s4 = inlined_call_operand.hbm [shape: f32[4,16,16], index: 4, kind: input, shape index: {}]
  %s5 = inlined_call_operand.hbm [shape: f32[4,16,16], index: 5, kind: input, shape index: {}]
  %s6 = inlined_call_operand.hbm [shape: f32[1,2,2,2,16,16], index: 6, kind: output, shape index: {}]
  %s7 = sld [smem:[#allocation0]]
  $region85: #{tpu_custom_call.1} parent=0
    _
  %s9 = ssub.s32 1, %s7
  %s10 = scalar_select 0, %s9, %s7
  $region1: #{tpu_custom_call.1} parent=0
    #allocation2 [shape = 'u8[32768]{0}', space=vmem, size = 0x8000, scoped, tag = 'input window, operand 0, single buffered']
    #allocation3 [shape = 's32[2]{0}', space=sflag, size = 0x8, scoped, tag = 'scoped memory for tpu_custom_call.1']
    #allocation4 [shape = 's32[2]{0}', space=sflag, size = 0x8, scoped, tag = 'scoped memory for tpu_custom_call.1']
    #allocation5 [shape = 'u8[65536]{0}', space=vmem, size = 0x10000, scoped, tag = 'input window, operand 1']
    #allocation6 [shape = 's32[2]{0}', space=sflag, size = 0x8, scoped, tag = 'scoped memory for tpu_custom_call.1']
    #allocation7 [shape = 'u8[32768]{0}', space=vmem, size = 0x8000, scoped, tag = 'input window, operand 2']
    #allocation8 [shape = 'u8[8192]{0}', space=vmem, size = 0x2000, scoped, tag = 'input window, operand 3, single buffered']
    #allocation9 [shape = 's32[1]{0}', space=sflag, size = 0x4, scoped, tag = 'scoped memory for tpu_custom_call.1']
    #allocation10 [shape = 'u8[32768]{0}', space=vmem, size = 0x8000, scoped, tag = 'input window, operand 4, single buffered']
    #allocation11 [shape = 'u8[32768]{0}', space=vmem, size = 0x8000, scoped, tag = 'input window, operand 5, single buffered']
    #allocation12 [shape = 's32[1]{0}', space=sflag, size = 0x4, scoped, tag = 'scoped memory for tpu_custom_call.1']
    #allocation13 [shape = 'u8[65536]{0}', space=vmem, size = 0x10000, scoped, tag = 'output window, operand 0']
    %11 = vsyncpa [#allocation3], 0
    %12 = vsyncpa [#allocation6], 0
    %s13 = scalar_lea.sflag [#allocation6], 1
    %14 = vsyncpa %s13, 0
    %15 = vsyncpa [#allocation9], 0
    %16 = vsyncpa [#allocation12], 0
    %17 = vsyncpa [#allocation4], 0
    %s18 = scalar_lea.sflag [#allocation4], 1
    %19 = vsyncpa %s18, 0
    loop: start=0, step=1, limit=10
    $region2: #{tpu_custom_call.1} parent=1 // loop_pre_header
      _
    $region3: #{tpu_custom_call.1} parent=1 // loop_header
      %s21 = sphi 0, %s25
      %p22 = scmp.ge.s32.totalorder %s21, 10
      %s28 = sphi 0, %s47
      %s29 = sphi 0, %s43
      %s30 = sphi 0, %s39
      %s31 = sphi 0, %s28
      %s32 = sphi 0, %s29
      %s33 = sphi 0, %s30
      %s34 = sphi 0, %s31
      %s35 = sphi 0, %s32
      %s36 = sphi 0, %s33
      %s50 = sphi 0, %s52
      %s53 = sphi 0, %s50
      %s54 = sphi 0, %s53
      %s70 = sphi 0, %s54
      %s82 = sphi 0, %s84
      %s85 = sphi 0, %s82
      %s86 = sphi 0, %s85
      %s102 = sphi 0, %s86
      %s114 = sphi 0, %s116
      %s117 = sphi 0, %s114
      %s118 = sphi 0, %s117
      %s134 = sphi 0, %s118
      %s140 = sphi 0, %s142
      %s143 = sphi 0, %s140
      %s144 = sphi 0, %s143
      %s160 = sphi 0, %s144
      %s164 = sphi 0, %s164
      %s166 = sphi 0, %s164
      %s167 = sphi 0, %s166
      %s181 = sphi 0, %s167
      %s185 = sphi 0, %s185
      %s187 = sphi 0, %s185
      %s188 = sphi 0, %s187
      %s202 = sphi 0, %s188
      %s210 = sphi 0, %s212
      %s213 = sphi 0, %s210
      %s214 = sphi 0, %s213
      %s230 = sphi 0, %s214
    $region4: #{tpu_custom_call.1} parent=1 // loop_header_branch
      %24 = sbr.rel (%p22) target = $region8
    $region5: #{tpu_custom_call.1} parent=1 // loop_body
      %s26 = ssub.s32 %s21, 1
      %s27 = ssub.s32 %s21, 2
      %s37 = sadd.s32 1, %s30
      %p38 = scmp.ge.s32.totalorder %s37, 4
      %s39 = scalar_select %p38, 0, %s37
      %s40 = sadd.s32 1, %s29
      %s41 = scalar_select %p38, %s40, %s29
      %p42 = scmp.ge.s32.totalorder %s41, 1
      %s43 = scalar_select %p42, 0, %s41
      %s44 = sadd.s32 1, %s28
      %s45 = scalar_select %p42, %s44, %s28
      %p46 = scmp.ge.s32.totalorder %s45, 2
      %s47 = scalar_select %p46, 0, %s45
      %s48 = ssub.s32 %s28, %s47
      %p49 = scmp.eq.s32.totalorder %s48, 0
      %s51 = sadd.s32 %s50, 1
      %s52 = scalar_select %p49, %s50, %s51
      %p55 = pneg %p49
      %p56 = scmp.eq.s32.totalorder %s21, 7
      %p57 = por %p55, %p56
      %p58 = scmp.ne.s32.totalorder %s50, %s53
      %p59 = scmp.eq.s32.totalorder %s21, 0
      %p60 = por %p58, %p59
      %p61 = scmp.ne.s32.totalorder %s50, %s53
      %p62 = scmp.eq.s32.totalorder %s26, 7
      %p63 = por %p61, %p62
      %p64 = scmp.ne.s32.totalorder %s53, %s54
      %p65 = scmp.eq.s32.totalorder %s26, 0
      %p66 = por %p64, %p65
      %p67 = scmp.ne.s32.totalorder %s53, %s54
      %p68 = scmp.eq.s32.totalorder %s27, 7
      %p69 = por %p67, %p68
      %p71 = scmp.ne.s32.totalorder %s54, %s70
      %p72 = scmp.eq.s32.totalorder %s27, 0
      %p73 = por %p71, %p72
      %s74 = smul.u32 %s29, 4
      %s75 = sadd.s32 %s74, %s30
      %s76 = smul.u32 %s43, 4
      %s77 = sadd.s32 %s76, %s39
      %s78 = ssub.s32 %s28, %s47
      %s79 = ssub.s32 %s75, %s77
      %s80 = sor.u32 %s78, %s79
      %p81 = scmp.eq.s32.totalorder %s80, 0
      %s83 = sadd.s32 %s82, 1
      %s84 = scalar_select %p81, %s82, %s83
      %p87 = pneg %p81
      %p88 = scmp.eq.s32.totalorder %s21, 7
      %p89 = por %p87, %p88
      %p90 = scmp.ne.s32.totalorder %s82, %s85
      %p91 = scmp.eq.s32.totalorder %s21, 0
      %p92 = por %p90, %p91
      %p93 = scmp.ne.s32.totalorder %s82, %s85
      %p94 = scmp.eq.s32.totalorder %s26, 7
      %p95 = por %p93, %p94
      %p96 = scmp.ne.s32.totalorder %s85, %s86
      %p97 = scmp.eq.s32.totalorder %s26, 0
      %p98 = por %p96, %p97
      %p99 = scmp.ne.s32.totalorder %s85, %s86
      %p100 = scmp.eq.s32.totalorder %s27, 7
      %p101 = por %p99, %p100
      %p103 = scmp.ne.s32.totalorder %s86, %s102
      %p104 = scmp.eq.s32.totalorder %s27, 0
      %p105 = por %p103, %p104
      %s106 = smul.u32 %s29, 4
      %s107 = sadd.s32 %s106, %s30
      %s108 = smul.u32 %s43, 4
      %s109 = sadd.s32 %s108, %s39
      %s110 = ssub.s32 %s28, %s47
      %s111 = ssub.s32 %s107, %s109
      %s112 = sor.u32 %s110, %s111
      %p113 = scmp.eq.s32.totalorder %s112, 0
      %s115 = sadd.s32 %s114, 1
      %s116 = scalar_select %p113, %s114, %s115
      %p119 = pneg %p113
      %p120 = scmp.eq.s32.totalorder %s21, 7
      %p121 = por %p119, %p120
      %p122 = scmp.ne.s32.totalorder %s114, %s117
      %p123 = scmp.eq.s32.totalorder %s21, 0
      %p124 = por %p122, %p123
      %p125 = scmp.ne.s32.totalorder %s114, %s117
      %p126 = scmp.eq.s32.totalorder %s26, 7
      %p127 = por %p125, %p126
      %p128 = scmp.ne.s32.totalorder %s117, %s118
      %p129 = scmp.eq.s32.totalorder %s26, 0
      %p130 = por %p128, %p129
      %p131 = scmp.ne.s32.totalorder %s117, %s118
      %p132 = scmp.eq.s32.totalorder %s27, 7
      %p133 = por %p131, %p132
      %p135 = scmp.ne.s32.totalorder %s118, %s134
      %p136 = scmp.eq.s32.totalorder %s27, 0
      %p137 = por %p135, %p136
      %s138 = ssub.s32 %s28, %s47
      %p139 = scmp.eq.s32.totalorder %s138, 0
      %s141 = sadd.s32 %s140, 1
      %s142 = scalar_select %p139, %s140, %s141
      %p145 = pneg %p139
      %p146 = scmp.eq.s32.totalorder %s21, 7
      %p147 = por %p145, %p146
      %p148 = scmp.ne.s32.totalorder %s140, %s143
      %p149 = scmp.eq.s32.totalorder %s21, 0
      %p150 = por %p148, %p149
      %p151 = scmp.ne.s32.totalorder %s140, %s143
      %p152 = scmp.eq.s32.totalorder %s26, 7
      %p153 = por %p151, %p152
      %p154 = scmp.ne.s32.totalorder %s143, %s144
      %p155 = scmp.eq.s32.totalorder %s26, 0
      %p156 = por %p154, %p155
      %p157 = scmp.ne.s32.totalorder %s143, %s144
      %p158 = scmp.eq.s32.totalorder %s27, 7
      %p159 = por %p157, %p158
      %p161 = scmp.ne.s32.totalorder %s144, %s160
      %p162 = scmp.eq.s32.totalorder %s27, 0
      %p163 = por %p161, %p162
      %s165 = sadd.s32 %s164, 1
      %p168 = scmp.eq.s32.totalorder %s21, 7
      %p169 = scmp.ne.s32.totalorder %s164, %s166
      %p170 = scmp.eq.s32.totalorder %s21, 0
      %p171 = por %p169, %p170
      %p172 = scmp.ne.s32.totalorder %s164, %s166
      %p173 = scmp.eq.s32.totalorder %s26, 7
      %p174 = por %p172, %p173
      %p175 = scmp.ne.s32.totalorder %s166, %s167
      %p176 = scmp.eq.s32.totalorder %s26, 0
      %p177 = por %p175, %p176
      %p178 = scmp.ne.s32.totalorder %s166, %s167
      %p179 = scmp.eq.s32.totalorder %s27, 7
      %p180 = por %p178, %p179
      %p182 = scmp.ne.s32.totalorder %s167, %s181
      %p183 = scmp.eq.s32.totalorder %s27, 0
      %p184 = por %p182, %p183
      %s186 = sadd.s32 %s185, 1
      %p189 = scmp.eq.s32.totalorder %s21, 7
      %p190 = scmp.ne.s32.totalorder %s185, %s187
      %p191 = scmp.eq.s32.totalorder %s21, 0
      %p192 = por %p190, %p191
      %p193 = scmp.ne.s32.totalorder %s185, %s187
      %p194 = scmp.eq.s32.totalorder %s26, 7
      %p195 = por %p193, %p194
      %p196 = scmp.ne.s32.totalorder %s187, %s188
      %p197 = scmp.eq.s32.totalorder %s26, 0
      %p198 = por %p196, %p197
      %p199 = scmp.ne.s32.totalorder %s187, %s188
      %p200 = scmp.eq.s32.totalorder %s27, 7
      %p201 = por %p199, %p200
      %p203 = scmp.ne.s32.totalorder %s188, %s202
      %p204 = scmp.eq.s32.totalorder %s27, 0
      %p205 = por %p203, %p204
      %s206 = ssub.s32 %s29, %s43
      %s207 = ssub.s32 %s28, %s47
      %s208 = sor.u32 %s206, %s207
      %p209 = scmp.eq.s32.totalorder %s208, 0
      %s211 = sadd.s32 %s210, 1
      %s212 = scalar_select %p209, %s210, %s211
      %p215 = pneg %p209
      %p216 = scmp.eq.s32.totalorder %s21, 7
      %p217 = por %p215, %p216
      %p218 = scmp.ne.s32.totalorder %s210, %s213
      %p219 = scmp.eq.s32.totalorder %s21, 0
      %p220 = por %p218, %p219
      %p221 = scmp.ne.s32.totalorder %s210, %s213
      %p222 = scmp.eq.s32.totalorder %s26, 7
      %p223 = por %p221, %p222
      %p224 = scmp.ne.s32.totalorder %s213, %s214
      %p225 = scmp.eq.s32.totalorder %s26, 0
      %p226 = por %p224, %p225
      %p227 = scmp.ne.s32.totalorder %s213, %s214
      %p228 = scmp.eq.s32.totalorder %s27, 7
      %p229 = por %p227, %p228
      %p231 = scmp.ne.s32.totalorder %s214, %s230
      %p232 = scmp.eq.s32.totalorder %s27, 0
      %p233 = por %p231, %p232
      %p234 = scmp.le.s32.totalorder 1, %s21
      %p235 = scmp.lt.s32.totalorder %s21, 9
      %p236 = pnand %p234, %p235
      %p237 = pneg %p236
      // Predicated region
      $region9: #{tpu_custom_call.1} parent=5 // pred_check
        _
      $region10: #{tpu_custom_call.1} parent=5 // pred_check_branch
        %239 = sbr.rel (%p236) target = $region12
      $region11: #{tpu_custom_call.1} parent=5 // pred_region
        %s240 = ssub.s32 %s21, 1
        // Predicated region
        $region13: #{tpu_custom_call.1} parent=11 // pred_check
          %p241 = pneg %p66
        $region14: #{tpu_custom_call.1} parent=11 // pred_check_branch
          %243 = sbr.rel (%p241) target = $region16
        $region15: #{tpu_custom_call.1} parent=11 // pred_region
          %s245 = ssub.s32 1024, 1024
          %246 = vsyncadd [#allocation3], %s245
          %s247 = smul.addr %s31, 8
          %s248 = smul.addr %s247, 128
          %s249 = scalar_lea.hbm %s0, %s248
          %s250 = sshll.u32 [#allocation2], 4
          %s251 = int_to_ptr.vmem [resolvable:$true] %s250
          %256 = dma.hbm_to_vmem [thread:$0]  %s249, 1024, %s251, [#allocation3], 128, 128, 8
        $region16: #{tpu_custom_call.1} parent=11 // pred_fallthru
          _
        // Predicated region
        $region17: #{tpu_custom_call.1} parent=11 // pred_check
          %p257 = pneg %p156
        $region18: #{tpu_custom_call.1} parent=11 // pred_check_branch
          %259 = sbr.rel (%p257) target = $region20
        $region19: #{tpu_custom_call.1} parent=11 // pred_region
          %s261 = ssub.s32 256, 256
          %262 = vsyncadd [#allocation9], %s261
          %s263 = smul.addr %s31, 2
          %s264 = smul.addr %s263, 128
          %s265 = scalar_lea.hbm %s3, %s264
          %s266 = sshll.u32 [#allocation8], 4
          %s267 = int_to_ptr.vmem [resolvable:$true] %s266
          %272 = dma.hbm_to_vmem [thread:$0]  %s265, 256, %s267, [#allocation9], 128, 128, 8
        $region20: #{tpu_custom_call.1} parent=11 // pred_fallthru
          _
        // Predicated region
        $region21: #{tpu_custom_call.1} parent=11 // pred_check
          %p273 = pneg %p177
        $region22: #{tpu_custom_call.1} parent=11 // pred_check_branch
          %275 = sbr.rel (%p273) target = $region24
        $region23: #{tpu_custom_call.1} parent=11 // pred_region
          %s277 = ssub.s32 1024, 1024
          %278 = vsyncadd [#allocation9], %s277
          %s279 = sshll.u32 [#allocation10], 4
          %s280 = int_to_ptr.vmem [resolvable:$true] %s279
          %285 = dma.hbm_to_vmem [thread:$0]  %s4, 1024, %s280, [#allocation9], 128, 128, 8
        $region24: #{tpu_custom_call.1} parent=11 // pred_fallthru
          _
        // Predicated region
        $region25: #{tpu_custom_call.1} parent=11 // pred_check
          %p286 = pneg %p198
        $region26: #{tpu_custom_call.1} parent=11 // pred_check_branch
          %288 = sbr.rel (%p286) target = $region28
        $region27: #{tpu_custom_call.1} parent=11 // pred_region
          %s290 = ssub.s32 1024, 1024
          %291 = vsyncadd [#allocation12], %s290
          %s292 = sshll.u32 [#allocation11], 4
          %s293 = int_to_ptr.vmem [resolvable:$true] %s292
          %298 = dma.hbm_to_vmem [thread:$0]  %s5, 1024, %s293, [#allocation12], 128, 128, 8
        $region28: #{tpu_custom_call.1} parent=11 // pred_fallthru
          _
      $region12: #{tpu_custom_call.1} parent=5 // pred_fallthru
        _
      %p299 = scmp.lt.s32.totalorder %s21, 8
      // Predicated region
      $region29: #{tpu_custom_call.1} parent=5 // pred_check
        %p300 = pneg %p299
      $region30: #{tpu_custom_call.1} parent=5 // pred_check_branch
        %302 = sbr.rel (%p300) target = $region32
      $region31: #{tpu_custom_call.1} parent=5 // pred_region
        // Predicated region
        $region33: #{tpu_custom_call.1} parent=31 // pred_check
          %p303 = pneg %p92
        $region34: #{tpu_custom_call.1} parent=31 // pred_check_branch
          %305 = sbr.rel (%p303) target = $region36
        $region35: #{tpu_custom_call.1} parent=31 // pred_region
          %s306 = sand.u32 %s21, 1
          %s307 = scalar_lea.sflag [#allocation6], %s306
          %s308 = sand.u32 %s82, 1
          %s309 = smul.addr %s308, 64
          %s310 = scalar_lea.vmem [#allocation5], %s309
          %s311 = smul.u32 %s29, 4
          %s312 = sadd.s32 %s311, %s30
          %s314 = ssub.s32 1024, 1024
          %315 = vsyncadd %s307, %s314
          %s316 = smul.addr %s312, 8
          %s317 = smul.addr %s28, 32
          %s318 = sadd.s32 %s316, %s317
          %s319 = smul.addr %s318, 128
          %s320 = scalar_lea.hbm %s1, %s319
          %s321 = sshll.u32 %s310, 4
          %s322 = int_to_ptr.vmem [resolvable:$true] %s321
          %327 = dma.hbm_to_vmem [thread:$0]  %s320, 1024, %s322, %s307, 128, 128, 8
        $region36: #{tpu_custom_call.1} parent=31 // pred_fallthru
          _
        // Predicated region
        $region37: #{tpu_custom_call.1} parent=31 // pred_check
          %p328 = pneg %p124
        $region38: #{tpu_custom_call.1} parent=31 // pred_check_branch
          %330 = sbr.rel (%p328) target = $region40
        $region39: #{tpu_custom_call.1} parent=31 // pred_region
          %s331 = sand.u32 %s21, 1
          %s332 = scalar_lea.sflag [#allocation6], %s331
          %s333 = sand.u32 %s114, 1
          %s334 = smul.addr %s333, 32
          %s335 = scalar_lea.vmem [#allocation7], %s334
          %s336 = smul.u32 %s29, 4
          %s337 = sadd.s32 %s336, %s30
          %s339 = ssub.s32 512, 512
          %340 = vsyncadd %s332, %s339
          %s341 = smul.addr %s337, 4
          %s342 = smul.addr %s28, 16
          %s343 = sadd.s32 %s341, %s342
          %s344 = smul.addr %s343, 128
          %s345 = scalar_lea.hbm %s2, %s344
          %s346 = sshll.u32 %s335, 4
          %s347 = int_to_ptr.vmem [resolvable:$true] %s346
          %352 = dma.hbm_to_vmem [thread:$0]  %s345, 512, %s347, %s332, 128, 128, 8
        $region40: #{tpu_custom_call.1} parent=31 // pred_fallthru
          _
      $region32: #{tpu_custom_call.1} parent=5 // pred_fallthru
        _
      %p353 = scmp.le.s32.totalorder 1, %s21
      %p354 = scmp.lt.s32.totalorder %s21, 9
      %p355 = pnand %p353, %p354
      %p356 = pneg %p355
      // Predicated region
      $region41: #{tpu_custom_call.1} parent=5 // pred_check
        _
      $region42: #{tpu_custom_call.1} parent=5 // pred_check_branch
        %358 = sbr.rel (%p355) target = $region44
      $region43: #{tpu_custom_call.1} parent=5 // pred_region
        %s359 = ssub.s32 %s21, 1
        // Predicated region
        $region45: #{tpu_custom_call.1} parent=43 // pred_check
          %p360 = pneg %p66
        $region46: #{tpu_custom_call.1} parent=43 // pred_check_branch
          %362 = sbr.rel (%p360) target = $region48
        $region47: #{tpu_custom_call.1} parent=43 // pred_region
          %363 = dma.done [#allocation3], 1024
        $region48: #{tpu_custom_call.1} parent=43 // pred_fallthru
          _
        %s364 = sand.u32 %s26, 1
        %s365 = scalar_lea.sflag [#allocation6], %s364
        %s366 = sand.u32 %s85, 1
        %s367 = smul.addr %s366, 64
        %s368 = scalar_lea.vmem [#allocation5], %s367
        // Predicated region
        $region49: #{tpu_custom_call.1} parent=43 // pred_check
          %p369 = pneg %p98
        $region50: #{tpu_custom_call.1} parent=43 // pred_check_branch
          %371 = sbr.rel (%p369) target = $region52
        $region51: #{tpu_custom_call.1} parent=43 // pred_region
          %372 = dma.done %s365, 1024
        $region52: #{tpu_custom_call.1} parent=43 // pred_fallthru
          _
        %s373 = sand.u32 %s26, 1
        %s374 = scalar_lea.sflag [#allocation6], %s373
        %s375 = sand.u32 %s117, 1
        %s376 = smul.addr %s375, 32
        %s377 = scalar_lea.vmem [#allocation7], %s376
        // Predicated region
        $region53: #{tpu_custom_call.1} parent=43 // pred_check
          %p378 = pneg %p130
        $region54: #{tpu_custom_call.1} parent=43 // pred_check_branch
          %380 = sbr.rel (%p378) target = $region56
        $region55: #{tpu_custom_call.1} parent=43 // pred_region
          %381 = dma.done %s374, 512
        $region56: #{tpu_custom_call.1} parent=43 // pred_fallthru
          _
        // Predicated region
        $region57: #{tpu_custom_call.1} parent=43 // pred_check
          %p382 = pneg %p156
        $region58: #{tpu_custom_call.1} parent=43 // pred_check_branch
          %384 = sbr.rel (%p382) target = $region60
        $region59: #{tpu_custom_call.1} parent=43 // pred_region
          %385 = dma.done [#allocation9], 256
        $region60: #{tpu_custom_call.1} parent=43 // pred_fallthru
          _
        // Predicated region
        $region61: #{tpu_custom_call.1} parent=43 // pred_check
          %p386 = pneg %p177
        $region62: #{tpu_custom_call.1} parent=43 // pred_check_branch
          %388 = sbr.rel (%p386) target = $region64
        $region63: #{tpu_custom_call.1} parent=43 // pred_region
          %389 = dma.done [#allocation9], 1024
        $region64: #{tpu_custom_call.1} parent=43 // pred_fallthru
          _
        // Predicated region
        $region65: #{tpu_custom_call.1} parent=43 // pred_check
          %p390 = pneg %p198
        $region66: #{tpu_custom_call.1} parent=43 // pred_check_branch
          %392 = sbr.rel (%p390) target = $region68
        $region67: #{tpu_custom_call.1} parent=43 // pred_region
          %393 = dma.done [#allocation12], 1024
        $region68: #{tpu_custom_call.1} parent=43 // pred_fallthru
          _
        %p394 = pneg %p66
        %p395 = pneg %p63
        %s396 = sand.u32 %s26, 1
        %s397 = scalar_lea.sflag [#allocation6], %s396
        %s398 = sand.u32 %s85, 1
        %s399 = smul.addr %s398, 64
        %s400 = scalar_lea.vmem [#allocation5], %s399
        %p401 = pneg %p98
        %p402 = pneg %p95
        %s403 = sand.u32 %s26, 1
        %s404 = scalar_lea.sflag [#allocation6], %s403
        %s405 = sand.u32 %s117, 1
        %s406 = smul.addr %s405, 32
        %s407 = scalar_lea.vmem [#allocation7], %s406
        %p408 = pneg %p130
        %p409 = pneg %p127
        %p410 = pneg %p156
        %p411 = pneg %p153
        %p412 = pneg %p177
        %p413 = pneg %p174
        %p414 = pneg %p198
        %p415 = pneg %p195
        %p416 = pneg %p226
        %p417 = pneg %p223
        %s418 = sand.u32 %s213, 1
        %s419 = scalar_lea.sflag [#allocation4], %s418
        %s420 = sand.u32 %s213, 1
        %s421 = smul.addr %s420, 64
        %s422 = scalar_lea.vmem [#allocation13], %s421
        %s423 = smul.u32 %s32, 4
        %s424 = sadd.s32 %s423, %s33
        %s425 = smul.u32 %s32, 4
        %s426 = sadd.s32 %s425, %s33
        %p427 = scmp.eq.s32.totalorder %s33, 0
        // Predicated region
        $region69: #{tpu_custom_call.1} parent=43 // pred_check
          %p428 = pneg %p427
        $region70: #{tpu_custom_call.1} parent=43 // pred_check_branch
          %430 = sbr.rel (%p428) target = $region72
        $region71: #{tpu_custom_call.1} parent=43 // pred_region
          %vm431 = vcmask 130048
          %432 = vst.msk [vmem:[%s422] sm:$0xff] %vm431, 0.0
          %433 = vst.msk [vmem:[%s422 + $0x8] sm:$0xff] %vm431, 0.0
          %434 = vst.msk [vmem:[%s422 + $0x10] sm:$0xff] %vm431, 0.0
          %435 = vst.msk [vmem:[%s422 + $0x18] sm:$0xff] %vm431, 0.0
          %436 = vst.msk [vmem:[%s422 + $0x20] sm:$0xff] %vm431, 0.0
          %437 = vst.msk [vmem:[%s422 + $0x28] sm:$0xff] %vm431, 0.0
          %438 = vst.msk [vmem:[%s422 + $0x30] sm:$0xff] %vm431, 0.0
          %439 = vst.msk [vmem:[%s422 + $0x38] sm:$0xff] %vm431, 0.0
        $region72: #{tpu_custom_call.1} parent=43 // pred_fallthru
          _
        %v440 = vld [vmem:[#allocation8] sm:$0xff]
        %v441 = vld [vmem:[#allocation8 + $0x8] sm:$0xff]
        %v442 = vld [vmem:[%s377] sm:$0xff]
        %v443 = vld [vmem:[%s377 + $0x8] sm:$0xff]
        %s444 = scalar_lea.vmem %s377, 16 [#allocation7]
        %v445 = vld [vmem:[%s444] sm:$0xff]
        %v446 = vld [vmem:[%s444 + $0x8] sm:$0xff]
        %v447 = vld [vmem:[#allocation2] sm:$0xff]
        %v448 = vld [vmem:[#allocation2 + $0x8] sm:$0xff]
        %s449 = scalar_lea.vmem [#allocation2], 32
        %v450 = vld [vmem:[%s449] sm:$0xff]
        %v451 = vld [vmem:[%s449 + $0x8] sm:$0xff]
        %v452 = vld [vmem:[%s368] sm:$0xff]
        %v453 = vld [vmem:[%s368 + $0x8] sm:$0xff]
        %s454 = scalar_lea.vmem %s368, 32 [#allocation5]
        %v455 = vld [vmem:[%s454] sm:$0xff]
        %v456 = vld [vmem:[%s454 + $0x8] sm:$0xff]
        %v457 = vmul.f32 %v447, %v452
        %v458 = vmul.f32 %v448, %v453
        %v459 = vmul.f32 %v450, %v455
        %v460 = vmul.f32 %v451, %v456
        %v461 = vsub.f32 %v457, %v459
        %v462 = vsub.f32 %v458, %v460
        %v463 = vmul.f32 %v447, %v455
        %v464 = vmul.f32 %v448, %v456
        %v465 = vmul.f32 %v450, %v452
        %v466 = vmul.f32 %v451, %v453
        %v467 = vadd.f32 %v463, %v465
        %v468 = vadd.f32 %v464, %v466
        %s469 = scalar_lea.vmem [#allocation2], 16
        %v470 = vld [vmem:[%s469] sm:$0xff]
        %v471 = vld [vmem:[%s469 + $0x8] sm:$0xff]
        %s472 = scalar_lea.vmem [#allocation2], 48
        %v473 = vld [vmem:[%s472] sm:$0xff]
        %v474 = vld [vmem:[%s472 + $0x8] sm:$0xff]
        %s475 = scalar_lea.vmem %s368, 16 [#allocation5]
        %v476 = vld [vmem:[%s475] sm:$0xff]
        %v477 = vld [vmem:[%s475 + $0x8] sm:$0xff]
        %s478 = scalar_lea.vmem %s368, 48 [#allocation5]
        %v479 = vld [vmem:[%s478] sm:$0xff]
        %v480 = vld [vmem:[%s478 + $0x8] sm:$0xff]
        %v481 = vmul.f32 %v470, %v476
        %v482 = vmul.f32 %v471, %v477
        %v483 = vmul.f32 %v473, %v479
        %v484 = vmul.f32 %v474, %v480
        %v485 = vsub.f32 %v481, %v483
        %v486 = vsub.f32 %v482, %v484
        %v487 = vmul.f32 %v470, %v479
        %v488 = vmul.f32 %v471, %v480
        %v489 = vmul.f32 %v473, %v476
        %v490 = vmul.f32 %v474, %v477
        %v491 = vadd.f32 %v487, %v489
        %v492 = vadd.f32 %v488, %v490
        %v493 = vadd.f32 %v461, %v485
        %v494 = vadd.f32 %v462, %v486
        %v495 = vadd.f32 %v467, %v491
        %v496 = vadd.f32 %v468, %v492
        %v497 = vld [vmem:[#allocation10] sm:$0xff]
        %v498 = vld [vmem:[#allocation10 + $0x8] sm:$0xff]
        %s499 = scalar_lea.vmem [#allocation10], 16
        %v500 = vld [vmem:[%s499] sm:$0xff]
        %v501 = vld [vmem:[%s499 + $0x8] sm:$0xff]
        %504 = vrot.lane.b32.xlu0 %v495, 16
        %v505 = vpop.permute.xlu0 %504
        %506 = vrot.lane.b32.xlu0 %v496, 16
        %v507 = vpop.permute.xlu0 %506
        %vm510 = vcmask 130048
        %v511 = vsel %vm510, %v493, %v505
        %v512 = vsel %vm510, %v494, %v507
        %v514 = vsel %vm510, %v497, 0
        %v517 = vsel %vm510, %v498, 0
        %519 = vmatprep.subr.mxu0 0.0
        %520 = vmatpush1.msra.mxu0 0.0
        %521 = vmatprep.subr.mxu0 0.0
        %522 = vmatpush1.msra.mxu0 0.0
        %523 = vmatprep.subr.mxu0 0.0
        %524 = vmatpush1.msra.mxu0 0.0
        %525 = vmatprep.subr.mxu0 0.0
        %526 = vmatpush1.msra.mxu0 0.0
        %527 = vmatprep.subr.mxu0 0.0
        %528 = vmatpush1.msra.mxu0 0.0
        %529 = vmatprep.subr.mxu0 0.0
        %530 = vmatpush1.msra.mxu0 0.0
        %531 = vmatprep.subr.mxu0 0.0
        %532 = vmatpush1.msra.mxu0 0.0
        %533 = vmatprep.subr.mxu0 0.0
        %534 = vmatpush1.msra.mxu0 0.0
        %535 = vmatprep.subr.mxu0 0.0
        %536 = vmatpush1.msra.mxu0 0.0
        %537 = vmatprep.subr.mxu0 0.0
        %538 = vmatpush1.msra.mxu0 0.0
        %539 = vmatprep.subr.mxu0 0.0
        %540 = vmatpush1.msra.mxu0 0.0
        %541 = vmatprep.subr.mxu0 0.0
        %542 = vmatpush1.msra.mxu0 0.0
        %543 = vmatprep.subr.mxu0 0.0
        %544 = vmatpush1.msra.mxu0 0.0
        %545 = vmatprep.subr.mxu0 0.0
        %546 = vmatpush1.msra.mxu0 0.0
        %547 = vmatprep.subr.mxu0 0.0
        %548 = vmatpush1.msra.mxu0 %v512
        %549 = vmatprep.subr.mxu0 0.0
        %550 = vmatpush1.msra.mxu0 %v511
        %551 = vmatprep.subr.mxu0 0.0
        %552 = vmatpush2.msra.mxu0 0.0
        %553 = vmatprep.subr.mxu0 0.0
        %554 = vmatpush2.msra.mxu0 0.0
        %555 = vmatprep.subr.mxu0 0.0
        %556 = vmatpush2.msra.mxu0 0.0
        %557 = vmatprep.subr.mxu0 0.0
        %558 = vmatpush2.msra.mxu0 0.0
        %559 = vmatprep.subr.mxu0 0.0
        %560 = vmatpush2.msra.mxu0 0.0
        %561 = vmatprep.subr.mxu0 0.0
        %562 = vmatpush2.msra.mxu0 0.0
        %563 = vmatprep.subr.mxu0 0.0
        %564 = vmatpush2.msra.mxu0 0.0
        %565 = vmatprep.subr.mxu0 0.0
        %566 = vmatpush2.msra.mxu0 0.0
        %567 = vmatprep.subr.mxu0 0.0
        %568 = vmatpush2.msra.mxu0 0.0
        %569 = vmatprep.subr.mxu0 0.0
        %570 = vmatpush2.msra.mxu0 0.0
        %571 = vmatprep.subr.mxu0 0.0
        %572 = vmatpush2.msra.mxu0 0.0
        %573 = vmatprep.subr.mxu0 0.0
        %574 = vmatpush2.msra.mxu0 0.0
        %575 = vmatprep.subr.mxu0 0.0
        %576 = vmatpush2.msra.mxu0 0.0
        %577 = vmatprep.subr.mxu0 0.0
        %578 = vmatpush2.msra.mxu0 0.0
        %579 = vmatprep.subr.mxu0 0.0
        %580 = vmatpush2.msra.mxu0 0.0
        %581 = vmatprep.subr.mxu0 0.0
        %582 = vmatpush2.msra.mxu0 0.0
        %583 = vmatprep.mubr.f32.mxu0 0.0
        %584 = vmatmul.mubr.f32.gmra.mxu0 %v514
        %v585 = vpop.f32.mrf.mxu0
        %v586 = vadd.f32 0.0, %v585
        %v587 = vpop.f32.mrf.mxu0
        %588 = vmatprep.mubr.f32.mxu0 0.0
        %589 = vmatmul.mubr.f32.gmra.mxu0 %v517
        %v590 = vpop.f32.mrf.mxu0
        %v591 = vadd.f32 0.0, %v590
        %v592 = vpop.f32.mrf.mxu0
        %593 = vdwg.mxu0
        %v595 = vsel %vm510, %v500, 0
        %v598 = vsel %vm510, %v501, 0
        %600 = vmatprep.subr.mxu0 0.0
        %601 = vmatpush1.msra.mxu0 0.0
        %602 = vmatprep.subr.mxu0 0.0
        %603 = vmatpush1.msra.mxu0 0.0
        %604 = vmatprep.subr.mxu0 0.0
        %605 = vmatpush1.msra.mxu0 0.0
        %606 = vmatprep.subr.mxu0 0.0
        %607 = vmatpush1.msra.mxu0 0.0
        %608 = vmatprep.subr.mxu0 0.0
        %609 = vmatpush1.msra.mxu0 0.0
        %610 = vmatprep.subr.mxu0 0.0
        %611 = vmatpush1.msra.mxu0 0.0
        %612 = vmatprep.subr.mxu0 0.0
        %613 = vmatpush1.msra.mxu0 0.0
        %614 = vmatprep.subr.mxu0 0.0
        %615 = vmatpush1.msra.mxu0 0.0
        %616 = vmatprep.subr.mxu0 0.0
        %617 = vmatpush1.msra.mxu0 0.0
        %618 = vmatprep.subr.mxu0 0.0
        %619 = vmatpush1.msra.mxu0 0.0
        %620 = vmatprep.subr.mxu0 0.0
        %621 = vmatpush1.msra.mxu0 0.0
        %622 = vmatprep.subr.mxu0 0.0
        %623 = vmatpush1.msra.mxu0 0.0
        %624 = vmatprep.subr.mxu0 0.0
        %625 = vmatpush1.msra.mxu0 0.0
        %626 = vmatprep.subr.mxu0 0.0
        %627 = vmatpush1.msra.mxu0 0.0
        %628 = vmatprep.subr.mxu0 0.0
        %629 = vmatpush1.msra.mxu0 %v512
        %630 = vmatprep.subr.mxu0 0.0
        %631 = vmatpush1.msra.mxu0 %v511
        %632 = vmatprep.subr.mxu0 0.0
        %633 = vmatpush2.msra.mxu0 0.0
        %634 = vmatprep.subr.mxu0 0.0
        %635 = vmatpush2.msra.mxu0 0.0
        %636 = vmatprep.subr.mxu0 0.0
        %637 = vmatpush2.msra.mxu0 0.0
        %638 = vmatprep.subr.mxu0 0.0
        %639 = vmatpush2.msra.mxu0 0.0
        %640 = vmatprep.subr.mxu0 0.0
        %641 = vmatpush2.msra.mxu0 0.0
        %642 = vmatprep.subr.mxu0 0.0
        %643 = vmatpush2.msra.mxu0 0.0
        %644 = vmatprep.subr.mxu0 0.0
        %645 = vmatpush2.msra.mxu0 0.0
        %646 = vmatprep.subr.mxu0 0.0
        %647 = vmatpush2.msra.mxu0 0.0
        %648 = vmatprep.subr.mxu0 0.0
        %649 = vmatpush2.msra.mxu0 0.0
        %650 = vmatprep.subr.mxu0 0.0
        %651 = vmatpush2.msra.mxu0 0.0
        %652 = vmatprep.subr.mxu0 0.0
        %653 = vmatpush2.msra.mxu0 0.0
        %654 = vmatprep.subr.mxu0 0.0
        %655 = vmatpush2.msra.mxu0 0.0
        %656 = vmatprep.subr.mxu0 0.0
        %657 = vmatpush2.msra.mxu0 0.0
        %658 = vmatprep.subr.mxu0 0.0
        %659 = vmatpush2.msra.mxu0 0.0
        %660 = vmatprep.subr.mxu0 0.0
        %661 = vmatpush2.msra.mxu0 0.0
        %662 = vmatprep.subr.mxu0 0.0
        %663 = vmatpush2.msra.mxu0 0.0
        %664 = vmatprep.mubr.f32.mxu0 0.0
        %665 = vmatmul.mubr.f32.gmra.mxu0 %v595
        %v666 = vpop.f32.mrf.mxu0
        %v667 = vadd.f32 0.0, %v666
        %v668 = vpop.f32.mrf.mxu0
        %669 = vmatprep.mubr.f32.mxu0 0.0
        %670 = vmatmul.mubr.f32.gmra.mxu0 %v598
        %v671 = vpop.f32.mrf.mxu0
        %v672 = vadd.f32 0.0, %v671
        %v673 = vpop.f32.mrf.mxu0
        %674 = vdwg.mxu0
        %677 = vrot.lane.b32.xlu0 %v667, 112
        %v678 = vpop.permute.xlu0 %677
        %679 = vrot.lane.b32.xlu0 %v672, 112
        %v680 = vpop.permute.xlu0 %679
        %v683 = vsub.f32 %v586, %v678
        %v684 = vsub.f32 %v591, %v680
        %685 = vrot.lane.b32.xlu0 %v667, 16
        %v686 = vpop.permute.xlu0 %685
        %687 = vrot.lane.b32.xlu0 %v672, 16
        %v688 = vpop.permute.xlu0 %687
        %v691 = vadd.f32 %v586, %v686
        %v692 = vadd.f32 %v591, %v688
        %v693 = vld [vmem:[#allocation11] sm:$0xff]
        %v694 = vld [vmem:[#allocation11 + $0x8] sm:$0xff]
        %s695 = scalar_lea.vmem [#allocation11], 16
        %v696 = vld [vmem:[%s695] sm:$0xff]
        %v697 = vld [vmem:[%s695 + $0x8] sm:$0xff]
        %700 = vrot.lane.b32.xlu0 %v691, 112
        %v701 = vpop.permute.xlu0 %700
        %702 = vrot.lane.b32.xlu0 %v692, 112
        %v703 = vpop.permute.xlu0 %702
        %v705 = vsel %vm510, %v683, 0
        %v708 = vsel %vm510, %v684, 0
        %v710 = vsel %vm510, %v701, 0
        %v712 = vsel %vm510, %v703, 0
        %714 = vmatprep.subr.mxu0 0.0
        %715 = vmatpush1.msra.mxu0 0.0
        %716 = vmatprep.subr.mxu0 0.0
        %717 = vmatpush1.msra.mxu0 0.0
        %718 = vmatprep.subr.mxu0 0.0
        %719 = vmatpush1.msra.mxu0 0.0
        %720 = vmatprep.subr.mxu0 0.0
        %721 = vmatpush1.msra.mxu0 0.0
        %722 = vmatprep.subr.mxu0 0.0
        %723 = vmatpush1.msra.mxu0 0.0
        %724 = vmatprep.subr.mxu0 0.0
        %725 = vmatpush1.msra.mxu0 0.0
        %726 = vmatprep.subr.mxu0 0.0
        %727 = vmatpush1.msra.mxu0 0.0
        %728 = vmatprep.subr.mxu0 0.0
        %729 = vmatpush1.msra.mxu0 0.0
        %730 = vmatprep.subr.mxu0 0.0
        %731 = vmatpush1.msra.mxu0 0.0
        %732 = vmatprep.subr.mxu0 0.0
        %733 = vmatpush1.msra.mxu0 0.0
        %734 = vmatprep.subr.mxu0 0.0
        %735 = vmatpush1.msra.mxu0 0.0
        %736 = vmatprep.subr.mxu0 0.0
        %737 = vmatpush1.msra.mxu0 0.0
        %738 = vmatprep.subr.mxu0 0.0
        %739 = vmatpush1.msra.mxu0 0.0
        %740 = vmatprep.subr.mxu0 0.0
        %741 = vmatpush1.msra.mxu0 0.0
        %742 = vmatprep.subr.mxu0 0.0
        %743 = vmatpush1.msra.mxu0 %v694
        %744 = vmatprep.subr.mxu0 0.0
        %745 = vmatpush1.msra.mxu0 %v693
        %746 = vmatprep.subr.mxu0 0.0
        %747 = vmatpush2.msra.mxu0 0.0
        %748 = vmatprep.subr.mxu0 0.0
        %749 = vmatpush2.msra.mxu0 0.0
        %750 = vmatprep.subr.mxu0 0.0
        %751 = vmatpush2.msra.mxu0 0.0
        %752 = vmatprep.subr.mxu0 0.0
        %753 = vmatpush2.msra.mxu0 0.0
        %754 = vmatprep.subr.mxu0 0.0
        %755 = vmatpush2.msra.mxu0 0.0
        %756 = vmatprep.subr.mxu0 0.0
        %757 = vmatpush2.msra.mxu0 0.0
        %758 = vmatprep.subr.mxu0 0.0
        %759 = vmatpush2.msra.mxu0 0.0
        %760 = vmatprep.subr.mxu0 0.0
        %761 = vmatpush2.msra.mxu0 0.0
        %762 = vmatprep.subr.mxu0 0.0
        %763 = vmatpush2.msra.mxu0 0.0
        %764 = vmatprep.subr.mxu0 0.0
        %765 = vmatpush2.msra.mxu0 0.0
        %766 = vmatprep.subr.mxu0 0.0
        %767 = vmatpush2.msra.mxu0 0.0
        %768 = vmatprep.subr.mxu0 0.0
        %769 = vmatpush2.msra.mxu0 0.0
        %770 = vmatprep.subr.mxu0 0.0
        %771 = vmatpush2.msra.mxu0 0.0
        %772 = vmatprep.subr.mxu0 0.0
        %773 = vmatpush2.msra.mxu0 0.0
        %774 = vmatprep.subr.mxu0 0.0
        %775 = vmatpush2.msra.mxu0 0.0
        %776 = vmatprep.subr.mxu0 0.0
        %777 = vmatpush2.msra.mxu0 0.0
        %778 = vmatprep.mubr.f32.mxu0 0.0
        %779 = vmatmul.mubr.f32.gmra.mxu0 %v705
        %v780 = vpop.f32.mrf.mxu0
        %v781 = vadd.f32 0.0, %v780
        %v782 = vpop.f32.mrf.mxu0
        %783 = vmatprep.mubr.f32.mxu0 0.0
        %784 = vmatmul.mubr.f32.gmra.mxu0 %v708
        %v785 = vpop.f32.mrf.mxu0
        %v786 = vadd.f32 0.0, %v785
        %v787 = vpop.f32.mrf.mxu0
        %788 = vmatprep.mubr.f32.mxu0 0.0
        %789 = vmatmul.mubr.f32.gmra.mxu0 %v710
        %v790 = vpop.f32.mrf.mxu0
        %v791 = vadd.f32 0.0, %v790
        %v792 = vpop.f32.mrf.mxu0
        %793 = vmatprep.mubr.f32.mxu0 0.0
        %794 = vmatmul.mubr.f32.gmra.mxu0 %v712
        %v795 = vpop.f32.mrf.mxu0
        %v796 = vadd.f32 0.0, %v795
        %v797 = vpop.f32.mrf.mxu0
        %798 = vdwg.mxu0
        %799 = vmatprep.subr.mxu0 0.0
        %800 = vmatpush1.msra.mxu0 0.0
        %801 = vmatprep.subr.mxu0 0.0
        %802 = vmatpush1.msra.mxu0 0.0
        %803 = vmatprep.subr.mxu0 0.0
        %804 = vmatpush1.msra.mxu0 0.0
        %805 = vmatprep.subr.mxu0 0.0
        %806 = vmatpush1.msra.mxu0 0.0
        %807 = vmatprep.subr.mxu0 0.0
        %808 = vmatpush1.msra.mxu0 0.0
        %809 = vmatprep.subr.mxu0 0.0
        %810 = vmatpush1.msra.mxu0 0.0
        %811 = vmatprep.subr.mxu0 0.0
        %812 = vmatpush1.msra.mxu0 0.0
        %813 = vmatprep.subr.mxu0 0.0
        %814 = vmatpush1.msra.mxu0 0.0
        %815 = vmatprep.subr.mxu0 0.0
        %816 = vmatpush1.msra.mxu0 0.0
        %817 = vmatprep.subr.mxu0 0.0
        %818 = vmatpush1.msra.mxu0 0.0
        %819 = vmatprep.subr.mxu0 0.0
        %820 = vmatpush1.msra.mxu0 0.0
        %821 = vmatprep.subr.mxu0 0.0
        %822 = vmatpush1.msra.mxu0 0.0
        %823 = vmatprep.subr.mxu0 0.0
        %824 = vmatpush1.msra.mxu0 0.0
        %825 = vmatprep.subr.mxu0 0.0
        %826 = vmatpush1.msra.mxu0 0.0
        %827 = vmatprep.subr.mxu0 0.0
        %828 = vmatpush1.msra.mxu0 %v697
        %829 = vmatprep.subr.mxu0 0.0
        %830 = vmatpush1.msra.mxu0 %v696
        %831 = vmatprep.subr.mxu0 0.0
        %832 = vmatpush2.msra.mxu0 0.0
        %833 = vmatprep.subr.mxu0 0.0
        %834 = vmatpush2.msra.mxu0 0.0
        %835 = vmatprep.subr.mxu0 0.0
        %836 = vmatpush2.msra.mxu0 0.0
        %837 = vmatprep.subr.mxu0 0.0
        %838 = vmatpush2.msra.mxu0 0.0
        %839 = vmatprep.subr.mxu0 0.0
        %840 = vmatpush2.msra.mxu0 0.0
        %841 = vmatprep.subr.mxu0 0.0
        %842 = vmatpush2.msra.mxu0 0.0
        %843 = vmatprep.subr.mxu0 0.0
        %844 = vmatpush2.msra.mxu0 0.0
        %845 = vmatprep.subr.mxu0 0.0
        %846 = vmatpush2.msra.mxu0 0.0
        %847 = vmatprep.subr.mxu0 0.0
        %848 = vmatpush2.msra.mxu0 0.0
        %849 = vmatprep.subr.mxu0 0.0
        %850 = vmatpush2.msra.mxu0 0.0
        %851 = vmatprep.subr.mxu0 0.0
        %852 = vmatpush2.msra.mxu0 0.0
        %853 = vmatprep.subr.mxu0 0.0
        %854 = vmatpush2.msra.mxu0 0.0
        %855 = vmatprep.subr.mxu0 0.0
        %856 = vmatpush2.msra.mxu0 0.0
        %857 = vmatprep.subr.mxu0 0.0
        %858 = vmatpush2.msra.mxu0 0.0
        %859 = vmatprep.subr.mxu0 0.0
        %860 = vmatpush2.msra.mxu0 0.0
        %861 = vmatprep.subr.mxu0 0.0
        %862 = vmatpush2.msra.mxu0 0.0
        %863 = vmatprep.mubr.f32.mxu0 0.0
        %864 = vmatmul.mubr.f32.gmra.mxu0 %v705
        %v865 = vpop.f32.mrf.mxu0
        %v866 = vadd.f32 0.0, %v865
        %v867 = vpop.f32.mrf.mxu0
        %868 = vmatprep.mubr.f32.mxu0 0.0
        %869 = vmatmul.mubr.f32.gmra.mxu0 %v708
        %v870 = vpop.f32.mrf.mxu0
        %v871 = vadd.f32 0.0, %v870
        %v872 = vpop.f32.mrf.mxu0
        %873 = vmatprep.mubr.f32.mxu0 0.0
        %874 = vmatmul.mubr.f32.gmra.mxu0 %v710
        %v875 = vpop.f32.mrf.mxu0
        %v876 = vadd.f32 0.0, %v875
        %v877 = vpop.f32.mrf.mxu0
        %878 = vmatprep.mubr.f32.mxu0 0.0
        %879 = vmatmul.mubr.f32.gmra.mxu0 %v712
        %v880 = vpop.f32.mrf.mxu0
        %v881 = vadd.f32 0.0, %v880
        %v882 = vpop.f32.mrf.mxu0
        %883 = vdwg.mxu0
        %v884 = vsub.f32 %v781, %v876
        %v885 = vsub.f32 %v786, %v881
        %v886 = vadd.f32 %v791, %v866
        %v887 = vadd.f32 %v796, %v871
        %v888 = vmul.f32 %v440, %v884
        %v889 = vmul.f32 %v441, %v885
        %v890 = vsub.f32 %v888, %v442
        %v891 = vsub.f32 %v889, %v443
        %v892 = vmul.f32 %v440, %v886
        %v893 = vmul.f32 %v441, %v887
        %v894 = vsub.f32 %v892, %v445
        %v895 = vsub.f32 %v893, %v446
        %898 = vrot.lane.b32.xlu0 %v894, 16
        %v899 = vpop.permute.xlu0 %898
        %900 = vrot.lane.b32.xlu0 %v895, 16
        %v901 = vpop.permute.xlu0 %900
        %v904 = vsel %vm510, %v890, %v899
        %v905 = vsel %vm510, %v891, %v901
        %906 = vmatprep.subr.mxu0 0.0
        %907 = vmatpush1.msra.mxu0 0.0
        %908 = vmatprep.subr.mxu0 0.0
        %909 = vmatpush1.msra.mxu0 0.0
        %910 = vmatprep.subr.mxu0 0.0
        %911 = vmatpush1.msra.mxu0 0.0
        %912 = vmatprep.subr.mxu0 0.0
        %913 = vmatpush1.msra.mxu0 0.0
        %914 = vmatprep.subr.mxu0 0.0
        %915 = vmatpush1.msra.mxu0 0.0
        %916 = vmatprep.subr.mxu0 0.0
        %917 = vmatpush1.msra.mxu0 0.0
        %918 = vmatprep.subr.mxu0 0.0
        %919 = vmatpush1.msra.mxu0 0.0
        %920 = vmatprep.subr.mxu0 0.0
        %921 = vmatpush1.msra.mxu0 0.0
        %922 = vmatprep.subr.mxu0 0.0
        %923 = vmatpush1.msra.mxu0 0.0
        %924 = vmatprep.subr.mxu0 0.0
        %925 = vmatpush1.msra.mxu0 0.0
        %926 = vmatprep.subr.mxu0 0.0
        %927 = vmatpush1.msra.mxu0 0.0
        %928 = vmatprep.subr.mxu0 0.0
        %929 = vmatpush1.msra.mxu0 0.0
        %930 = vmatprep.subr.mxu0 0.0
        %931 = vmatpush1.msra.mxu0 0.0
        %932 = vmatprep.subr.mxu0 0.0
        %933 = vmatpush1.msra.mxu0 0.0
        %934 = vmatprep.subr.mxu0 0.0
        %935 = vmatpush1.msra.mxu0 %v905
        %936 = vmatprep.subr.mxu0 0.0
        %937 = vmatpush1.msra.mxu0 %v904
        %938 = vmatprep.subr.mxu0 0.0
        %939 = vmatpush2.msra.mxu0 0.0
        %940 = vmatprep.subr.mxu0 0.0
        %941 = vmatpush2.msra.mxu0 0.0
        %942 = vmatprep.subr.mxu0 0.0
        %943 = vmatpush2.msra.mxu0 0.0
        %944 = vmatprep.subr.mxu0 0.0
        %945 = vmatpush2.msra.mxu0 0.0
        %946 = vmatprep.subr.mxu0 0.0
        %947 = vmatpush2.msra.mxu0 0.0
        %948 = vmatprep.subr.mxu0 0.0
        %949 = vmatpush2.msra.mxu0 0.0
        %950 = vmatprep.subr.mxu0 0.0
        %951 = vmatpush2.msra.mxu0 0.0
        %952 = vmatprep.subr.mxu0 0.0
        %953 = vmatpush2.msra.mxu0 0.0
        %954 = vmatprep.subr.mxu0 0.0
        %955 = vmatpush2.msra.mxu0 0.0
        %956 = vmatprep.subr.mxu0 0.0
        %957 = vmatpush2.msra.mxu0 0.0
        %958 = vmatprep.subr.mxu0 0.0
        %959 = vmatpush2.msra.mxu0 0.0
        %960 = vmatprep.subr.mxu0 0.0
        %961 = vmatpush2.msra.mxu0 0.0
        %962 = vmatprep.subr.mxu0 0.0
        %963 = vmatpush2.msra.mxu0 0.0
        %964 = vmatprep.subr.mxu0 0.0
        %965 = vmatpush2.msra.mxu0 0.0
        %966 = vmatprep.subr.mxu0 0.0
        %967 = vmatpush2.msra.mxu0 0.0
        %968 = vmatprep.subr.mxu0 0.0
        %969 = vmatpush2.msra.mxu0 0.0
        %970 = vmatprep.mubr.f32.mxu0 0.0
        %971 = vmatmul.mubr.f32.gmra.mxu0 %v514
        %v972 = vpop.f32.mrf.mxu0
        %v973 = vadd.f32 0.0, %v972
        %v974 = vpop.f32.mrf.mxu0
        %975 = vmatprep.mubr.f32.mxu0 0.0
        %976 = vmatmul.mubr.f32.gmra.mxu0 %v517
        %v977 = vpop.f32.mrf.mxu0
        %v978 = vadd.f32 0.0, %v977
        %v979 = vpop.f32.mrf.mxu0
        %980 = vdwg.mxu0
        %981 = vmatprep.subr.mxu0 0.0
        %982 = vmatpush1.msra.mxu0 0.0
        %983 = vmatprep.subr.mxu0 0.0
        %984 = vmatpush1.msra.mxu0 0.0
        %985 = vmatprep.subr.mxu0 0.0
        %986 = vmatpush1.msra.mxu0 0.0
        %987 = vmatprep.subr.mxu0 0.0
        %988 = vmatpush1.msra.mxu0 0.0
        %989 = vmatprep.subr.mxu0 0.0
        %990 = vmatpush1.msra.mxu0 0.0
        %991 = vmatprep.subr.mxu0 0.0
        %992 = vmatpush1.msra.mxu0 0.0
        %993 = vmatprep.subr.mxu0 0.0
        %994 = vmatpush1.msra.mxu0 0.0
        %995 = vmatprep.subr.mxu0 0.0
        %996 = vmatpush1.msra.mxu0 0.0
        %997 = vmatprep.subr.mxu0 0.0
        %998 = vmatpush1.msra.mxu0 0.0
        %999 = vmatprep.subr.mxu0 0.0
        %1000 = vmatpush1.msra.mxu0 0.0
        %1001 = vmatprep.subr.mxu0 0.0
        %1002 = vmatpush1.msra.mxu0 0.0
        %1003 = vmatprep.subr.mxu0 0.0
        %1004 = vmatpush1.msra.mxu0 0.0
        %1005 = vmatprep.subr.mxu0 0.0
        %1006 = vmatpush1.msra.mxu0 0.0
        %1007 = vmatprep.subr.mxu0 0.0
        %1008 = vmatpush1.msra.mxu0 0.0
        %1009 = vmatprep.subr.mxu0 0.0
        %1010 = vmatpush1.msra.mxu0 %v905
        %1011 = vmatprep.subr.mxu0 0.0
        %1012 = vmatpush1.msra.mxu0 %v904
        %1013 = vmatprep.subr.mxu0 0.0
        %1014 = vmatpush2.msra.mxu0 0.0
        %1015 = vmatprep.subr.mxu0 0.0
        %1016 = vmatpush2.msra.mxu0 0.0
        %1017 = vmatprep.subr.mxu0 0.0
        %1018 = vmatpush2.msra.mxu0 0.0
        %1019 = vmatprep.subr.mxu0 0.0
        %1020 = vmatpush2.msra.mxu0 0.0
        %1021 = vmatprep.subr.mxu0 0.0
        %1022 = vmatpush2.msra.mxu0 0.0
        %1023 = vmatprep.subr.mxu0 0.0
        %1024 = vmatpush2.msra.mxu0 0.0
        %1025 = vmatprep.subr.mxu0 0.0
        %1026 = vmatpush2.msra.mxu0 0.0
        %1027 = vmatprep.subr.mxu0 0.0
        %1028 = vmatpush2.msra.mxu0 0.0
        %1029 = vmatprep.subr.mxu0 0.0
        %1030 = vmatpush2.msra.mxu0 0.0
        %1031 = vmatprep.subr.mxu0 0.0
        %1032 = vmatpush2.msra.mxu0 0.0
        %1033 = vmatprep.subr.mxu0 0.0
        %1034 = vmatpush2.msra.mxu0 0.0
        %1035 = vmatprep.subr.mxu0 0.0
        %1036 = vmatpush2.msra.mxu0 0.0
        %1037 = vmatprep.subr.mxu0 0.0
        %1038 = vmatpush2.msra.mxu0 0.0
        %1039 = vmatprep.subr.mxu0 0.0
        %1040 = vmatpush2.msra.mxu0 0.0
        %1041 = vmatprep.subr.mxu0 0.0
        %1042 = vmatpush2.msra.mxu0 0.0
        %1043 = vmatprep.subr.mxu0 0.0
        %1044 = vmatpush2.msra.mxu0 0.0
        %1045 = vmatprep.mubr.f32.mxu0 0.0
        %1046 = vmatmul.mubr.f32.gmra.mxu0 %v595
        %v1047 = vpop.f32.mrf.mxu0
        %v1048 = vadd.f32 0.0, %v1047
        %v1049 = vpop.f32.mrf.mxu0
        %1050 = vmatprep.mubr.f32.mxu0 0.0
        %1051 = vmatmul.mubr.f32.gmra.mxu0 %v598
        %v1052 = vpop.f32.mrf.mxu0
        %v1053 = vadd.f32 0.0, %v1052
        %v1054 = vpop.f32.mrf.mxu0
        %1055 = vdwg.mxu0
        %1058 = vrot.lane.b32.xlu0 %v1048, 112
        %v1059 = vpop.permute.xlu0 %1058
        %1060 = vrot.lane.b32.xlu0 %v1053, 112
        %v1061 = vpop.permute.xlu0 %1060
        %v1064 = vadd.f32 %v973, %v1059
        %v1065 = vadd.f32 %v978, %v1061
        %1066 = vrot.lane.b32.xlu0 %v1048, 16
        %v1067 = vpop.permute.xlu0 %1066
        %1068 = vrot.lane.b32.xlu0 %v1053, 16
        %v1069 = vpop.permute.xlu0 %1068
        %v1072 = vsub.f32 %v973, %v1067
        %v1073 = vsub.f32 %v978, %v1069
        %1076 = vrot.lane.b32.xlu0 %v1072, 112
        %v1077 = vpop.permute.xlu0 %1076
        %1078 = vrot.lane.b32.xlu0 %v1073, 112
        %v1079 = vpop.permute.xlu0 %1078
        %v1081 = vsel %vm510, %v1064, 0
        %v1084 = vsel %vm510, %v1065, 0
        %v1086 = vsel %vm510, %v1077, 0
        %v1088 = vsel %vm510, %v1079, 0
        %1090 = vmatprep.subr.mxu0 0.0
        %1091 = vmatpush1.msra.mxu0 0.0
        %1092 = vmatprep.subr.mxu0 0.0
        %1093 = vmatpush1.msra.mxu0 0.0
        %1094 = vmatprep.subr.mxu0 0.0
        %1095 = vmatpush1.msra.mxu0 0.0
        %1096 = vmatprep.subr.mxu0 0.0
        %1097 = vmatpush1.msra.mxu0 0.0
        %1098 = vmatprep.subr.mxu0 0.0
        %1099 = vmatpush1.msra.mxu0 0.0
        %1100 = vmatprep.subr.mxu0 0.0
        %1101 = vmatpush1.msra.mxu0 0.0
        %1102 = vmatprep.subr.mxu0 0.0
        %1103 = vmatpush1.msra.mxu0 0.0
        %1104 = vmatprep.subr.mxu0 0.0
        %1105 = vmatpush1.msra.mxu0 0.0
        %1106 = vmatprep.subr.mxu0 0.0
        %1107 = vmatpush1.msra.mxu0 0.0
        %1108 = vmatprep.subr.mxu0 0.0
        %1109 = vmatpush1.msra.mxu0 0.0
        %1110 = vmatprep.subr.mxu0 0.0
        %1111 = vmatpush1.msra.mxu0 0.0
        %1112 = vmatprep.subr.mxu0 0.0
        %1113 = vmatpush1.msra.mxu0 0.0
        %1114 = vmatprep.subr.mxu0 0.0
        %1115 = vmatpush1.msra.mxu0 0.0
        %1116 = vmatprep.subr.mxu0 0.0
        %1117 = vmatpush1.msra.mxu0 0.0
        %1118 = vmatprep.subr.mxu0 0.0
        %1119 = vmatpush1.msra.mxu0 %v694
        %1120 = vmatprep.subr.mxu0 0.0
        %1121 = vmatpush1.msra.mxu0 %v693
        %1122 = vmatprep.subr.mxu0 0.0
        %1123 = vmatpush2.msra.mxu0 0.0
        %1124 = vmatprep.subr.mxu0 0.0
        %1125 = vmatpush2.msra.mxu0 0.0
        %1126 = vmatprep.subr.mxu0 0.0
        %1127 = vmatpush2.msra.mxu0 0.0
        %1128 = vmatprep.subr.mxu0 0.0
        %1129 = vmatpush2.msra.mxu0 0.0
        %1130 = vmatprep.subr.mxu0 0.0
        %1131 = vmatpush2.msra.mxu0 0.0
        %1132 = vmatprep.subr.mxu0 0.0
        %1133 = vmatpush2.msra.mxu0 0.0
        %1134 = vmatprep.subr.mxu0 0.0
        %1135 = vmatpush2.msra.mxu0 0.0
        %1136 = vmatprep.subr.mxu0 0.0
        %1137 = vmatpush2.msra.mxu0 0.0
        %1138 = vmatprep.subr.mxu0 0.0
        %1139 = vmatpush2.msra.mxu0 0.0
        %1140 = vmatprep.subr.mxu0 0.0
        %1141 = vmatpush2.msra.mxu0 0.0
        %1142 = vmatprep.subr.mxu0 0.0
        %1143 = vmatpush2.msra.mxu0 0.0
        %1144 = vmatprep.subr.mxu0 0.0
        %1145 = vmatpush2.msra.mxu0 0.0
        %1146 = vmatprep.subr.mxu0 0.0
        %1147 = vmatpush2.msra.mxu0 0.0
        %1148 = vmatprep.subr.mxu0 0.0
        %1149 = vmatpush2.msra.mxu0 0.0
        %1150 = vmatprep.subr.mxu0 0.0
        %1151 = vmatpush2.msra.mxu0 0.0
        %1152 = vmatprep.subr.mxu0 0.0
        %1153 = vmatpush2.msra.mxu0 0.0
        %1154 = vmatprep.mubr.f32.mxu0 0.0
        %1155 = vmatmul.mubr.f32.gmra.mxu0 %v1081
        %v1156 = vpop.f32.mrf.mxu0
        %v1157 = vadd.f32 0.0, %v1156
        %v1158 = vpop.f32.mrf.mxu0
        %1159 = vmatprep.mubr.f32.mxu0 0.0
        %1160 = vmatmul.mubr.f32.gmra.mxu0 %v1084
        %v1161 = vpop.f32.mrf.mxu0
        %v1162 = vadd.f32 0.0, %v1161
        %v1163 = vpop.f32.mrf.mxu0
        %1164 = vmatprep.mubr.f32.mxu0 0.0
        %1165 = vmatmul.mubr.f32.gmra.mxu0 %v1086
        %v1166 = vpop.f32.mrf.mxu0
        %v1167 = vadd.f32 0.0, %v1166
        %v1168 = vpop.f32.mrf.mxu0
        %1169 = vmatprep.mubr.f32.mxu0 0.0
        %1170 = vmatmul.mubr.f32.gmra.mxu0 %v1088
        %v1171 = vpop.f32.mrf.mxu0
        %v1172 = vadd.f32 0.0, %v1171
        %v1173 = vpop.f32.mrf.mxu0
        %1174 = vdwg.mxu0
        %1175 = vmatprep.subr.mxu0 0.0
        %1176 = vmatpush1.msra.mxu0 0.0
        %1177 = vmatprep.subr.mxu0 0.0
        %1178 = vmatpush1.msra.mxu0 0.0
        %1179 = vmatprep.subr.mxu0 0.0
        %1180 = vmatpush1.msra.mxu0 0.0
        %1181 = vmatprep.subr.mxu0 0.0
        %1182 = vmatpush1.msra.mxu0 0.0
        %1183 = vmatprep.subr.mxu0 0.0
        %1184 = vmatpush1.msra.mxu0 0.0
        %1185 = vmatprep.subr.mxu0 0.0
        %1186 = vmatpush1.msra.mxu0 0.0
        %1187 = vmatprep.subr.mxu0 0.0
        %1188 = vmatpush1.msra.mxu0 0.0
        %1189 = vmatprep.subr.mxu0 0.0
        %1190 = vmatpush1.msra.mxu0 0.0
        %1191 = vmatprep.subr.mxu0 0.0
        %1192 = vmatpush1.msra.mxu0 0.0
        %1193 = vmatprep.subr.mxu0 0.0
        %1194 = vmatpush1.msra.mxu0 0.0
        %1195 = vmatprep.subr.mxu0 0.0
        %1196 = vmatpush1.msra.mxu0 0.0
        %1197 = vmatprep.subr.mxu0 0.0
        %1198 = vmatpush1.msra.mxu0 0.0
        %1199 = vmatprep.subr.mxu0 0.0
        %1200 = vmatpush1.msra.mxu0 0.0
        %1201 = vmatprep.subr.mxu0 0.0
        %1202 = vmatpush1.msra.mxu0 0.0
        %1203 = vmatprep.subr.mxu0 0.0
        %1204 = vmatpush1.msra.mxu0 %v697
        %1205 = vmatprep.subr.mxu0 0.0
        %1206 = vmatpush1.msra.mxu0 %v696
        %1207 = vmatprep.subr.mxu0 0.0
        %1208 = vmatpush2.msra.mxu0 0.0
        %1209 = vmatprep.subr.mxu0 0.0
        %1210 = vmatpush2.msra.mxu0 0.0
        %1211 = vmatprep.subr.mxu0 0.0
        %1212 = vmatpush2.msra.mxu0 0.0
        %1213 = vmatprep.subr.mxu0 0.0
        %1214 = vmatpush2.msra.mxu0 0.0
        %1215 = vmatprep.subr.mxu0 0.0
        %1216 = vmatpush2.msra.mxu0 0.0
        %1217 = vmatprep.subr.mxu0 0.0
        %1218 = vmatpush2.msra.mxu0 0.0
        %1219 = vmatprep.subr.mxu0 0.0
        %1220 = vmatpush2.msra.mxu0 0.0
        %1221 = vmatprep.subr.mxu0 0.0
        %1222 = vmatpush2.msra.mxu0 0.0
        %1223 = vmatprep.subr.mxu0 0.0
        %1224 = vmatpush2.msra.mxu0 0.0
        %1225 = vmatprep.subr.mxu0 0.0
        %1226 = vmatpush2.msra.mxu0 0.0
        %1227 = vmatprep.subr.mxu0 0.0
        %1228 = vmatpush2.msra.mxu0 0.0
        %1229 = vmatprep.subr.mxu0 0.0
        %1230 = vmatpush2.msra.mxu0 0.0
        %1231 = vmatprep.subr.mxu0 0.0
        %1232 = vmatpush2.msra.mxu0 0.0
        %1233 = vmatprep.subr.mxu0 0.0
        %1234 = vmatpush2.msra.mxu0 0.0
        %1235 = vmatprep.subr.mxu0 0.0
        %1236 = vmatpush2.msra.mxu0 0.0
        %1237 = vmatprep.subr.mxu0 0.0
        %1238 = vmatpush2.msra.mxu0 0.0
        %1239 = vmatprep.mubr.f32.mxu0 0.0
        %1240 = vmatmul.mubr.f32.gmra.mxu0 %v1081
        %v1241 = vpop.f32.mrf.mxu0
        %v1242 = vadd.f32 0.0, %v1241
        %v1243 = vpop.f32.mrf.mxu0
        %1244 = vmatprep.mubr.f32.mxu0 0.0
        %1245 = vmatmul.mubr.f32.gmra.mxu0 %v1084
        %v1246 = vpop.f32.mrf.mxu0
        %v1247 = vadd.f32 0.0, %v1246
        %v1248 = vpop.f32.mrf.mxu0
        %1249 = vmatprep.mubr.f32.mxu0 0.0
        %1250 = vmatmul.mubr.f32.gmra.mxu0 %v1086
        %v1251 = vpop.f32.mrf.mxu0
        %v1252 = vadd.f32 0.0, %v1251
        %v1253 = vpop.f32.mrf.mxu0
        %1254 = vmatprep.mubr.f32.mxu0 0.0
        %1255 = vmatmul.mubr.f32.gmra.mxu0 %v1088
        %v1256 = vpop.f32.mrf.mxu0
        %v1257 = vadd.f32 0.0, %v1256
        %v1258 = vpop.f32.mrf.mxu0
        %1259 = vdwg.mxu0
        %v1260 = vadd.f32 %v1157, %v1252
        %v1261 = vadd.f32 %v1162, %v1257
        %v1262 = vsub.f32 %v1167, %v1242
        %v1263 = vsub.f32 %v1172, %v1247
        %v1264 = vld [vmem:[%s422] sm:$0xff]
        %v1265 = vld [vmem:[%s422 + $0x8] sm:$0xff]
        %v1266 = vmul.f32 %v1260, %v452
        %v1267 = vmul.f32 %v1261, %v453
        %v1268 = vmul.f32 %v1262, %v455
        %v1269 = vmul.f32 %v1263, %v456
        %v1270 = vadd.f32 %v1266, %v1268
        %v1271 = vadd.f32 %v1267, %v1269
        %v1272 = vadd.f32 %v1264, %v1270
        %v1273 = vadd.f32 %v1265, %v1271
        %1274 = vst.msk [vmem:[%s422] sm:$0xff] %vm510, %v1272
        %1275 = vst.msk [vmem:[%s422 + $0x8] sm:$0xff] %vm510, %v1273
        %s1276 = scalar_lea.vmem %s422, 32 [#allocation13]
        %v1277 = vld [vmem:[%s1276] sm:$0xff]
        %v1278 = vld [vmem:[%s1276 + $0x8] sm:$0xff]
        %v1279 = vmul.f32 %v1262, %v452
        %v1280 = vmul.f32 %v1263, %v453
        %v1281 = vmul.f32 %v1260, %v455
        %v1282 = vmul.f32 %v1261, %v456
        %v1283 = vsub.f32 %v1279, %v1281
        %v1284 = vsub.f32 %v1280, %v1282
        %v1285 = vadd.f32 %v1277, %v1283
        %v1286 = vadd.f32 %v1278, %v1284
        %1287 = vst.msk [vmem:[%s1276] sm:$0xff] %vm510, %v1285
        %1288 = vst.msk [vmem:[%s1276 + $0x8] sm:$0xff] %vm510, %v1286
        %v1289 = vld [vmem:[%s475] sm:$0xff]
        %v1290 = vld [vmem:[%s475 + $0x8] sm:$0xff]
        %v1291 = vld [vmem:[%s478] sm:$0xff]
        %v1292 = vld [vmem:[%s478 + $0x8] sm:$0xff]
        %s1293 = scalar_lea.vmem %s422, 16 [#allocation13]
        %v1294 = vld [vmem:[%s1293] sm:$0xff]
        %v1295 = vld [vmem:[%s1293 + $0x8] sm:$0xff]
        %v1296 = vmul.f32 %v1260, %v1289
        %v1297 = vmul.f32 %v1261, %v1290
        %v1298 = vmul.f32 %v1262, %v1291
        %v1299 = vmul.f32 %v1263, %v1292
        %v1300 = vadd.f32 %v1296, %v1298
        %v1301 = vadd.f32 %v1297, %v1299
        %v1302 = vadd.f32 %v1294, %v1300
        %v1303 = vadd.f32 %v1295, %v1301
        %1304 = vst.msk [vmem:[%s1293] sm:$0xff] %vm510, %v1302
        %1305 = vst.msk [vmem:[%s1293 + $0x8] sm:$0xff] %vm510, %v1303
        %s1306 = scalar_lea.vmem %s422, 48 [#allocation13]
        %v1307 = vld [vmem:[%s1306] sm:$0xff]
        %v1308 = vld [vmem:[%s1306 + $0x8] sm:$0xff]
        %v1309 = vmul.f32 %v1262, %v1289
        %v1310 = vmul.f32 %v1263, %v1290
        %v1311 = vmul.f32 %v1260, %v1291
        %v1312 = vmul.f32 %v1261, %v1292
        %v1313 = vsub.f32 %v1309, %v1311
        %v1314 = vsub.f32 %v1310, %v1312
        %v1315 = vadd.f32 %v1307, %v1313
        %v1316 = vadd.f32 %v1308, %v1314
        %1317 = vst.msk [vmem:[%s1306] sm:$0xff] %vm510, %v1315
        %1318 = vst.msk [vmem:[%s1306 + $0x8] sm:$0xff] %vm510, %v1316
        %s1319 = sand.u32 %s213, 1
        %s1320 = scalar_lea.sflag [#allocation4], %s1319
        %s1321 = sand.u32 %s213, 1
        %s1322 = smul.addr %s1321, 64
        %s1323 = scalar_lea.vmem [#allocation13], %s1322
        // Predicated region
        $region73: #{tpu_custom_call.1} parent=43 // pred_check
          %p1324 = pneg %p223
        $region74: #{tpu_custom_call.1} parent=43 // pred_check_branch
          %1326 = sbr.rel (%p1324) target = $region76
        $region75: #{tpu_custom_call.1} parent=43 // pred_region
          %s1328 = ssub.s32 1024, 1024
          %1329 = vsyncadd %s1320, %s1328
          %s1330 = smul.addr %s31, 8
          %s1331 = smul.addr %s32, 16
          %s1332 = sadd.s32 %s1330, %s1331
          %s1333 = smul.addr %s1332, 128
          %s1334 = scalar_lea.hbm %s6, %s1333
          %s1335 = sshll.u32 %s1323, 4
          %s1336 = int_to_ptr.vmem [resolvable:$true] %s1335
          %1341 = dma.vmem_to_hbm [thread:$0]  %s1336, 1024, %s1334, %s1320, 128, 128, 8
        $region76: #{tpu_custom_call.1} parent=43 // pred_fallthru
          _
      $region44: #{tpu_custom_call.1} parent=5 // pred_fallthru
        _
      %p1342 = scmp.le.s32.totalorder 2, %s21
      // Predicated region
      $region77: #{tpu_custom_call.1} parent=5 // pred_check
        %p1343 = pneg %p1342
      $region78: #{tpu_custom_call.1} parent=5 // pred_check_branch
        %1345 = sbr.rel (%p1343) target = $region80
      $region79: #{tpu_custom_call.1} parent=5 // pred_region
        %s1346 = ssub.s32 %s21, 2
        // Predicated region
        $region81: #{tpu_custom_call.1} parent=79 // pred_check
          %p1347 = pneg %p229
        $region82: #{tpu_custom_call.1} parent=79 // pred_check_branch
          %1349 = sbr.rel (%p1347) target = $region84
        $region83: #{tpu_custom_call.1} parent=79 // pred_region
          %s1350 = sand.u32 %s214, 1
          %s1351 = scalar_lea.sflag [#allocation4], %s1350
          %s1352 = sand.u32 %s214, 1
          %s1353 = smul.addr %s1352, 64
          %s1354 = scalar_lea.vmem [#allocation13], %s1353
          %1355 = dma.done %s1351, 1024
        $region84: #{tpu_custom_call.1} parent=79 // pred_fallthru
          _
      $region80: #{tpu_custom_call.1} parent=5 // pred_fallthru
        _
    $region6: #{tpu_custom_call.1} parent=1 // loop_footer
      %s25 = sadd.s32 1, %s21
    $region7: #{tpu_custom_call.1} parent=1 // loop_footer_branch
      %20 = sbr.rel target = $region3
    $region8: #{tpu_custom_call.1} parent=1 // loop_exit
      _
    %1356 = vsyncpa [#allocation3], 1
    %s1357 = scalar_lea.sflag [#allocation3], 1
    %1358 = vsyncpa %s1357, 1
    %1359 = vsyncpa [#allocation6], 1
    %s1360 = scalar_lea.sflag [#allocation6], 1
    %1361 = vsyncpa %s1360, 1
    %1362 = vsyncpa [#allocation9], 1
    %1363 = vsyncpa [#allocation12], 1
    %1364 = vsyncpa [#allocation4], 1
    %s1365 = scalar_lea.sflag [#allocation4], 1
    %1366 = vsyncpa %s1365, 1

// kernel: tpu_custom_call.1
$region0: #{tpu_custom_call.1}
  #allocation0 [shape = 'u32[]', space=smem, size = 0x4, offset = 0x4, fixed_abs, tag = 'smem constant byte address 0x4 - core index']
  #allocation1 [shape = 'u32[144,128]{1,0:T(1,128)}', space=vmem, size = 0x12000, scoped, tag = 'internal scratch']
  %s0 = inlined_call_operand.hbm [shape: f32[2,2,2,16,16], index: 0, kind: input, shape index: {}]
  %s1 = inlined_call_operand.hbm [shape: f32[2,4,2,2,16,16], index: 1, kind: input, shape index: {}]
  %s2 = inlined_call_operand.hbm [shape: f32[2,4,2,16,16], index: 2, kind: input, shape index: {}]
  %s3 = inlined_call_operand.hbm [shape: f32[2,16,16], index: 3, kind: input, shape index: {}]
  %s4 = inlined_call_operand.hbm [shape: f32[4,16,16], index: 4, kind: input, shape index: {}]
  %s5 = inlined_call_operand.hbm [shape: f32[4,16,16], index: 5, kind: input, shape index: {}]
  %s6 = inlined_call_operand.hbm [shape: f32[1,2,2,2,16,16], index: 6, kind: output, shape index: {}]
  %s7 = sld [smem:[#allocation0]]
  $region85: #{tpu_custom_call.1} parent=0
    _
  %s9 = ssub.s32 1, %s7
  %s10 = scalar_select 0, %s9, %s7
  $region1: #{tpu_custom_call.1} parent=0
    #allocation2 [shape = 'u8[65536]{0}', space=vmem, size = 0x10000, scoped, tag = 'input window, operand 0']
    #allocation3 [shape = 's32[2]{0}', space=sflag, size = 0x8, scoped, tag = 'scoped memory for tpu_custom_call.1']
    #allocation4 [shape = 's32[2]{0}', space=sflag, size = 0x8, scoped, tag = 'scoped memory for tpu_custom_call.1']
    #allocation5 [shape = 'u8[65536]{0}', space=vmem, size = 0x10000, scoped, tag = 'input window, operand 1']
    #allocation6 [shape = 's32[2]{0}', space=sflag, size = 0x8, scoped, tag = 'scoped memory for tpu_custom_call.1']
    #allocation7 [shape = 'u8[32768]{0}', space=vmem, size = 0x8000, scoped, tag = 'input window, operand 2']
    #allocation8 [shape = 'u8[16384]{0}', space=vmem, size = 0x4000, scoped, tag = 'input window, operand 3']
    #allocation9 [shape = 's32[2]{0}', space=sflag, size = 0x8, scoped, tag = 'scoped memory for tpu_custom_call.1']
    #allocation10 [shape = 'u8[32768]{0}', space=vmem, size = 0x8000, scoped, tag = 'input window, operand 4, single buffered']
    #allocation11 [shape = 'u8[32768]{0}', space=vmem, size = 0x8000, scoped, tag = 'input window, operand 5, single buffered']
    #allocation12 [shape = 's32[1]{0}', space=sflag, size = 0x4, scoped, tag = 'scoped memory for tpu_custom_call.1']
    #allocation13 [shape = 'u8[65536]{0}', space=vmem, size = 0x10000, scoped, tag = 'output window, operand 0']
    %11 = vsyncpa [#allocation3], 0
    %s12 = scalar_lea.sflag [#allocation3], 1
    %13 = vsyncpa %s12, 0
    %14 = vsyncpa [#allocation6], 0
    %s15 = scalar_lea.sflag [#allocation6], 1
    %16 = vsyncpa %s15, 0
    %17 = vsyncpa [#allocation9], 0
    %s18 = scalar_lea.sflag [#allocation9], 1
    %19 = vsyncpa %s18, 0
    %20 = vsyncpa [#allocation12], 0
    %21 = vsyncpa [#allocation4], 0
    %s22 = scalar_lea.sflag [#allocation4], 1
    %23 = vsyncpa %s22, 0
    loop: start=0, step=1, limit=10
    $region2: #{tpu_custom_call.1} parent=1 // loop_pre_header
      _
    $region3: #{tpu_custom_call.1} parent=1 // loop_header
      %s25 = sphi 0, %s29
      %p26 = scmp.ge.s32.totalorder %s25, 10
      %s32 = sphi 0, %s51
      %s33 = sphi 0, %s47
      %s34 = sphi 0, %s43
      %s35 = sphi 0, %s32
      %s36 = sphi 0, %s33
      %s37 = sphi 0, %s34
      %s38 = sphi 0, %s35
      %s39 = sphi 0, %s36
      %s40 = sphi 0, %s37
      %s54 = sphi 0, %s56
      %s57 = sphi 0, %s54
      %s58 = sphi 0, %s57
      %s74 = sphi 0, %s58
      %s86 = sphi 0, %s88
      %s89 = sphi 0, %s86
      %s90 = sphi 0, %s89
      %s106 = sphi 0, %s90
      %s118 = sphi 0, %s120
      %s121 = sphi 0, %s118
      %s122 = sphi 0, %s121
      %s138 = sphi 0, %s122
      %s144 = sphi 0, %s146
      %s147 = sphi 0, %s144
      %s148 = sphi 0, %s147
      %s164 = sphi 0, %s148
      %s168 = sphi 0, %s168
      %s170 = sphi 0, %s168
      %s171 = sphi 0, %s170
      %s185 = sphi 0, %s171
      %s189 = sphi 0, %s189
      %s191 = sphi 0, %s189
      %s192 = sphi 0, %s191
      %s206 = sphi 0, %s192
      %s214 = sphi 0, %s216
      %s217 = sphi 0, %s214
      %s218 = sphi 0, %s217
      %s234 = sphi 0, %s218
    $region4: #{tpu_custom_call.1} parent=1 // loop_header_branch
      %28 = sbr.rel (%p26) target = $region8
    $region5: #{tpu_custom_call.1} parent=1 // loop_body
      %s30 = ssub.s32 %s25, 1
      %s31 = ssub.s32 %s25, 2
      %s41 = sadd.s32 1, %s34
      %p42 = scmp.ge.s32.totalorder %s41, 4
      %s43 = scalar_select %p42, 0, %s41
      %s44 = sadd.s32 1, %s33
      %s45 = scalar_select %p42, %s44, %s33
      %p46 = scmp.ge.s32.totalorder %s45, 1
      %s47 = scalar_select %p46, 0, %s45
      %s48 = sadd.s32 1, %s32
      %s49 = scalar_select %p46, %s48, %s32
      %p50 = scmp.ge.s32.totalorder %s49, 2
      %s51 = scalar_select %p50, 0, %s49
      %s52 = ssub.s32 %s32, %s51
      %p53 = scmp.eq.s32.totalorder %s52, 0
      %s55 = sadd.s32 %s54, 1
      %s56 = scalar_select %p53, %s54, %s55
      %p59 = pneg %p53
      %p60 = scmp.eq.s32.totalorder %s25, 7
      %p61 = por %p59, %p60
      %p62 = scmp.ne.s32.totalorder %s54, %s57
      %p63 = scmp.eq.s32.totalorder %s25, 0
      %p64 = por %p62, %p63
      %p65 = scmp.ne.s32.totalorder %s54, %s57
      %p66 = scmp.eq.s32.totalorder %s30, 7
      %p67 = por %p65, %p66
      %p68 = scmp.ne.s32.totalorder %s57, %s58
      %p69 = scmp.eq.s32.totalorder %s30, 0
      %p70 = por %p68, %p69
      %p71 = scmp.ne.s32.totalorder %s57, %s58
      %p72 = scmp.eq.s32.totalorder %s31, 7
      %p73 = por %p71, %p72
      %p75 = scmp.ne.s32.totalorder %s58, %s74
      %p76 = scmp.eq.s32.totalorder %s31, 0
      %p77 = por %p75, %p76
      %s78 = smul.u32 %s33, 4
      %s79 = sadd.s32 %s78, %s34
      %s80 = smul.u32 %s47, 4
      %s81 = sadd.s32 %s80, %s43
      %s82 = ssub.s32 %s32, %s51
      %s83 = ssub.s32 %s79, %s81
      %s84 = sor.u32 %s82, %s83
      %p85 = scmp.eq.s32.totalorder %s84, 0
      %s87 = sadd.s32 %s86, 1
      %s88 = scalar_select %p85, %s86, %s87
      %p91 = pneg %p85
      %p92 = scmp.eq.s32.totalorder %s25, 7
      %p93 = por %p91, %p92
      %p94 = scmp.ne.s32.totalorder %s86, %s89
      %p95 = scmp.eq.s32.totalorder %s25, 0
      %p96 = por %p94, %p95
      %p97 = scmp.ne.s32.totalorder %s86, %s89
      %p98 = scmp.eq.s32.totalorder %s30, 7
      %p99 = por %p97, %p98
      %p100 = scmp.ne.s32.totalorder %s89, %s90
      %p101 = scmp.eq.s32.totalorder %s30, 0
      %p102 = por %p100, %p101
      %p103 = scmp.ne.s32.totalorder %s89, %s90
      %p104 = scmp.eq.s32.totalorder %s31, 7
      %p105 = por %p103, %p104
      %p107 = scmp.ne.s32.totalorder %s90, %s106
      %p108 = scmp.eq.s32.totalorder %s31, 0
      %p109 = por %p107, %p108
      %s110 = smul.u32 %s33, 4
      %s111 = sadd.s32 %s110, %s34
      %s112 = smul.u32 %s47, 4
      %s113 = sadd.s32 %s112, %s43
      %s114 = ssub.s32 %s32, %s51
      %s115 = ssub.s32 %s111, %s113
      %s116 = sor.u32 %s114, %s115
      %p117 = scmp.eq.s32.totalorder %s116, 0
      %s119 = sadd.s32 %s118, 1
      %s120 = scalar_select %p117, %s118, %s119
      %p123 = pneg %p117
      %p124 = scmp.eq.s32.totalorder %s25, 7
      %p125 = por %p123, %p124
      %p126 = scmp.ne.s32.totalorder %s118, %s121
      %p127 = scmp.eq.s32.totalorder %s25, 0
      %p128 = por %p126, %p127
      %p129 = scmp.ne.s32.totalorder %s118, %s121
      %p130 = scmp.eq.s32.totalorder %s30, 7
      %p131 = por %p129, %p130
      %p132 = scmp.ne.s32.totalorder %s121, %s122
      %p133 = scmp.eq.s32.totalorder %s30, 0
      %p134 = por %p132, %p133
      %p135 = scmp.ne.s32.totalorder %s121, %s122
      %p136 = scmp.eq.s32.totalorder %s31, 7
      %p137 = por %p135, %p136
      %p139 = scmp.ne.s32.totalorder %s122, %s138
      %p140 = scmp.eq.s32.totalorder %s31, 0
      %p141 = por %p139, %p140
      %s142 = ssub.s32 %s32, %s51
      %p143 = scmp.eq.s32.totalorder %s142, 0
      %s145 = sadd.s32 %s144, 1
      %s146 = scalar_select %p143, %s144, %s145
      %p149 = pneg %p143
      %p150 = scmp.eq.s32.totalorder %s25, 7
      %p151 = por %p149, %p150
      %p152 = scmp.ne.s32.totalorder %s144, %s147
      %p153 = scmp.eq.s32.totalorder %s25, 0
      %p154 = por %p152, %p153
      %p155 = scmp.ne.s32.totalorder %s144, %s147
      %p156 = scmp.eq.s32.totalorder %s30, 7
      %p157 = por %p155, %p156
      %p158 = scmp.ne.s32.totalorder %s147, %s148
      %p159 = scmp.eq.s32.totalorder %s30, 0
      %p160 = por %p158, %p159
      %p161 = scmp.ne.s32.totalorder %s147, %s148
      %p162 = scmp.eq.s32.totalorder %s31, 7
      %p163 = por %p161, %p162
      %p165 = scmp.ne.s32.totalorder %s148, %s164
      %p166 = scmp.eq.s32.totalorder %s31, 0
      %p167 = por %p165, %p166
      %s169 = sadd.s32 %s168, 1
      %p172 = scmp.eq.s32.totalorder %s25, 7
      %p173 = scmp.ne.s32.totalorder %s168, %s170
      %p174 = scmp.eq.s32.totalorder %s25, 0
      %p175 = por %p173, %p174
      %p176 = scmp.ne.s32.totalorder %s168, %s170
      %p177 = scmp.eq.s32.totalorder %s30, 7
      %p178 = por %p176, %p177
      %p179 = scmp.ne.s32.totalorder %s170, %s171
      %p180 = scmp.eq.s32.totalorder %s30, 0
      %p181 = por %p179, %p180
      %p182 = scmp.ne.s32.totalorder %s170, %s171
      %p183 = scmp.eq.s32.totalorder %s31, 7
      %p184 = por %p182, %p183
      %p186 = scmp.ne.s32.totalorder %s171, %s185
      %p187 = scmp.eq.s32.totalorder %s31, 0
      %p188 = por %p186, %p187
      %s190 = sadd.s32 %s189, 1
      %p193 = scmp.eq.s32.totalorder %s25, 7
      %p194 = scmp.ne.s32.totalorder %s189, %s191
      %p195 = scmp.eq.s32.totalorder %s25, 0
      %p196 = por %p194, %p195
      %p197 = scmp.ne.s32.totalorder %s189, %s191
      %p198 = scmp.eq.s32.totalorder %s30, 7
      %p199 = por %p197, %p198
      %p200 = scmp.ne.s32.totalorder %s191, %s192
      %p201 = scmp.eq.s32.totalorder %s30, 0
      %p202 = por %p200, %p201
      %p203 = scmp.ne.s32.totalorder %s191, %s192
      %p204 = scmp.eq.s32.totalorder %s31, 7
      %p205 = por %p203, %p204
      %p207 = scmp.ne.s32.totalorder %s192, %s206
      %p208 = scmp.eq.s32.totalorder %s31, 0
      %p209 = por %p207, %p208
      %s210 = ssub.s32 %s33, %s47
      %s211 = ssub.s32 %s32, %s51
      %s212 = sor.u32 %s210, %s211
      %p213 = scmp.eq.s32.totalorder %s212, 0
      %s215 = sadd.s32 %s214, 1
      %s216 = scalar_select %p213, %s214, %s215
      %p219 = pneg %p213
      %p220 = scmp.eq.s32.totalorder %s25, 7
      %p221 = por %p219, %p220
      %p222 = scmp.ne.s32.totalorder %s214, %s217
      %p223 = scmp.eq.s32.totalorder %s25, 0
      %p224 = por %p222, %p223
      %p225 = scmp.ne.s32.totalorder %s214, %s217
      %p226 = scmp.eq.s32.totalorder %s30, 7
      %p227 = por %p225, %p226
      %p228 = scmp.ne.s32.totalorder %s217, %s218
      %p229 = scmp.eq.s32.totalorder %s30, 0
      %p230 = por %p228, %p229
      %p231 = scmp.ne.s32.totalorder %s217, %s218
      %p232 = scmp.eq.s32.totalorder %s31, 7
      %p233 = por %p231, %p232
      %p235 = scmp.ne.s32.totalorder %s218, %s234
      %p236 = scmp.eq.s32.totalorder %s31, 0
      %p237 = por %p235, %p236
      %p238 = scmp.le.s32.totalorder 1, %s25
      %p239 = scmp.lt.s32.totalorder %s25, 9
      %p240 = pnand %p238, %p239
      %p241 = pneg %p240
      // Predicated region
      $region9: #{tpu_custom_call.1} parent=5 // pred_check
        _
      $region10: #{tpu_custom_call.1} parent=5 // pred_check_branch
        %243 = sbr.rel (%p240) target = $region12
      $region11: #{tpu_custom_call.1} parent=5 // pred_region
        %s244 = ssub.s32 %s25, 1
        // Predicated region
        $region13: #{tpu_custom_call.1} parent=11 // pred_check
          %p245 = pneg %p181
        $region14: #{tpu_custom_call.1} parent=11 // pred_check_branch
          %247 = sbr.rel (%p245) target = $region16
        $region15: #{tpu_custom_call.1} parent=11 // pred_region
          %s249 = ssub.s32 1024, 1024
          %250 = vsyncadd [#allocation9], %s249
          %s251 = sshll.u32 [#allocation10], 4
          %s252 = int_to_ptr.vmem [resolvable:$true] %s251
          %257 = dma.hbm_to_vmem [thread:$0]  %s4, 1024, %s252, [#allocation9], 128, 128, 8
        $region16: #{tpu_custom_call.1} parent=11 // pred_fallthru
          _
        // Predicated region
        $region17: #{tpu_custom_call.1} parent=11 // pred_check
          %p258 = pneg %p202
        $region18: #{tpu_custom_call.1} parent=11 // pred_check_branch
          %260 = sbr.rel (%p258) target = $region20
        $region19: #{tpu_custom_call.1} parent=11 // pred_region
          %s262 = ssub.s32 1024, 1024
          %263 = vsyncadd [#allocation12], %s262
          %s264 = sshll.u32 [#allocation11], 4
          %s265 = int_to_ptr.vmem [resolvable:$true] %s264
          %270 = dma.hbm_to_vmem [thread:$0]  %s5, 1024, %s265, [#allocation12], 128, 128, 8
        $region20: #{tpu_custom_call.1} parent=11 // pred_fallthru
          _
      $region12: #{tpu_custom_call.1} parent=5 // pred_fallthru
        _
      %p271 = scmp.lt.s32.totalorder %s25, 8
      // Predicated region
      $region21: #{tpu_custom_call.1} parent=5 // pred_check
        %p272 = pneg %p271
      $region22: #{tpu_custom_call.1} parent=5 // pred_check_branch
        %274 = sbr.rel (%p272) target = $region24
      $region23: #{tpu_custom_call.1} parent=5 // pred_region
        // Predicated region
        $region25: #{tpu_custom_call.1} parent=23 // pred_check
          %p275 = pneg %p64
        $region26: #{tpu_custom_call.1} parent=23 // pred_check_branch
          %277 = sbr.rel (%p275) target = $region28
        $region27: #{tpu_custom_call.1} parent=23 // pred_region
          %s278 = sand.u32 %s54, 1
          %s279 = scalar_lea.sflag [#allocation3], %s278
          %s280 = sand.u32 %s54, 1
          %s281 = smul.addr %s280, 64
          %s282 = scalar_lea.vmem [#allocation2], %s281
          %s284 = ssub.s32 1024, 1024
          %285 = vsyncadd %s279, %s284
          %s286 = smul.addr %s32, 8
          %s287 = smul.addr %s286, 128
          %s288 = scalar_lea.hbm %s0, %s287
          %s289 = sshll.u32 %s282, 4
          %s290 = int_to_ptr.vmem [resolvable:$true] %s289
          %295 = dma.hbm_to_vmem [thread:$0]  %s288, 1024, %s290, %s279, 128, 128, 8
        $region28: #{tpu_custom_call.1} parent=23 // pred_fallthru
          _
        // Predicated region
        $region29: #{tpu_custom_call.1} parent=23 // pred_check
          %p296 = pneg %p96
        $region30: #{tpu_custom_call.1} parent=23 // pred_check_branch
          %298 = sbr.rel (%p296) target = $region32
        $region31: #{tpu_custom_call.1} parent=23 // pred_region
          %s299 = sand.u32 %s25, 1
          %s300 = scalar_lea.sflag [#allocation6], %s299
          %s301 = sand.u32 %s86, 1
          %s302 = smul.addr %s301, 64
          %s303 = scalar_lea.vmem [#allocation5], %s302
          %s304 = smul.u32 %s33, 4
          %s305 = sadd.s32 %s304, %s34
          %s307 = ssub.s32 1024, 1024
          %308 = vsyncadd %s300, %s307
          %s309 = smul.addr %s305, 8
          %s310 = smul.addr %s32, 32
          %s311 = sadd.s32 %s309, %s310
          %s312 = smul.addr %s311, 128
          %s313 = scalar_lea.hbm %s1, %s312
          %s314 = sshll.u32 %s303, 4
          %s315 = int_to_ptr.vmem [resolvable:$true] %s314
          %320 = dma.hbm_to_vmem [thread:$0]  %s313, 1024, %s315, %s300, 128, 128, 8
        $region32: #{tpu_custom_call.1} parent=23 // pred_fallthru
          _
        // Predicated region
        $region33: #{tpu_custom_call.1} parent=23 // pred_check
          %p321 = pneg %p128
        $region34: #{tpu_custom_call.1} parent=23 // pred_check_branch
          %323 = sbr.rel (%p321) target = $region36
        $region35: #{tpu_custom_call.1} parent=23 // pred_region
          %s324 = sand.u32 %s25, 1
          %s325 = scalar_lea.sflag [#allocation6], %s324
          %s326 = sand.u32 %s118, 1
          %s327 = smul.addr %s326, 32
          %s328 = scalar_lea.vmem [#allocation7], %s327
          %s329 = smul.u32 %s33, 4
          %s330 = sadd.s32 %s329, %s34
          %s332 = ssub.s32 512, 512
          %333 = vsyncadd %s325, %s332
          %s334 = smul.addr %s330, 4
          %s335 = smul.addr %s32, 16
          %s336 = sadd.s32 %s334, %s335
          %s337 = smul.addr %s336, 128
          %s338 = scalar_lea.hbm %s2, %s337
          %s339 = sshll.u32 %s328, 4
          %s340 = int_to_ptr.vmem [resolvable:$true] %s339
          %345 = dma.hbm_to_vmem [thread:$0]  %s338, 512, %s340, %s325, 128, 128, 8
        $region36: #{tpu_custom_call.1} parent=23 // pred_fallthru
          _
        // Predicated region
        $region37: #{tpu_custom_call.1} parent=23 // pred_check
          %p346 = pneg %p154
        $region38: #{tpu_custom_call.1} parent=23 // pred_check_branch
          %348 = sbr.rel (%p346) target = $region40
        $region39: #{tpu_custom_call.1} parent=23 // pred_region
          %s349 = sand.u32 %s25, 1
          %s350 = scalar_lea.sflag [#allocation9], %s349
          %s351 = sand.u32 %s144, 1
          %s352 = smul.addr %s351, 16
          %s353 = scalar_lea.vmem [#allocation8], %s352
          %s355 = ssub.s32 256, 256
          %356 = vsyncadd %s350, %s355
          %s357 = smul.addr %s32, 2
          %s358 = smul.addr %s357, 128
          %s359 = scalar_lea.hbm %s3, %s358
          %s360 = sshll.u32 %s353, 4
          %s361 = int_to_ptr.vmem [resolvable:$true] %s360
          %366 = dma.hbm_to_vmem [thread:$0]  %s359, 256, %s361, %s350, 128, 128, 8
        $region40: #{tpu_custom_call.1} parent=23 // pred_fallthru
          _
      $region24: #{tpu_custom_call.1} parent=5 // pred_fallthru
        _
      %p367 = scmp.le.s32.totalorder 1, %s25
      %p368 = scmp.lt.s32.totalorder %s25, 9
      %p369 = pnand %p367, %p368
      %p370 = pneg %p369
      // Predicated region
      $region41: #{tpu_custom_call.1} parent=5 // pred_check
        _
      $region42: #{tpu_custom_call.1} parent=5 // pred_check_branch
        %372 = sbr.rel (%p369) target = $region44
      $region43: #{tpu_custom_call.1} parent=5 // pred_region
        %s373 = ssub.s32 %s25, 1
        %s374 = sand.u32 %s57, 1
        %s375 = scalar_lea.sflag [#allocation3], %s374
        %s376 = sand.u32 %s57, 1
        %s377 = smul.addr %s376, 64
        %s378 = scalar_lea.vmem [#allocation2], %s377
        // Predicated region
        $region45: #{tpu_custom_call.1} parent=43 // pred_check
          %p379 = pneg %p70
        $region46: #{tpu_custom_call.1} parent=43 // pred_check_branch
          %381 = sbr.rel (%p379) target = $region48
        $region47: #{tpu_custom_call.1} parent=43 // pred_region
          %382 = dma.done %s375, 1024
        $region48: #{tpu_custom_call.1} parent=43 // pred_fallthru
          _
        %s383 = sand.u32 %s30, 1
        %s384 = scalar_lea.sflag [#allocation6], %s383
        %s385 = sand.u32 %s89, 1
        %s386 = smul.addr %s385, 64
        %s387 = scalar_lea.vmem [#allocation5], %s386
        // Predicated region
        $region49: #{tpu_custom_call.1} parent=43 // pred_check
          %p388 = pneg %p102
        $region50: #{tpu_custom_call.1} parent=43 // pred_check_branch
          %390 = sbr.rel (%p388) target = $region52
        $region51: #{tpu_custom_call.1} parent=43 // pred_region
          %391 = dma.done %s384, 1024
        $region52: #{tpu_custom_call.1} parent=43 // pred_fallthru
          _
        %s392 = sand.u32 %s30, 1
        %s393 = scalar_lea.sflag [#allocation6], %s392
        %s394 = sand.u32 %s121, 1
        %s395 = smul.addr %s394, 32
        %s396 = scalar_lea.vmem [#allocation7], %s395
        // Predicated region
        $region53: #{tpu_custom_call.1} parent=43 // pred_check
          %p397 = pneg %p134
        $region54: #{tpu_custom_call.1} parent=43 // pred_check_branch
          %399 = sbr.rel (%p397) target = $region56
        $region55: #{tpu_custom_call.1} parent=43 // pred_region
          %400 = dma.done %s393, 512
        $region56: #{tpu_custom_call.1} parent=43 // pred_fallthru
          _
        %s401 = sand.u32 %s30, 1
        %s402 = scalar_lea.sflag [#allocation9], %s401
        %s403 = sand.u32 %s147, 1
        %s404 = smul.addr %s403, 16
        %s405 = scalar_lea.vmem [#allocation8], %s404
        // Predicated region
        $region57: #{tpu_custom_call.1} parent=43 // pred_check
          %p406 = pneg %p160
        $region58: #{tpu_custom_call.1} parent=43 // pred_check_branch
          %408 = sbr.rel (%p406) target = $region60
        $region59: #{tpu_custom_call.1} parent=43 // pred_region
          %409 = dma.done %s402, 256
        $region60: #{tpu_custom_call.1} parent=43 // pred_fallthru
          _
        // Predicated region
        $region61: #{tpu_custom_call.1} parent=43 // pred_check
          %p410 = pneg %p181
        $region62: #{tpu_custom_call.1} parent=43 // pred_check_branch
          %412 = sbr.rel (%p410) target = $region64
        $region63: #{tpu_custom_call.1} parent=43 // pred_region
          %413 = dma.done [#allocation9], 1024
        $region64: #{tpu_custom_call.1} parent=43 // pred_fallthru
          _
        // Predicated region
        $region65: #{tpu_custom_call.1} parent=43 // pred_check
          %p414 = pneg %p202
        $region66: #{tpu_custom_call.1} parent=43 // pred_check_branch
          %416 = sbr.rel (%p414) target = $region68
        $region67: #{tpu_custom_call.1} parent=43 // pred_region
          %417 = dma.done [#allocation12], 1024
        $region68: #{tpu_custom_call.1} parent=43 // pred_fallthru
          _
        %s418 = sand.u32 %s57, 1
        %s419 = scalar_lea.sflag [#allocation3], %s418
        %s420 = sand.u32 %s57, 1
        %s421 = smul.addr %s420, 64
        %s422 = scalar_lea.vmem [#allocation2], %s421
        %p423 = pneg %p70
        %p424 = pneg %p67
        %s425 = sand.u32 %s30, 1
        %s426 = scalar_lea.sflag [#allocation6], %s425
        %s427 = sand.u32 %s89, 1
        %s428 = smul.addr %s427, 64
        %s429 = scalar_lea.vmem [#allocation5], %s428
        %p430 = pneg %p102
        %p431 = pneg %p99
        %s432 = sand.u32 %s30, 1
        %s433 = scalar_lea.sflag [#allocation6], %s432
        %s434 = sand.u32 %s121, 1
        %s435 = smul.addr %s434, 32
        %s436 = scalar_lea.vmem [#allocation7], %s435
        %p437 = pneg %p134
        %p438 = pneg %p131
        %s439 = sand.u32 %s30, 1
        %s440 = scalar_lea.sflag [#allocation9], %s439
        %s441 = sand.u32 %s147, 1
        %s442 = smul.addr %s441, 16
        %s443 = scalar_lea.vmem [#allocation8], %s442
        %p444 = pneg %p160
        %p445 = pneg %p157
        %p446 = pneg %p181
        %p447 = pneg %p178
        %p448 = pneg %p202
        %p449 = pneg %p199
        %p450 = pneg %p230
        %p451 = pneg %p227
        %s452 = sand.u32 %s217, 1
        %s453 = scalar_lea.sflag [#allocation4], %s452
        %s454 = sand.u32 %s217, 1
        %s455 = smul.addr %s454, 64
        %s456 = scalar_lea.vmem [#allocation13], %s455
        %s457 = smul.u32 %s36, 4
        %s458 = sadd.s32 %s457, %s37
        %s459 = smul.u32 %s36, 4
        %s460 = sadd.s32 %s459, %s37
        %p461 = scmp.eq.s32.totalorder %s37, 0
        // Predicated region
        $region69: #{tpu_custom_call.1} parent=43 // pred_check
          %p462 = pneg %p461
        $region70: #{tpu_custom_call.1} parent=43 // pred_check_branch
          %464 = sbr.rel (%p462) target = $region72
        $region71: #{tpu_custom_call.1} parent=43 // pred_region
          %vm465 = vcmask 130048
          %466 = vst.msk [vmem:[%s456] sm:$0xff] %vm465, 0.0
          %467 = vst.msk [vmem:[%s456 + $0x8] sm:$0xff] %vm465, 0.0
          %468 = vst.msk [vmem:[%s456 + $0x10] sm:$0xff] %vm465, 0.0
          %469 = vst.msk [vmem:[%s456 + $0x18] sm:$0xff] %vm465, 0.0
          %470 = vst.msk [vmem:[%s456 + $0x20] sm:$0xff] %vm465, 0.0
          %471 = vst.msk [vmem:[%s456 + $0x28] sm:$0xff] %vm465, 0.0
          %472 = vst.msk [vmem:[%s456 + $0x30] sm:$0xff] %vm465, 0.0
          %473 = vst.msk [vmem:[%s456 + $0x38] sm:$0xff] %vm465, 0.0
        $region72: #{tpu_custom_call.1} parent=43 // pred_fallthru
          _
        %v474 = vld [vmem:[%s405] sm:$0xff]
        %v475 = vld [vmem:[%s405 + $0x8] sm:$0xff]
        %v476 = vld [vmem:[%s396] sm:$0xff]
        %v477 = vld [vmem:[%s396 + $0x8] sm:$0xff]
        %s478 = scalar_lea.vmem %s396, 16 [#allocation7]
        %v479 = vld [vmem:[%s478] sm:$0xff]
        %v480 = vld [vmem:[%s478 + $0x8] sm:$0xff]
        %v481 = vld [vmem:[%s378] sm:$0xff]
        %v482 = vld [vmem:[%s378 + $0x8] sm:$0xff]
        %s483 = scalar_lea.vmem %s378, 32 [#allocation2]
        %v484 = vld [vmem:[%s483] sm:$0xff]
        %v485 = vld [vmem:[%s483 + $0x8] sm:$0xff]
        %v486 = vld [vmem:[%s387] sm:$0xff]
        %v487 = vld [vmem:[%s387 + $0x8] sm:$0xff]
        %s488 = scalar_lea.vmem %s387, 32 [#allocation5]
        %v489 = vld [vmem:[%s488] sm:$0xff]
        %v490 = vld [vmem:[%s488 + $0x8] sm:$0xff]
        %v491 = vmul.f32 %v481, %v486
        %v492 = vmul.f32 %v482, %v487
        %v493 = vmul.f32 %v484, %v489
        %v494 = vmul.f32 %v485, %v490
        %v495 = vsub.f32 %v491, %v493
        %v496 = vsub.f32 %v492, %v494
        %v497 = vmul.f32 %v481, %v489
        %v498 = vmul.f32 %v482, %v490
        %v499 = vmul.f32 %v484, %v486
        %v500 = vmul.f32 %v485, %v487
        %v501 = vadd.f32 %v497, %v499
        %v502 = vadd.f32 %v498, %v500
        %s503 = scalar_lea.vmem %s378, 16 [#allocation2]
        %v504 = vld [vmem:[%s503] sm:$0xff]
        %v505 = vld [vmem:[%s503 + $0x8] sm:$0xff]
        %s506 = scalar_lea.vmem %s378, 48 [#allocation2]
        %v507 = vld [vmem:[%s506] sm:$0xff]
        %v508 = vld [vmem:[%s506 + $0x8] sm:$0xff]
        %s509 = scalar_lea.vmem %s387, 16 [#allocation5]
        %v510 = vld [vmem:[%s509] sm:$0xff]
        %v511 = vld [vmem:[%s509 + $0x8] sm:$0xff]
        %s512 = scalar_lea.vmem %s387, 48 [#allocation5]
        %v513 = vld [vmem:[%s512] sm:$0xff]
        %v514 = vld [vmem:[%s512 + $0x8] sm:$0xff]
        %v515 = vmul.f32 %v504, %v510
        %v516 = vmul.f32 %v505, %v511
        %v517 = vmul.f32 %v507, %v513
        %v518 = vmul.f32 %v508, %v514
        %v519 = vsub.f32 %v515, %v517
        %v520 = vsub.f32 %v516, %v518
        %v521 = vmul.f32 %v504, %v513
        %v522 = vmul.f32 %v505, %v514
        %v523 = vmul.f32 %v507, %v510
        %v524 = vmul.f32 %v508, %v511
        %v525 = vadd.f32 %v521, %v523
        %v526 = vadd.f32 %v522, %v524
        %v527 = vadd.f32 %v495, %v519
        %v528 = vadd.f32 %v496, %v520
        %v529 = vadd.f32 %v501, %v525
        %v530 = vadd.f32 %v502, %v526
        %v531 = vld [vmem:[#allocation10] sm:$0xff]
        %v532 = vld [vmem:[#allocation10 + $0x8] sm:$0xff]
        %s533 = scalar_lea.vmem [#allocation10], 16
        %v534 = vld [vmem:[%s533] sm:$0xff]
        %v535 = vld [vmem:[%s533 + $0x8] sm:$0xff]
        %538 = vrot.lane.b32.xlu0 %v529, 16
        %v539 = vpop.permute.xlu0 %538
        %540 = vrot.lane.b32.xlu0 %v530, 16
        %v541 = vpop.permute.xlu0 %540
        %vm544 = vcmask 130048
        %v545 = vsel %vm544, %v527, %v539
        %v546 = vsel %vm544, %v528, %v541
        %v548 = vsel %vm544, %v531, 0
        %v551 = vsel %vm544, %v532, 0
        %553 = vmatprep.subr.mxu0 0.0
        %554 = vmatpush1.msra.mxu0 0.0
        %555 = vmatprep.subr.mxu0 0.0
        %556 = vmatpush1.msra.mxu0 0.0
        %557 = vmatprep.subr.mxu0 0.0
        %558 = vmatpush1.msra.mxu0 0.0
        %559 = vmatprep.subr.mxu0 0.0
        %560 = vmatpush1.msra.mxu0 0.0
        %561 = vmatprep.subr.mxu0 0.0
        %562 = vmatpush1.msra.mxu0 0.0
        %563 = vmatprep.subr.mxu0 0.0
        %564 = vmatpush1.msra.mxu0 0.0
        %565 = vmatprep.subr.mxu0 0.0
        %566 = vmatpush1.msra.mxu0 0.0
        %567 = vmatprep.subr.mxu0 0.0
        %568 = vmatpush1.msra.mxu0 0.0
        %569 = vmatprep.subr.mxu0 0.0
        %570 = vmatpush1.msra.mxu0 0.0
        %571 = vmatprep.subr.mxu0 0.0
        %572 = vmatpush1.msra.mxu0 0.0
        %573 = vmatprep.subr.mxu0 0.0
        %574 = vmatpush1.msra.mxu0 0.0
        %575 = vmatprep.subr.mxu0 0.0
        %576 = vmatpush1.msra.mxu0 0.0
        %577 = vmatprep.subr.mxu0 0.0
        %578 = vmatpush1.msra.mxu0 0.0
        %579 = vmatprep.subr.mxu0 0.0
        %580 = vmatpush1.msra.mxu0 0.0
        %581 = vmatprep.subr.mxu0 0.0
        %582 = vmatpush1.msra.mxu0 %v546
        %583 = vmatprep.subr.mxu0 0.0
        %584 = vmatpush1.msra.mxu0 %v545
        %585 = vmatprep.subr.mxu0 0.0
        %586 = vmatpush2.msra.mxu0 0.0
        %587 = vmatprep.subr.mxu0 0.0
        %588 = vmatpush2.msra.mxu0 0.0
        %589 = vmatprep.subr.mxu0 0.0
        %590 = vmatpush2.msra.mxu0 0.0
        %591 = vmatprep.subr.mxu0 0.0
        %592 = vmatpush2.msra.mxu0 0.0
        %593 = vmatprep.subr.mxu0 0.0
        %594 = vmatpush2.msra.mxu0 0.0
        %595 = vmatprep.subr.mxu0 0.0
        %596 = vmatpush2.msra.mxu0 0.0
        %597 = vmatprep.subr.mxu0 0.0
        %598 = vmatpush2.msra.mxu0 0.0
        %599 = vmatprep.subr.mxu0 0.0
        %600 = vmatpush2.msra.mxu0 0.0
        %601 = vmatprep.subr.mxu0 0.0
        %602 = vmatpush2.msra.mxu0 0.0
        %603 = vmatprep.subr.mxu0 0.0
        %604 = vmatpush2.msra.mxu0 0.0
        %605 = vmatprep.subr.mxu0 0.0
        %606 = vmatpush2.msra.mxu0 0.0
        %607 = vmatprep.subr.mxu0 0.0
        %608 = vmatpush2.msra.mxu0 0.0
        %609 = vmatprep.subr.mxu0 0.0
        %610 = vmatpush2.msra.mxu0 0.0
        %611 = vmatprep.subr.mxu0 0.0
        %612 = vmatpush2.msra.mxu0 0.0
        %613 = vmatprep.subr.mxu0 0.0
        %614 = vmatpush2.msra.mxu0 0.0
        %615 = vmatprep.subr.mxu0 0.0
        %616 = vmatpush2.msra.mxu0 0.0
        %617 = vmatprep.mubr.f32.mxu0 0.0
        %618 = vmatmul.mubr.f32.gmra.mxu0 %v548
        %v619 = vpop.f32.mrf.mxu0
        %v620 = vadd.f32 0.0, %v619
        %v621 = vpop.f32.mrf.mxu0
        %622 = vmatprep.mubr.f32.mxu0 0.0
        %623 = vmatmul.mubr.f32.gmra.mxu0 %v551
        %v624 = vpop.f32.mrf.mxu0
        %v625 = vadd.f32 0.0, %v624
        %v626 = vpop.f32.mrf.mxu0
        %627 = vdwg.mxu0
        %v629 = vsel %vm544, %v534, 0
        %v632 = vsel %vm544, %v535, 0
        %634 = vmatprep.subr.mxu0 0.0
        %635 = vmatpush1.msra.mxu0 0.0
        %636 = vmatprep.subr.mxu0 0.0
        %637 = vmatpush1.msra.mxu0 0.0
        %638 = vmatprep.subr.mxu0 0.0
        %639 = vmatpush1.msra.mxu0 0.0
        %640 = vmatprep.subr.mxu0 0.0
        %641 = vmatpush1.msra.mxu0 0.0
        %642 = vmatprep.subr.mxu0 0.0
        %643 = vmatpush1.msra.mxu0 0.0
        %644 = vmatprep.subr.mxu0 0.0
        %645 = vmatpush1.msra.mxu0 0.0
        %646 = vmatprep.subr.mxu0 0.0
        %647 = vmatpush1.msra.mxu0 0.0
        %648 = vmatprep.subr.mxu0 0.0
        %649 = vmatpush1.msra.mxu0 0.0
        %650 = vmatprep.subr.mxu0 0.0
        %651 = vmatpush1.msra.mxu0 0.0
        %652 = vmatprep.subr.mxu0 0.0
        %653 = vmatpush1.msra.mxu0 0.0
        %654 = vmatprep.subr.mxu0 0.0
        %655 = vmatpush1.msra.mxu0 0.0
        %656 = vmatprep.subr.mxu0 0.0
        %657 = vmatpush1.msra.mxu0 0.0
        %658 = vmatprep.subr.mxu0 0.0
        %659 = vmatpush1.msra.mxu0 0.0
        %660 = vmatprep.subr.mxu0 0.0
        %661 = vmatpush1.msra.mxu0 0.0
        %662 = vmatprep.subr.mxu0 0.0
        %663 = vmatpush1.msra.mxu0 %v546
        %664 = vmatprep.subr.mxu0 0.0
        %665 = vmatpush1.msra.mxu0 %v545
        %666 = vmatprep.subr.mxu0 0.0
        %667 = vmatpush2.msra.mxu0 0.0
        %668 = vmatprep.subr.mxu0 0.0
        %669 = vmatpush2.msra.mxu0 0.0
        %670 = vmatprep.subr.mxu0 0.0
        %671 = vmatpush2.msra.mxu0 0.0
        %672 = vmatprep.subr.mxu0 0.0
        %673 = vmatpush2.msra.mxu0 0.0
        %674 = vmatprep.subr.mxu0 0.0
        %675 = vmatpush2.msra.mxu0 0.0
        %676 = vmatprep.subr.mxu0 0.0
        %677 = vmatpush2.msra.mxu0 0.0
        %678 = vmatprep.subr.mxu0 0.0
        %679 = vmatpush2.msra.mxu0 0.0
        %680 = vmatprep.subr.mxu0 0.0
        %681 = vmatpush2.msra.mxu0 0.0
        %682 = vmatprep.subr.mxu0 0.0
        %683 = vmatpush2.msra.mxu0 0.0
        %684 = vmatprep.subr.mxu0 0.0
        %685 = vmatpush2.msra.mxu0 0.0
        %686 = vmatprep.subr.mxu0 0.0
        %687 = vmatpush2.msra.mxu0 0.0
        %688 = vmatprep.subr.mxu0 0.0
        %689 = vmatpush2.msra.mxu0 0.0
        %690 = vmatprep.subr.mxu0 0.0
        %691 = vmatpush2.msra.mxu0 0.0
        %692 = vmatprep.subr.mxu0 0.0
        %693 = vmatpush2.msra.mxu0 0.0
        %694 = vmatprep.subr.mxu0 0.0
        %695 = vmatpush2.msra.mxu0 0.0
        %696 = vmatprep.subr.mxu0 0.0
        %697 = vmatpush2.msra.mxu0 0.0
        %698 = vmatprep.mubr.f32.mxu0 0.0
        %699 = vmatmul.mubr.f32.gmra.mxu0 %v629
        %v700 = vpop.f32.mrf.mxu0
        %v701 = vadd.f32 0.0, %v700
        %v702 = vpop.f32.mrf.mxu0
        %703 = vmatprep.mubr.f32.mxu0 0.0
        %704 = vmatmul.mubr.f32.gmra.mxu0 %v632
        %v705 = vpop.f32.mrf.mxu0
        %v706 = vadd.f32 0.0, %v705
        %v707 = vpop.f32.mrf.mxu0
        %708 = vdwg.mxu0
        %711 = vrot.lane.b32.xlu0 %v701, 112
        %v712 = vpop.permute.xlu0 %711
        %713 = vrot.lane.b32.xlu0 %v706, 112
        %v714 = vpop.permute.xlu0 %713
        %v717 = vsub.f32 %v620, %v712
        %v718 = vsub.f32 %v625, %v714
        %719 = vrot.lane.b32.xlu0 %v701, 16
        %v720 = vpop.permute.xlu0 %719
        %721 = vrot.lane.b32.xlu0 %v706, 16
        %v722 = vpop.permute.xlu0 %721
        %v725 = vadd.f32 %v620, %v720
        %v726 = vadd.f32 %v625, %v722
        %v727 = vld [vmem:[#allocation11] sm:$0xff]
        %v728 = vld [vmem:[#allocation11 + $0x8] sm:$0xff]
        %s729 = scalar_lea.vmem [#allocation11], 16
        %v730 = vld [vmem:[%s729] sm:$0xff]
        %v731 = vld [vmem:[%s729 + $0x8] sm:$0xff]
        %734 = vrot.lane.b32.xlu0 %v725, 112
        %v735 = vpop.permute.xlu0 %734
        %736 = vrot.lane.b32.xlu0 %v726, 112
        %v737 = vpop.permute.xlu0 %736
        %v739 = vsel %vm544, %v717, 0
        %v742 = vsel %vm544, %v718, 0
        %v744 = vsel %vm544, %v735, 0
        %v746 = vsel %vm544, %v737, 0
        %748 = vmatprep.subr.mxu0 0.0
        %749 = vmatpush1.msra.mxu0 0.0
        %750 = vmatprep.subr.mxu0 0.0
        %751 = vmatpush1.msra.mxu0 0.0
        %752 = vmatprep.subr.mxu0 0.0
        %753 = vmatpush1.msra.mxu0 0.0
        %754 = vmatprep.subr.mxu0 0.0
        %755 = vmatpush1.msra.mxu0 0.0
        %756 = vmatprep.subr.mxu0 0.0
        %757 = vmatpush1.msra.mxu0 0.0
        %758 = vmatprep.subr.mxu0 0.0
        %759 = vmatpush1.msra.mxu0 0.0
        %760 = vmatprep.subr.mxu0 0.0
        %761 = vmatpush1.msra.mxu0 0.0
        %762 = vmatprep.subr.mxu0 0.0
        %763 = vmatpush1.msra.mxu0 0.0
        %764 = vmatprep.subr.mxu0 0.0
        %765 = vmatpush1.msra.mxu0 0.0
        %766 = vmatprep.subr.mxu0 0.0
        %767 = vmatpush1.msra.mxu0 0.0
        %768 = vmatprep.subr.mxu0 0.0
        %769 = vmatpush1.msra.mxu0 0.0
        %770 = vmatprep.subr.mxu0 0.0
        %771 = vmatpush1.msra.mxu0 0.0
        %772 = vmatprep.subr.mxu0 0.0
        %773 = vmatpush1.msra.mxu0 0.0
        %774 = vmatprep.subr.mxu0 0.0
        %775 = vmatpush1.msra.mxu0 0.0
        %776 = vmatprep.subr.mxu0 0.0
        %777 = vmatpush1.msra.mxu0 %v728
        %778 = vmatprep.subr.mxu0 0.0
        %779 = vmatpush1.msra.mxu0 %v727
        %780 = vmatprep.subr.mxu0 0.0
        %781 = vmatpush2.msra.mxu0 0.0
        %782 = vmatprep.subr.mxu0 0.0
        %783 = vmatpush2.msra.mxu0 0.0
        %784 = vmatprep.subr.mxu0 0.0
        %785 = vmatpush2.msra.mxu0 0.0
        %786 = vmatprep.subr.mxu0 0.0
        %787 = vmatpush2.msra.mxu0 0.0
        %788 = vmatprep.subr.mxu0 0.0
        %789 = vmatpush2.msra.mxu0 0.0
        %790 = vmatprep.subr.mxu0 0.0
        %791 = vmatpush2.msra.mxu0 0.0
        %792 = vmatprep.subr.mxu0 0.0
        %793 = vmatpush2.msra.mxu0 0.0
        %794 = vmatprep.subr.mxu0 0.0
        %795 = vmatpush2.msra.mxu0 0.0
        %796 = vmatprep.subr.mxu0 0.0
        %797 = vmatpush2.msra.mxu0 0.0
        %798 = vmatprep.subr.mxu0 0.0
        %799 = vmatpush2.msra.mxu0 0.0
        %800 = vmatprep.subr.mxu0 0.0
        %801 = vmatpush2.msra.mxu0 0.0
        %802 = vmatprep.subr.mxu0 0.0
        %803 = vmatpush2.msra.mxu0 0.0
        %804 = vmatprep.subr.mxu0 0.0
        %805 = vmatpush2.msra.mxu0 0.0
        %806 = vmatprep.subr.mxu0 0.0
        %807 = vmatpush2.msra.mxu0 0.0
        %808 = vmatprep.subr.mxu0 0.0
        %809 = vmatpush2.msra.mxu0 0.0
        %810 = vmatprep.subr.mxu0 0.0
        %811 = vmatpush2.msra.mxu0 0.0
        %812 = vmatprep.mubr.f32.mxu0 0.0
        %813 = vmatmul.mubr.f32.gmra.mxu0 %v739
        %v814 = vpop.f32.mrf.mxu0
        %v815 = vadd.f32 0.0, %v814
        %v816 = vpop.f32.mrf.mxu0
        %817 = vmatprep.mubr.f32.mxu0 0.0
        %818 = vmatmul.mubr.f32.gmra.mxu0 %v742
        %v819 = vpop.f32.mrf.mxu0
        %v820 = vadd.f32 0.0, %v819
        %v821 = vpop.f32.mrf.mxu0
        %822 = vmatprep.mubr.f32.mxu0 0.0
        %823 = vmatmul.mubr.f32.gmra.mxu0 %v744
        %v824 = vpop.f32.mrf.mxu0
        %v825 = vadd.f32 0.0, %v824
        %v826 = vpop.f32.mrf.mxu0
        %827 = vmatprep.mubr.f32.mxu0 0.0
        %828 = vmatmul.mubr.f32.gmra.mxu0 %v746
        %v829 = vpop.f32.mrf.mxu0
        %v830 = vadd.f32 0.0, %v829
        %v831 = vpop.f32.mrf.mxu0
        %832 = vdwg.mxu0
        %833 = vmatprep.subr.mxu0 0.0
        %834 = vmatpush1.msra.mxu0 0.0
        %835 = vmatprep.subr.mxu0 0.0
        %836 = vmatpush1.msra.mxu0 0.0
        %837 = vmatprep.subr.mxu0 0.0
        %838 = vmatpush1.msra.mxu0 0.0
        %839 = vmatprep.subr.mxu0 0.0
        %840 = vmatpush1.msra.mxu0 0.0
        %841 = vmatprep.subr.mxu0 0.0
        %842 = vmatpush1.msra.mxu0 0.0
        %843 = vmatprep.subr.mxu0 0.0
        %844 = vmatpush1.msra.mxu0 0.0
        %845 = vmatprep.subr.mxu0 0.0
        %846 = vmatpush1.msra.mxu0 0.0
        %847 = vmatprep.subr.mxu0 0.0
        %848 = vmatpush1.msra.mxu0 0.0
        %849 = vmatprep.subr.mxu0 0.0
        %850 = vmatpush1.msra.mxu0 0.0
        %851 = vmatprep.subr.mxu0 0.0
        %852 = vmatpush1.msra.mxu0 0.0
        %853 = vmatprep.subr.mxu0 0.0
        %854 = vmatpush1.msra.mxu0 0.0
        %855 = vmatprep.subr.mxu0 0.0
        %856 = vmatpush1.msra.mxu0 0.0
        %857 = vmatprep.subr.mxu0 0.0
        %858 = vmatpush1.msra.mxu0 0.0
        %859 = vmatprep.subr.mxu0 0.0
        %860 = vmatpush1.msra.mxu0 0.0
        %861 = vmatprep.subr.mxu0 0.0
        %862 = vmatpush1.msra.mxu0 %v731
        %863 = vmatprep.subr.mxu0 0.0
        %864 = vmatpush1.msra.mxu0 %v730
        %865 = vmatprep.subr.mxu0 0.0
        %866 = vmatpush2.msra.mxu0 0.0
        %867 = vmatprep.subr.mxu0 0.0
        %868 = vmatpush2.msra.mxu0 0.0
        %869 = vmatprep.subr.mxu0 0.0
        %870 = vmatpush2.msra.mxu0 0.0
        %871 = vmatprep.subr.mxu0 0.0
        %872 = vmatpush2.msra.mxu0 0.0
        %873 = vmatprep.subr.mxu0 0.0
        %874 = vmatpush2.msra.mxu0 0.0
        %875 = vmatprep.subr.mxu0 0.0
        %876 = vmatpush2.msra.mxu0 0.0
        %877 = vmatprep.subr.mxu0 0.0
        %878 = vmatpush2.msra.mxu0 0.0
        %879 = vmatprep.subr.mxu0 0.0
        %880 = vmatpush2.msra.mxu0 0.0
        %881 = vmatprep.subr.mxu0 0.0
        %882 = vmatpush2.msra.mxu0 0.0
        %883 = vmatprep.subr.mxu0 0.0
        %884 = vmatpush2.msra.mxu0 0.0
        %885 = vmatprep.subr.mxu0 0.0
        %886 = vmatpush2.msra.mxu0 0.0
        %887 = vmatprep.subr.mxu0 0.0
        %888 = vmatpush2.msra.mxu0 0.0
        %889 = vmatprep.subr.mxu0 0.0
        %890 = vmatpush2.msra.mxu0 0.0
        %891 = vmatprep.subr.mxu0 0.0
        %892 = vmatpush2.msra.mxu0 0.0
        %893 = vmatprep.subr.mxu0 0.0
        %894 = vmatpush2.msra.mxu0 0.0
        %895 = vmatprep.subr.mxu0 0.0
        %896 = vmatpush2.msra.mxu0 0.0
        %897 = vmatprep.mubr.f32.mxu0 0.0
        %898 = vmatmul.mubr.f32.gmra.mxu0 %v739
        %v899 = vpop.f32.mrf.mxu0
        %v900 = vadd.f32 0.0, %v899
        %v901 = vpop.f32.mrf.mxu0
        %902 = vmatprep.mubr.f32.mxu0 0.0
        %903 = vmatmul.mubr.f32.gmra.mxu0 %v742
        %v904 = vpop.f32.mrf.mxu0
        %v905 = vadd.f32 0.0, %v904
        %v906 = vpop.f32.mrf.mxu0
        %907 = vmatprep.mubr.f32.mxu0 0.0
        %908 = vmatmul.mubr.f32.gmra.mxu0 %v744
        %v909 = vpop.f32.mrf.mxu0
        %v910 = vadd.f32 0.0, %v909
        %v911 = vpop.f32.mrf.mxu0
        %912 = vmatprep.mubr.f32.mxu0 0.0
        %913 = vmatmul.mubr.f32.gmra.mxu0 %v746
        %v914 = vpop.f32.mrf.mxu0
        %v915 = vadd.f32 0.0, %v914
        %v916 = vpop.f32.mrf.mxu0
        %917 = vdwg.mxu0
        %v918 = vsub.f32 %v815, %v910
        %v919 = vsub.f32 %v820, %v915
        %v920 = vadd.f32 %v825, %v900
        %v921 = vadd.f32 %v830, %v905
        %v922 = vmul.f32 %v474, %v918
        %v923 = vmul.f32 %v475, %v919
        %v924 = vsub.f32 %v922, %v476
        %v925 = vsub.f32 %v923, %v477
        %v926 = vmul.f32 %v474, %v920
        %v927 = vmul.f32 %v475, %v921
        %v928 = vsub.f32 %v926, %v479
        %v929 = vsub.f32 %v927, %v480
        %932 = vrot.lane.b32.xlu0 %v928, 16
        %v933 = vpop.permute.xlu0 %932
        %934 = vrot.lane.b32.xlu0 %v929, 16
        %v935 = vpop.permute.xlu0 %934
        %v938 = vsel %vm544, %v924, %v933
        %v939 = vsel %vm544, %v925, %v935
        %940 = vmatprep.subr.mxu0 0.0
        %941 = vmatpush1.msra.mxu0 0.0
        %942 = vmatprep.subr.mxu0 0.0
        %943 = vmatpush1.msra.mxu0 0.0
        %944 = vmatprep.subr.mxu0 0.0
        %945 = vmatpush1.msra.mxu0 0.0
        %946 = vmatprep.subr.mxu0 0.0
        %947 = vmatpush1.msra.mxu0 0.0
        %948 = vmatprep.subr.mxu0 0.0
        %949 = vmatpush1.msra.mxu0 0.0
        %950 = vmatprep.subr.mxu0 0.0
        %951 = vmatpush1.msra.mxu0 0.0
        %952 = vmatprep.subr.mxu0 0.0
        %953 = vmatpush1.msra.mxu0 0.0
        %954 = vmatprep.subr.mxu0 0.0
        %955 = vmatpush1.msra.mxu0 0.0
        %956 = vmatprep.subr.mxu0 0.0
        %957 = vmatpush1.msra.mxu0 0.0
        %958 = vmatprep.subr.mxu0 0.0
        %959 = vmatpush1.msra.mxu0 0.0
        %960 = vmatprep.subr.mxu0 0.0
        %961 = vmatpush1.msra.mxu0 0.0
        %962 = vmatprep.subr.mxu0 0.0
        %963 = vmatpush1.msra.mxu0 0.0
        %964 = vmatprep.subr.mxu0 0.0
        %965 = vmatpush1.msra.mxu0 0.0
        %966 = vmatprep.subr.mxu0 0.0
        %967 = vmatpush1.msra.mxu0 0.0
        %968 = vmatprep.subr.mxu0 0.0
        %969 = vmatpush1.msra.mxu0 %v939
        %970 = vmatprep.subr.mxu0 0.0
        %971 = vmatpush1.msra.mxu0 %v938
        %972 = vmatprep.subr.mxu0 0.0
        %973 = vmatpush2.msra.mxu0 0.0
        %974 = vmatprep.subr.mxu0 0.0
        %975 = vmatpush2.msra.mxu0 0.0
        %976 = vmatprep.subr.mxu0 0.0
        %977 = vmatpush2.msra.mxu0 0.0
        %978 = vmatprep.subr.mxu0 0.0
        %979 = vmatpush2.msra.mxu0 0.0
        %980 = vmatprep.subr.mxu0 0.0
        %981 = vmatpush2.msra.mxu0 0.0
        %982 = vmatprep.subr.mxu0 0.0
        %983 = vmatpush2.msra.mxu0 0.0
        %984 = vmatprep.subr.mxu0 0.0
        %985 = vmatpush2.msra.mxu0 0.0
        %986 = vmatprep.subr.mxu0 0.0
        %987 = vmatpush2.msra.mxu0 0.0
        %988 = vmatprep.subr.mxu0 0.0
        %989 = vmatpush2.msra.mxu0 0.0
        %990 = vmatprep.subr.mxu0 0.0
        %991 = vmatpush2.msra.mxu0 0.0
        %992 = vmatprep.subr.mxu0 0.0
        %993 = vmatpush2.msra.mxu0 0.0
        %994 = vmatprep.subr.mxu0 0.0
        %995 = vmatpush2.msra.mxu0 0.0
        %996 = vmatprep.subr.mxu0 0.0
        %997 = vmatpush2.msra.mxu0 0.0
        %998 = vmatprep.subr.mxu0 0.0
        %999 = vmatpush2.msra.mxu0 0.0
        %1000 = vmatprep.subr.mxu0 0.0
        %1001 = vmatpush2.msra.mxu0 0.0
        %1002 = vmatprep.subr.mxu0 0.0
        %1003 = vmatpush2.msra.mxu0 0.0
        %1004 = vmatprep.mubr.f32.mxu0 0.0
        %1005 = vmatmul.mubr.f32.gmra.mxu0 %v548
        %v1006 = vpop.f32.mrf.mxu0
        %v1007 = vadd.f32 0.0, %v1006
        %v1008 = vpop.f32.mrf.mxu0
        %1009 = vmatprep.mubr.f32.mxu0 0.0
        %1010 = vmatmul.mubr.f32.gmra.mxu0 %v551
        %v1011 = vpop.f32.mrf.mxu0
        %v1012 = vadd.f32 0.0, %v1011
        %v1013 = vpop.f32.mrf.mxu0
        %1014 = vdwg.mxu0
        %1015 = vmatprep.subr.mxu0 0.0
        %1016 = vmatpush1.msra.mxu0 0.0
        %1017 = vmatprep.subr.mxu0 0.0
        %1018 = vmatpush1.msra.mxu0 0.0
        %1019 = vmatprep.subr.mxu0 0.0
        %1020 = vmatpush1.msra.mxu0 0.0
        %1021 = vmatprep.subr.mxu0 0.0
        %1022 = vmatpush1.msra.mxu0 0.0
        %1023 = vmatprep.subr.mxu0 0.0
        %1024 = vmatpush1.msra.mxu0 0.0
        %1025 = vmatprep.subr.mxu0 0.0
        %1026 = vmatpush1.msra.mxu0 0.0
        %1027 = vmatprep.subr.mxu0 0.0
        %1028 = vmatpush1.msra.mxu0 0.0
        %1029 = vmatprep.subr.mxu0 0.0
        %1030 = vmatpush1.msra.mxu0 0.0
        %1031 = vmatprep.subr.mxu0 0.0
        %1032 = vmatpush1.msra.mxu0 0.0
        %1033 = vmatprep.subr.mxu0 0.0
        %1034 = vmatpush1.msra.mxu0 0.0
        %1035 = vmatprep.subr.mxu0 0.0
        %1036 = vmatpush1.msra.mxu0 0.0
        %1037 = vmatprep.subr.mxu0 0.0
        %1038 = vmatpush1.msra.mxu0 0.0
        %1039 = vmatprep.subr.mxu0 0.0
        %1040 = vmatpush1.msra.mxu0 0.0
        %1041 = vmatprep.subr.mxu0 0.0
        %1042 = vmatpush1.msra.mxu0 0.0
        %1043 = vmatprep.subr.mxu0 0.0
        %1044 = vmatpush1.msra.mxu0 %v939
        %1045 = vmatprep.subr.mxu0 0.0
        %1046 = vmatpush1.msra.mxu0 %v938
        %1047 = vmatprep.subr.mxu0 0.0
        %1048 = vmatpush2.msra.mxu0 0.0
        %1049 = vmatprep.subr.mxu0 0.0
        %1050 = vmatpush2.msra.mxu0 0.0
        %1051 = vmatprep.subr.mxu0 0.0
        %1052 = vmatpush2.msra.mxu0 0.0
        %1053 = vmatprep.subr.mxu0 0.0
        %1054 = vmatpush2.msra.mxu0 0.0
        %1055 = vmatprep.subr.mxu0 0.0
        %1056 = vmatpush2.msra.mxu0 0.0
        %1057 = vmatprep.subr.mxu0 0.0
        %1058 = vmatpush2.msra.mxu0 0.0
        %1059 = vmatprep.subr.mxu0 0.0
        %1060 = vmatpush2.msra.mxu0 0.0
        %1061 = vmatprep.subr.mxu0 0.0
        %1062 = vmatpush2.msra.mxu0 0.0
        %1063 = vmatprep.subr.mxu0 0.0
        %1064 = vmatpush2.msra.mxu0 0.0
        %1065 = vmatprep.subr.mxu0 0.0
        %1066 = vmatpush2.msra.mxu0 0.0
        %1067 = vmatprep.subr.mxu0 0.0
        %1068 = vmatpush2.msra.mxu0 0.0
        %1069 = vmatprep.subr.mxu0 0.0
        %1070 = vmatpush2.msra.mxu0 0.0
        %1071 = vmatprep.subr.mxu0 0.0
        %1072 = vmatpush2.msra.mxu0 0.0
        %1073 = vmatprep.subr.mxu0 0.0
        %1074 = vmatpush2.msra.mxu0 0.0
        %1075 = vmatprep.subr.mxu0 0.0
        %1076 = vmatpush2.msra.mxu0 0.0
        %1077 = vmatprep.subr.mxu0 0.0
        %1078 = vmatpush2.msra.mxu0 0.0
        %1079 = vmatprep.mubr.f32.mxu0 0.0
        %1080 = vmatmul.mubr.f32.gmra.mxu0 %v629
        %v1081 = vpop.f32.mrf.mxu0
        %v1082 = vadd.f32 0.0, %v1081
        %v1083 = vpop.f32.mrf.mxu0
        %1084 = vmatprep.mubr.f32.mxu0 0.0
        %1085 = vmatmul.mubr.f32.gmra.mxu0 %v632
        %v1086 = vpop.f32.mrf.mxu0
        %v1087 = vadd.f32 0.0, %v1086
        %v1088 = vpop.f32.mrf.mxu0
        %1089 = vdwg.mxu0
        %1092 = vrot.lane.b32.xlu0 %v1082, 112
        %v1093 = vpop.permute.xlu0 %1092
        %1094 = vrot.lane.b32.xlu0 %v1087, 112
        %v1095 = vpop.permute.xlu0 %1094
        %v1098 = vadd.f32 %v1007, %v1093
        %v1099 = vadd.f32 %v1012, %v1095
        %1100 = vrot.lane.b32.xlu0 %v1082, 16
        %v1101 = vpop.permute.xlu0 %1100
        %1102 = vrot.lane.b32.xlu0 %v1087, 16
        %v1103 = vpop.permute.xlu0 %1102
        %v1106 = vsub.f32 %v1007, %v1101
        %v1107 = vsub.f32 %v1012, %v1103
        %1110 = vrot.lane.b32.xlu0 %v1106, 112
        %v1111 = vpop.permute.xlu0 %1110
        %1112 = vrot.lane.b32.xlu0 %v1107, 112
        %v1113 = vpop.permute.xlu0 %1112
        %v1115 = vsel %vm544, %v1098, 0
        %v1118 = vsel %vm544, %v1099, 0
        %v1120 = vsel %vm544, %v1111, 0
        %v1122 = vsel %vm544, %v1113, 0
        %1124 = vmatprep.subr.mxu0 0.0
        %1125 = vmatpush1.msra.mxu0 0.0
        %1126 = vmatprep.subr.mxu0 0.0
        %1127 = vmatpush1.msra.mxu0 0.0
        %1128 = vmatprep.subr.mxu0 0.0
        %1129 = vmatpush1.msra.mxu0 0.0
        %1130 = vmatprep.subr.mxu0 0.0
        %1131 = vmatpush1.msra.mxu0 0.0
        %1132 = vmatprep.subr.mxu0 0.0
        %1133 = vmatpush1.msra.mxu0 0.0
        %1134 = vmatprep.subr.mxu0 0.0
        %1135 = vmatpush1.msra.mxu0 0.0
        %1136 = vmatprep.subr.mxu0 0.0
        %1137 = vmatpush1.msra.mxu0 0.0
        %1138 = vmatprep.subr.mxu0 0.0
        %1139 = vmatpush1.msra.mxu0 0.0
        %1140 = vmatprep.subr.mxu0 0.0
        %1141 = vmatpush1.msra.mxu0 0.0
        %1142 = vmatprep.subr.mxu0 0.0
        %1143 = vmatpush1.msra.mxu0 0.0
        %1144 = vmatprep.subr.mxu0 0.0
        %1145 = vmatpush1.msra.mxu0 0.0
        %1146 = vmatprep.subr.mxu0 0.0
        %1147 = vmatpush1.msra.mxu0 0.0
        %1148 = vmatprep.subr.mxu0 0.0
        %1149 = vmatpush1.msra.mxu0 0.0
        %1150 = vmatprep.subr.mxu0 0.0
        %1151 = vmatpush1.msra.mxu0 0.0
        %1152 = vmatprep.subr.mxu0 0.0
        %1153 = vmatpush1.msra.mxu0 %v728
        %1154 = vmatprep.subr.mxu0 0.0
        %1155 = vmatpush1.msra.mxu0 %v727
        %1156 = vmatprep.subr.mxu0 0.0
        %1157 = vmatpush2.msra.mxu0 0.0
        %1158 = vmatprep.subr.mxu0 0.0
        %1159 = vmatpush2.msra.mxu0 0.0
        %1160 = vmatprep.subr.mxu0 0.0
        %1161 = vmatpush2.msra.mxu0 0.0
        %1162 = vmatprep.subr.mxu0 0.0
        %1163 = vmatpush2.msra.mxu0 0.0
        %1164 = vmatprep.subr.mxu0 0.0
        %1165 = vmatpush2.msra.mxu0 0.0
        %1166 = vmatprep.subr.mxu0 0.0
        %1167 = vmatpush2.msra.mxu0 0.0
        %1168 = vmatprep.subr.mxu0 0.0
        %1169 = vmatpush2.msra.mxu0 0.0
        %1170 = vmatprep.subr.mxu0 0.0
        %1171 = vmatpush2.msra.mxu0 0.0
        %1172 = vmatprep.subr.mxu0 0.0
        %1173 = vmatpush2.msra.mxu0 0.0
        %1174 = vmatprep.subr.mxu0 0.0
        %1175 = vmatpush2.msra.mxu0 0.0
        %1176 = vmatprep.subr.mxu0 0.0
        %1177 = vmatpush2.msra.mxu0 0.0
        %1178 = vmatprep.subr.mxu0 0.0
        %1179 = vmatpush2.msra.mxu0 0.0
        %1180 = vmatprep.subr.mxu0 0.0
        %1181 = vmatpush2.msra.mxu0 0.0
        %1182 = vmatprep.subr.mxu0 0.0
        %1183 = vmatpush2.msra.mxu0 0.0
        %1184 = vmatprep.subr.mxu0 0.0
        %1185 = vmatpush2.msra.mxu0 0.0
        %1186 = vmatprep.subr.mxu0 0.0
        %1187 = vmatpush2.msra.mxu0 0.0
        %1188 = vmatprep.mubr.f32.mxu0 0.0
        %1189 = vmatmul.mubr.f32.gmra.mxu0 %v1115
        %v1190 = vpop.f32.mrf.mxu0
        %v1191 = vadd.f32 0.0, %v1190
        %v1192 = vpop.f32.mrf.mxu0
        %1193 = vmatprep.mubr.f32.mxu0 0.0
        %1194 = vmatmul.mubr.f32.gmra.mxu0 %v1118
        %v1195 = vpop.f32.mrf.mxu0
        %v1196 = vadd.f32 0.0, %v1195
        %v1197 = vpop.f32.mrf.mxu0
        %1198 = vmatprep.mubr.f32.mxu0 0.0
        %1199 = vmatmul.mubr.f32.gmra.mxu0 %v1120
        %v1200 = vpop.f32.mrf.mxu0
        %v1201 = vadd.f32 0.0, %v1200
        %v1202 = vpop.f32.mrf.mxu0
        %1203 = vmatprep.mubr.f32.mxu0 0.0
        %1204 = vmatmul.mubr.f32.gmra.mxu0 %v1122
        %v1205 = vpop.f32.mrf.mxu0
        %v1206 = vadd.f32 0.0, %v1205
        %v1207 = vpop.f32.mrf.mxu0
        %1208 = vdwg.mxu0
        %1209 = vmatprep.subr.mxu0 0.0
        %1210 = vmatpush1.msra.mxu0 0.0
        %1211 = vmatprep.subr.mxu0 0.0
        %1212 = vmatpush1.msra.mxu0 0.0
        %1213 = vmatprep.subr.mxu0 0.0
        %1214 = vmatpush1.msra.mxu0 0.0
        %1215 = vmatprep.subr.mxu0 0.0
        %1216 = vmatpush1.msra.mxu0 0.0
        %1217 = vmatprep.subr.mxu0 0.0
        %1218 = vmatpush1.msra.mxu0 0.0
        %1219 = vmatprep.subr.mxu0 0.0
        %1220 = vmatpush1.msra.mxu0 0.0
        %1221 = vmatprep.subr.mxu0 0.0
        %1222 = vmatpush1.msra.mxu0 0.0
        %1223 = vmatprep.subr.mxu0 0.0
        %1224 = vmatpush1.msra.mxu0 0.0
        %1225 = vmatprep.subr.mxu0 0.0
        %1226 = vmatpush1.msra.mxu0 0.0
        %1227 = vmatprep.subr.mxu0 0.0
        %1228 = vmatpush1.msra.mxu0 0.0
        %1229 = vmatprep.subr.mxu0 0.0
        %1230 = vmatpush1.msra.mxu0 0.0
        %1231 = vmatprep.subr.mxu0 0.0
        %1232 = vmatpush1.msra.mxu0 0.0
        %1233 = vmatprep.subr.mxu0 0.0
        %1234 = vmatpush1.msra.mxu0 0.0
        %1235 = vmatprep.subr.mxu0 0.0
        %1236 = vmatpush1.msra.mxu0 0.0
        %1237 = vmatprep.subr.mxu0 0.0
        %1238 = vmatpush1.msra.mxu0 %v731
        %1239 = vmatprep.subr.mxu0 0.0
        %1240 = vmatpush1.msra.mxu0 %v730
        %1241 = vmatprep.subr.mxu0 0.0
        %1242 = vmatpush2.msra.mxu0 0.0
        %1243 = vmatprep.subr.mxu0 0.0
        %1244 = vmatpush2.msra.mxu0 0.0
        %1245 = vmatprep.subr.mxu0 0.0
        %1246 = vmatpush2.msra.mxu0 0.0
        %1247 = vmatprep.subr.mxu0 0.0
        %1248 = vmatpush2.msra.mxu0 0.0
        %1249 = vmatprep.subr.mxu0 0.0
        %1250 = vmatpush2.msra.mxu0 0.0
        %1251 = vmatprep.subr.mxu0 0.0
        %1252 = vmatpush2.msra.mxu0 0.0
        %1253 = vmatprep.subr.mxu0 0.0
        %1254 = vmatpush2.msra.mxu0 0.0
        %1255 = vmatprep.subr.mxu0 0.0
        %1256 = vmatpush2.msra.mxu0 0.0
        %1257 = vmatprep.subr.mxu0 0.0
        %1258 = vmatpush2.msra.mxu0 0.0
        %1259 = vmatprep.subr.mxu0 0.0
        %1260 = vmatpush2.msra.mxu0 0.0
        %1261 = vmatprep.subr.mxu0 0.0
        %1262 = vmatpush2.msra.mxu0 0.0
        %1263 = vmatprep.subr.mxu0 0.0
        %1264 = vmatpush2.msra.mxu0 0.0
        %1265 = vmatprep.subr.mxu0 0.0
        %1266 = vmatpush2.msra.mxu0 0.0
        %1267 = vmatprep.subr.mxu0 0.0
        %1268 = vmatpush2.msra.mxu0 0.0
        %1269 = vmatprep.subr.mxu0 0.0
        %1270 = vmatpush2.msra.mxu0 0.0
        %1271 = vmatprep.subr.mxu0 0.0
        %1272 = vmatpush2.msra.mxu0 0.0
        %1273 = vmatprep.mubr.f32.mxu0 0.0
        %1274 = vmatmul.mubr.f32.gmra.mxu0 %v1115
        %v1275 = vpop.f32.mrf.mxu0
        %v1276 = vadd.f32 0.0, %v1275
        %v1277 = vpop.f32.mrf.mxu0
        %1278 = vmatprep.mubr.f32.mxu0 0.0
        %1279 = vmatmul.mubr.f32.gmra.mxu0 %v1118
        %v1280 = vpop.f32.mrf.mxu0
        %v1281 = vadd.f32 0.0, %v1280
        %v1282 = vpop.f32.mrf.mxu0
        %1283 = vmatprep.mubr.f32.mxu0 0.0
        %1284 = vmatmul.mubr.f32.gmra.mxu0 %v1120
        %v1285 = vpop.f32.mrf.mxu0
        %v1286 = vadd.f32 0.0, %v1285
        %v1287 = vpop.f32.mrf.mxu0
        %1288 = vmatprep.mubr.f32.mxu0 0.0
        %1289 = vmatmul.mubr.f32.gmra.mxu0 %v1122
        %v1290 = vpop.f32.mrf.mxu0
        %v1291 = vadd.f32 0.0, %v1290
        %v1292 = vpop.f32.mrf.mxu0
        %1293 = vdwg.mxu0
        %v1294 = vadd.f32 %v1191, %v1286
        %v1295 = vadd.f32 %v1196, %v1291
        %v1296 = vsub.f32 %v1201, %v1276
        %v1297 = vsub.f32 %v1206, %v1281
        %v1298 = vld [vmem:[%s456] sm:$0xff]
        %v1299 = vld [vmem:[%s456 + $0x8] sm:$0xff]
        %v1300 = vmul.f32 %v1294, %v486
        %v1301 = vmul.f32 %v1295, %v487
        %v1302 = vmul.f32 %v1296, %v489
        %v1303 = vmul.f32 %v1297, %v490
        %v1304 = vadd.f32 %v1300, %v1302
        %v1305 = vadd.f32 %v1301, %v1303
        %v1306 = vadd.f32 %v1298, %v1304
        %v1307 = vadd.f32 %v1299, %v1305
        %1308 = vst.msk [vmem:[%s456] sm:$0xff] %vm544, %v1306
        %1309 = vst.msk [vmem:[%s456 + $0x8] sm:$0xff] %vm544, %v1307
        %s1310 = scalar_lea.vmem %s456, 32 [#allocation13]
        %v1311 = vld [vmem:[%s1310] sm:$0xff]
        %v1312 = vld [vmem:[%s1310 + $0x8] sm:$0xff]
        %v1313 = vmul.f32 %v1296, %v486
        %v1314 = vmul.f32 %v1297, %v487
        %v1315 = vmul.f32 %v1294, %v489
        %v1316 = vmul.f32 %v1295, %v490
        %v1317 = vsub.f32 %v1313, %v1315
        %v1318 = vsub.f32 %v1314, %v1316
        %v1319 = vadd.f32 %v1311, %v1317
        %v1320 = vadd.f32 %v1312, %v1318
        %1321 = vst.msk [vmem:[%s1310] sm:$0xff] %vm544, %v1319
        %1322 = vst.msk [vmem:[%s1310 + $0x8] sm:$0xff] %vm544, %v1320
        %v1323 = vld [vmem:[%s509] sm:$0xff]
        %v1324 = vld [vmem:[%s509 + $0x8] sm:$0xff]
        %v1325 = vld [vmem:[%s512] sm:$0xff]
        %v1326 = vld [vmem:[%s512 + $0x8] sm:$0xff]
        %s1327 = scalar_lea.vmem %s456, 16 [#allocation13]
        %v1328 = vld [vmem:[%s1327] sm:$0xff]
        %v1329 = vld [vmem:[%s1327 + $0x8] sm:$0xff]
        %v1330 = vmul.f32 %v1294, %v1323
        %v1331 = vmul.f32 %v1295, %v1324
        %v1332 = vmul.f32 %v1296, %v1325
        %v1333 = vmul.f32 %v1297, %v1326
        %v1334 = vadd.f32 %v1330, %v1332
        %v1335 = vadd.f32 %v1331, %v1333
        %v1336 = vadd.f32 %v1328, %v1334
        %v1337 = vadd.f32 %v1329, %v1335
        %1338 = vst.msk [vmem:[%s1327] sm:$0xff] %vm544, %v1336
        %1339 = vst.msk [vmem:[%s1327 + $0x8] sm:$0xff] %vm544, %v1337
        %s1340 = scalar_lea.vmem %s456, 48 [#allocation13]
        %v1341 = vld [vmem:[%s1340] sm:$0xff]
        %v1342 = vld [vmem:[%s1340 + $0x8] sm:$0xff]
        %v1343 = vmul.f32 %v1296, %v1323
        %v1344 = vmul.f32 %v1297, %v1324
        %v1345 = vmul.f32 %v1294, %v1325
        %v1346 = vmul.f32 %v1295, %v1326
        %v1347 = vsub.f32 %v1343, %v1345
        %v1348 = vsub.f32 %v1344, %v1346
        %v1349 = vadd.f32 %v1341, %v1347
        %v1350 = vadd.f32 %v1342, %v1348
        %1351 = vst.msk [vmem:[%s1340] sm:$0xff] %vm544, %v1349
        %1352 = vst.msk [vmem:[%s1340 + $0x8] sm:$0xff] %vm544, %v1350
        %s1353 = sand.u32 %s217, 1
        %s1354 = scalar_lea.sflag [#allocation4], %s1353
        %s1355 = sand.u32 %s217, 1
        %s1356 = smul.addr %s1355, 64
        %s1357 = scalar_lea.vmem [#allocation13], %s1356
        // Predicated region
        $region73: #{tpu_custom_call.1} parent=43 // pred_check
          %p1358 = pneg %p227
        $region74: #{tpu_custom_call.1} parent=43 // pred_check_branch
          %1360 = sbr.rel (%p1358) target = $region76
        $region75: #{tpu_custom_call.1} parent=43 // pred_region
          %s1362 = ssub.s32 1024, 1024
          %1363 = vsyncadd %s1354, %s1362
          %s1364 = smul.addr %s35, 8
          %s1365 = smul.addr %s36, 16
          %s1366 = sadd.s32 %s1364, %s1365
          %s1367 = smul.addr %s1366, 128
          %s1368 = scalar_lea.hbm %s6, %s1367
          %s1369 = sshll.u32 %s1357, 4
          %s1370 = int_to_ptr.vmem [resolvable:$true] %s1369
          %1375 = dma.vmem_to_hbm [thread:$0]  %s1370, 1024, %s1368, %s1354, 128, 128, 8
        $region76: #{tpu_custom_call.1} parent=43 // pred_fallthru
          _
      $region44: #{tpu_custom_call.1} parent=5 // pred_fallthru
        _
      %p1376 = scmp.le.s32.totalorder 2, %s25
      // Predicated region
      $region77: #{tpu_custom_call.1} parent=5 // pred_check
        %p1377 = pneg %p1376
      $region78: #{tpu_custom_call.1} parent=5 // pred_check_branch
        %1379 = sbr.rel (%p1377) target = $region80
      $region79: #{tpu_custom_call.1} parent=5 // pred_region
        %s1380 = ssub.s32 %s25, 2
        // Predicated region
        $region81: #{tpu_custom_call.1} parent=79 // pred_check
          %p1381 = pneg %p233
        $region82: #{tpu_custom_call.1} parent=79 // pred_check_branch
          %1383 = sbr.rel (%p1381) target = $region84
        $region83: #{tpu_custom_call.1} parent=79 // pred_region
          %s1384 = sand.u32 %s218, 1
          %s1385 = scalar_lea.sflag [#allocation4], %s1384
          %s1386 = sand.u32 %s218, 1
          %s1387 = smul.addr %s1386, 64
          %s1388 = scalar_lea.vmem [#allocation13], %s1387
          %1389 = dma.done %s1385, 1024
        $region84: #{tpu_custom_call.1} parent=79 // pred_fallthru
          _
      $region80: #{tpu_custom_call.1} parent=5 // pred_fallthru
        _
    $region6: #{tpu_custom_call.1} parent=1 // loop_footer
      %s29 = sadd.s32 1, %s25
    $region7: #{tpu_custom_call.1} parent=1 // loop_footer_branch
      %24 = sbr.rel target = $region3
    $region8: #{tpu_custom_call.1} parent=1 // loop_exit
      _
    %1390 = vsyncpa [#allocation3], 1
    %s1391 = scalar_lea.sflag [#allocation3], 1
    %1392 = vsyncpa %s1391, 1
    %1393 = vsyncpa [#allocation6], 1
    %s1394 = scalar_lea.sflag [#allocation6], 1
    %1395 = vsyncpa %s1394, 1
    %1396 = vsyncpa [#allocation9], 1
    %s1397 = scalar_lea.sflag [#allocation9], 1
    %1398 = vsyncpa %s1397, 1
    %1399 = vsyncpa [#allocation12], 1
    %1400 = vsyncpa [#allocation4], 1
    %s1401 = scalar_lea.sflag [#allocation4], 1
    %1402 = vsyncpa %s1401, 1

</llo_original>
